<compile_context>
chip_gen: v5e
topology: v5e:2x2
jax: 0.10.0
libtpu: 0.0.40
codegen_flags: <defaults>
</compile_context>

<pallas_src>
import math
import jax
import jax.numpy as jnp
from jax import lax
from jax.experimental import pallas as pl
from jax.experimental.pallas import tpu as pltpu

LEAKY_SLOPE = 0.01   # PyTorch LeakyReLU default negative_slope
BN_EPS = 1e-5


def _vmem_limit_bytes():
    """Generation-aware scoped-VMEM budget (<= ~75% of physical VMEM)."""
    try:
        cap = pltpu.get_tpu_info().vmem_capacity_bytes
    except Exception:
        cap = 64 * 1024 * 1024          # conservative (v7x physical VMEM)
    return min(int(cap * 3 // 4), 96 * 1024 * 1024)


def _pick_cob(cout):
    """Output-channel tile: lane-friendly and <= 256."""
    for cand in (256, 128):
        if cout % cand == 0:
            return cand
    return cout


# --------------------------------------------------------------------------
# Fused (upsample-folded) conv + folded BatchNorm affine + LeakyReLU
# --------------------------------------------------------------------------
def _up2_conv3x3_bn_lrelu(xp, w_eff, scale, shift):
    """xp:    (N, H+2, W+2, Cin) bf16  -- ORIGINAL-resolution input, 1-px zero halo
       w_eff: (2, 2, 4*Cin, Cout) bf16 -- parity-folded weights (see init_params)
       scale: (1, Cout) f32 = gamma / sqrt(running_var + eps)
       shift: (1, Cout) f32 = (conv_bias - running_mean) * scale + beta
       returns (N, 2, 2, H, W, Cout) f32 with out[n,a,b,i,j,:] == y[n, 2i+a, 2j+b, :]
    """
    N, Hp, Wp, Cin = xp.shape
    H, W = Hp - 2, Wp - 2
    Cout = w_eff.shape[-1]
    COB = _pick_cob(Cout)
    n_co = Cout // COB

    def kernel(x_ref, w_ref, sc_ref, sh_ref, o_ref, patch_ref):
        # Four output parities; each is a 2x2 conv on the padded original input.
        for a in range(2):
            for b in range(2):
                # im2col: stage the 4 relevant taps side-by-side along lanes.
                # Each store retires its slice -> small live-vreg set, no spills.
                for dy in range(2):
                    for dx in range(2):
                        t = dy * 2 + dx
                        patch_ref[:, t * Cin:(t + 1) * Cin] = (
                            x_ref[0, a + dy:a + dy + H, b + dx:b + dx + W, :]
                            .reshape(H * W, Cin))
                # One fat MXU matmul: (H*W, 4*Cin) @ (4*Cin, COB), f32 accumulation.
                acc = jnp.dot(patch_ref[...], w_ref[a, b],
                              preferred_element_type=jnp.float32)
                y = acc * sc_ref[...] + sh_ref[...]              # conv-bias + BN folded
                y = jnp.where(y > 0, y, LEAKY_SLOPE * y)         # LeakyReLU
                o_ref[0, a, b] = y.reshape(H, W, COB).astype(o_ref.dtype)

    return pl.pallas_call(
        kernel,
        out_shape=jax.ShapeDtypeStruct((N, 2, 2, H, W, Cout), jnp.float32),
        grid_spec=pltpu.PrefetchScalarGridSpec(
            num_scalar_prefetch=0,
            grid=(N, n_co),
            in_specs=[
                # same input block for every co -> Pallas skips the re-DMA
                pl.BlockSpec((1, Hp, Wp, Cin), lambda n, co: (n, 0, 0, 0)),
                pl.BlockSpec((2, 2, 4 * Cin, COB), lambda n, co: (0, 0, 0, co)),
                pl.BlockSpec((1, COB), lambda n, co: (0, co)),
                pl.BlockSpec((1, COB), lambda n, co: (0, co)),
            ],
            out_specs=pl.BlockSpec((1, 2, 2, H, W, COB),
                                   lambda n, co: (n, 0, 0, 0, 0, co)),
            scratch_shapes=[pltpu.VMEM((H * W, 4 * Cin), jnp.bfloat16)],
        ),
        compiler_params=pltpu.CompilerParams(
            dimension_semantics=("parallel", "parallel"),
            vmem_limit_bytes=_vmem_limit_bytes(),
        ),
    )(xp, w_eff, scale, shift)


# --------------------------------------------------------------------------
# upConv forward (matches the PyTorch module in eval mode)
# --------------------------------------------------------------------------
def up_conv_forward(params, x):
    """x: (N, ch_in, H, W) NCHW f32 -> (N, ch_out, 2H, 2W) NCHW f32."""
    N, _, H, W = x.shape
    xh = jnp.transpose(x, (0, 2, 3, 1)).astype(jnp.bfloat16)     # NHWC, bf16
    # 1-pixel zero halo on the ORIGINAL resolution (upsample is folded in-kernel)
    xp = jnp.pad(xh, ((0, 0), (1, 1), (1, 1), (0, 0)))
    y = _up2_conv3x3_bn_lrelu(xp, params["w_eff"], params["scale"], params["shift"])
    Cout = y.shape[-1]
    # (n, a, b, i, j, c) -> (n, c, i, a, j, b) -> (N, Cout, 2H, 2W)
    y = jnp.transpose(y, (0, 5, 3, 1, 4, 2)).reshape(N, Cout, 2 * H, 2 * W)
    # Dropout2d(p=0.2): identity in eval mode.
    return y


# --------------------------------------------------------------------------
# Deterministic synthetic parameters (BN running stats folded into scale/shift)
# --------------------------------------------------------------------------
def init_params(key, ch_in, ch_out):
    ks = jax.random.split(key, 4)
    w = jax.random.normal(ks[0], (3, 3, ch_in, ch_out), jnp.float32) / math.sqrt(9 * ch_in)
    b = 0.01 * jax.random.normal(ks[1], (ch_out,), jnp.float32)
    gamma = 1.0 + 0.1 * jax.random.normal(ks[2], (ch_out,), jnp.float32)
    beta = 0.1 * jax.random.normal(ks[3], (ch_out,), jnp.float32)
    running_mean = jnp.zeros((ch_out,), jnp.float32)
    running_var = jnp.ones((ch_out,), jnp.float32)
    scale = gamma / jnp.sqrt(running_var + BN_EPS)
    shift = (b - running_mean) * scale + beta

    # Fold nearest-2x upsample into the 3x3 conv.  For output row 2i+a the conv
    # touches only original rows {i-1+a, i+a}; the effective 2-tap row weights are
    #   a=0: [W(ky=0), W(ky=1)+W(ky=2)]      a=1: [W(ky=0)+W(ky=1), W(ky=2)]
    # (same for columns).  R[a, dy, ky] encodes these sums.
    R = jnp.array([[[1., 0., 0.],
                    [0., 1., 1.]],
                   [[1., 1., 0.],
                    [0., 0., 1.]]], jnp.float32)               # (2, 2, 3)
    w_eff = jnp.einsum('adk,bel,klio->abdeio', R, R, w)        # (2,2, dy,dx, Cin,Cout)
    w_eff = w_eff.reshape(2, 2, 4 * ch_in, ch_out).astype(jnp.bfloat16)

    return {
        "w": w,                                # HWIO (3,3,Cin,Cout), reference only
        "w_eff": w_eff,                        # parity-folded kernel weight
        "scale": scale.reshape(1, ch_out),
        "shift": shift.reshape(1, ch_out),
    }


def _reference(params, x):
    """Plain-JAX reference: explicit upsample + 3x3 conv (same bf16 inputs)."""
    xh = jnp.transpose(x, (0, 2, 3, 1)).astype(jnp.bfloat16)
    u = jnp.repeat(jnp.repeat(xh, 2, axis=1), 2, axis=2)        # nearest, scale 2
    y = lax.conv_general_dilated(
        u, params["w"].astype(jnp.bfloat16),
        window_strides=(1, 1), padding=((1, 1), (1, 1)),
        dimension_numbers=("NHWC", "HWIO", "NHWC"),
        preferred_element_type=jnp.float32)
    y = y * params["scale"] + params["shift"]
    y = jnp.where(y > 0, y, LEAKY_SLOPE * y)
    return jnp.transpose(y, (0, 3, 1, 2))


# --------------------------------------------------------------------------
if __name__ == "__main__":
    key = jax.random.PRNGKey(0)
    kp, kx = jax.random.split(key)

    N, CH_IN, CH_OUT, H, W = 2, 128, 64, 8, 8
    params = init_params(kp, CH_IN, CH_OUT)
    x = jax.random.normal(kx, (N, CH_IN, H, W), jnp.float32)

    fwd = jax.jit(up_conv_forward)
    out = jax.block_until_ready(fwd(params, x))

    assert out.shape == (N, CH_OUT, 2 * H, 2 * W), out.shape
    assert bool(jnp.all(jnp.isfinite(out)))

    ref = jax.block_until_ready(jax.jit(_reference)(params, x))
    assert bool(jnp.allclose(out, ref, rtol=2e-2, atol=2e-2)), (
        float(jnp.max(jnp.abs(out - ref))))

    print("KERNEL_OK")
</pallas_src>

<mosaic_0001>
module attributes {stable_mosaic.version = 11 : i64} {
  func.func @kernel(%arg0: i32, %arg1: i32, %arg2: memref<1x10x10x128xbf16, #tpu.memory_space<vmem>>, %arg3: memref<2x2x512x64xbf16, #tpu.memory_space<vmem>>, %arg4: memref<1x64xf32, #tpu.memory_space<vmem>>, %arg5: memref<1x64xf32, #tpu.memory_space<vmem>>, %arg6: memref<1x2x2x8x8x64xf32, #tpu.memory_space<vmem>>, %arg7: memref<64x512xbf16, #tpu.memory_space<vmem>>) attributes {dimension_semantics = [#tpu.dimension_semantics<parallel>, #tpu.dimension_semantics<parallel>], iteration_bounds = array<i64: 2, 1>, scalar_prefetch = 0 : i64, scratch_operands = 1 : i64, tpu.core_type = #tpu.core_type<tc>, window_params = [{transform_indices = @transform_0, window_bounds = array<i64: 1, 10, 10, 128>}, {transform_indices = @transform_1, window_bounds = array<i64: 2, 2, 512, 64>}, {transform_indices = @transform_2, window_bounds = array<i64: 1, 64>}, {transform_indices = @transform_3, window_bounds = array<i64: 1, 64>}, {transform_indices = @transform_4, window_bounds = array<i64: 1, 2, 2, 8, 8, 64>}]} {
    %c0 = arith.constant 0 : index
    %c0_0 = arith.constant 0 : index
    %c0_1 = arith.constant 0 : index
    %c0_2 = arith.constant 0 : index
    %0 = vector.load %arg2[%c0, %c0_0, %c0_1, %c0_2] : memref<1x10x10x128xbf16, #tpu.memory_space<vmem>>, vector<1x8x8x128xbf16>
    %1 = vector.shape_cast %0 : vector<1x8x8x128xbf16> to vector<8x8x128xbf16>
    %2 = vector.shape_cast %1 : vector<8x8x128xbf16> to vector<64x128xbf16>
    %c0_3 = arith.constant 0 : index
    %c0_4 = arith.constant 0 : index
    %3 = vector.load %arg7[%c0_3, %c0_4] : memref<64x512xbf16, #tpu.memory_space<vmem>>, vector<64x128xbf16>
    tpu.vector_store %arg7[%c0_3, %c0_4], %2 {strides = array<i32>} : memref<64x512xbf16, #tpu.memory_space<vmem>>, vector<64x128xbf16>,
    %c0_5 = arith.constant 0 : index
    %c0_6 = arith.constant 0 : index
    %c1 = arith.constant 1 : index
    %c0_7 = arith.constant 0 : index
    %4 = vector.load %arg2[%c0_5, %c0_6, %c1, %c0_7] : memref<1x10x10x128xbf16, #tpu.memory_space<vmem>>, vector<1x8x8x128xbf16>
    %5 = vector.shape_cast %4 : vector<1x8x8x128xbf16> to vector<8x8x128xbf16>
    %6 = vector.shape_cast %5 : vector<8x8x128xbf16> to vector<64x128xbf16>
    %c0_8 = arith.constant 0 : index
    %c128 = arith.constant 128 : index
    %7 = vector.load %arg7[%c0_8, %c128] : memref<64x512xbf16, #tpu.memory_space<vmem>>, vector<64x128xbf16>
    tpu.vector_store %arg7[%c0_8, %c128], %6 {strides = array<i32>} : memref<64x512xbf16, #tpu.memory_space<vmem>>, vector<64x128xbf16>,
    %c0_9 = arith.constant 0 : index
    %c1_10 = arith.constant 1 : index
    %c0_11 = arith.constant 0 : index
    %c0_12 = arith.constant 0 : index
    %8 = vector.load %arg2[%c0_9, %c1_10, %c0_11, %c0_12] : memref<1x10x10x128xbf16, #tpu.memory_space<vmem>>, vector<1x8x8x128xbf16>
    %9 = vector.shape_cast %8 : vector<1x8x8x128xbf16> to vector<8x8x128xbf16>
    %10 = vector.shape_cast %9 : vector<8x8x128xbf16> to vector<64x128xbf16>
    %c0_13 = arith.constant 0 : index
    %c256 = arith.constant 256 : index
    %11 = vector.load %arg7[%c0_13, %c256] : memref<64x512xbf16, #tpu.memory_space<vmem>>, vector<64x128xbf16>
    tpu.vector_store %arg7[%c0_13, %c256], %10 {strides = array<i32>} : memref<64x512xbf16, #tpu.memory_space<vmem>>, vector<64x128xbf16>,
    %c0_14 = arith.constant 0 : index
    %c1_15 = arith.constant 1 : index
    %c1_16 = arith.constant 1 : index
    %c0_17 = arith.constant 0 : index
    %12 = vector.load %arg2[%c0_14, %c1_15, %c1_16, %c0_17] : memref<1x10x10x128xbf16, #tpu.memory_space<vmem>>, vector<1x8x8x128xbf16>
    %13 = vector.shape_cast %12 : vector<1x8x8x128xbf16> to vector<8x8x128xbf16>
    %14 = vector.shape_cast %13 : vector<8x8x128xbf16> to vector<64x128xbf16>
    %c0_18 = arith.constant 0 : index
    %c384 = arith.constant 384 : index
    %15 = vector.load %arg7[%c0_18, %c384] : memref<64x512xbf16, #tpu.memory_space<vmem>>, vector<64x128xbf16>
    tpu.vector_store %arg7[%c0_18, %c384], %14 {strides = array<i32>} : memref<64x512xbf16, #tpu.memory_space<vmem>>, vector<64x128xbf16>,
    %c0_19 = arith.constant 0 : index
    %c0_20 = arith.constant 0 : index
    %16 = vector.load %arg7[%c0_19, %c0_20] : memref<64x512xbf16, #tpu.memory_space<vmem>>, vector<64x512xbf16>
    %c0_21 = arith.constant 0 : index
    %c0_22 = arith.constant 0 : index
    %c0_23 = arith.constant 0 : index
    %c0_24 = arith.constant 0 : index
    %17 = vector.load %arg3[%c0_21, %c0_22, %c0_23, %c0_24] : memref<2x2x512x64xbf16, #tpu.memory_space<vmem>>, vector<1x1x512x64xbf16>
    %18 = vector.shape_cast %17 : vector<1x1x512x64xbf16> to vector<512x64xbf16>
    %cst = arith.constant dense<0.000000e+00> : vector<64x64xf32>
    %19 = tpu.matmul %16, %18, %cst {dimension_numbers = #tpu.dot_dimension_numbers<[1], [0], [0], [1], [0, 0, 1, 1], [], []>} : vector<64x512xbf16>, vector<512x64xbf16>, vector<64x64xf32> -> vector<64x64xf32>
    %c0_25 = arith.constant 0 : index
    %c0_26 = arith.constant 0 : index
    %20 = vector.load %arg4[%c0_25, %c0_26] : memref<1x64xf32, #tpu.memory_space<vmem>>, vector<1x64xf32>
    %21 = vector.broadcast %20 : vector<1x64xf32> to vector<64x64xf32>
    %22 = arith.mulf %19, %21 : vector<64x64xf32>
    %c0_27 = arith.constant 0 : index
    %c0_28 = arith.constant 0 : index
    %23 = vector.load %arg5[%c0_27, %c0_28] : memref<1x64xf32, #tpu.memory_space<vmem>>, vector<1x64xf32>
    %24 = vector.broadcast %23 : vector<1x64xf32> to vector<64x64xf32>
    %25 = arith.addf %22, %24 : vector<64x64xf32>
    %cst_29 = arith.constant 0.000000e+00 : f32
    %26 = vector.broadcast %cst_29 : f32 to vector<64x64xf32>
    %27 = arith.cmpf ogt, %25, %26 : vector<64x64xf32>
    %cst_30 = arith.constant 0.00999999977 : f32
    %28 = vector.broadcast %cst_30 : f32 to vector<64x64xf32>
    %29 = arith.mulf %28, %25 : vector<64x64xf32>
    %30 = arith.select %27, %25, %29 : vector<64x64xi1>, vector<64x64xf32>
    %31 = vector.shape_cast %30 : vector<64x64xf32> to vector<8x8x64xf32>
    %c0_31 = arith.constant 0 : index
    %c0_32 = arith.constant 0 : index
    %c0_33 = arith.constant 0 : index
    %c0_34 = arith.constant 0 : index
    %c0_35 = arith.constant 0 : index
    %c0_36 = arith.constant 0 : index
    %32 = vector.load %arg6[%c0_31, %c0_32, %c0_33, %c0_34, %c0_35, %c0_36] : memref<1x2x2x8x8x64xf32, #tpu.memory_space<vmem>>, vector<1x1x1x8x8x64xf32>
    %33 = vector.shape_cast %32 : vector<1x1x1x8x8x64xf32> to vector<8x8x64xf32>
    %34 = vector.shape_cast %31 : vector<8x8x64xf32> to vector<1x1x1x8x8x64xf32>
    tpu.vector_store %arg6[%c0_31, %c0_32, %c0_33, %c0_34, %c0_35, %c0_36], %34 {strides = array<i32>} : memref<1x2x2x8x8x64xf32, #tpu.memory_space<vmem>>, vector<1x1x1x8x8x64xf32>,
    %c0_37 = arith.constant 0 : index
    %c0_38 = arith.constant 0 : index
    %c1_39 = arith.constant 1 : index
    %c0_40 = arith.constant 0 : index
    %35 = vector.load %arg2[%c0_37, %c0_38, %c1_39, %c0_40] : memref<1x10x10x128xbf16, #tpu.memory_space<vmem>>, vector<1x8x8x128xbf16>
    %36 = vector.shape_cast %35 : vector<1x8x8x128xbf16> to vector<8x8x128xbf16>
    %37 = vector.shape_cast %36 : vector<8x8x128xbf16> to vector<64x128xbf16>
    %c0_41 = arith.constant 0 : index
    %c0_42 = arith.constant 0 : index
    %38 = vector.load %arg7[%c0_41, %c0_42] : memref<64x512xbf16, #tpu.memory_space<vmem>>, vector<64x128xbf16>
    tpu.vector_store %arg7[%c0_41, %c0_42], %37 {strides = array<i32>} : memref<64x512xbf16, #tpu.memory_space<vmem>>, vector<64x128xbf16>,
    %c0_43 = arith.constant 0 : index
    %c0_44 = arith.constant 0 : index
    %c2 = arith.constant 2 : index
    %c0_45 = arith.constant 0 : index
    %39 = vector.load %arg2[%c0_43, %c0_44, %c2, %c0_45] : memref<1x10x10x128xbf16, #tpu.memory_space<vmem>>, vector<1x8x8x128xbf16>
    %40 = vector.shape_cast %39 : vector<1x8x8x128xbf16> to vector<8x8x128xbf16>
    %41 = vector.shape_cast %40 : vector<8x8x128xbf16> to vector<64x128xbf16>
    %c0_46 = arith.constant 0 : index
    %c128_47 = arith.constant 128 : index
    %42 = vector.load %arg7[%c0_46, %c128_47] : memref<64x512xbf16, #tpu.memory_space<vmem>>, vector<64x128xbf16>
    tpu.vector_store %arg7[%c0_46, %c128_47], %41 {strides = array<i32>} : memref<64x512xbf16, #tpu.memory_space<vmem>>, vector<64x128xbf16>,
    %c0_48 = arith.constant 0 : index
    %c1_49 = arith.constant 1 : index
    %c1_50 = arith.constant 1 : index
    %c0_51 = arith.constant 0 : index
    %43 = vector.load %arg2[%c0_48, %c1_49, %c1_50, %c0_51] : memref<1x10x10x128xbf16, #tpu.memory_space<vmem>>, vector<1x8x8x128xbf16>
    %44 = vector.shape_cast %43 : vector<1x8x8x128xbf16> to vector<8x8x128xbf16>
    %45 = vector.shape_cast %44 : vector<8x8x128xbf16> to vector<64x128xbf16>
    %c0_52 = arith.constant 0 : index
    %c256_53 = arith.constant 256 : index
    %46 = vector.load %arg7[%c0_52, %c256_53] : memref<64x512xbf16, #tpu.memory_space<vmem>>, vector<64x128xbf16>
    tpu.vector_store %arg7[%c0_52, %c256_53], %45 {strides = array<i32>} : memref<64x512xbf16, #tpu.memory_space<vmem>>, vector<64x128xbf16>,
    %c0_54 = arith.constant 0 : index
    %c1_55 = arith.constant 1 : index
    %c2_56 = arith.constant 2 : index
    %c0_57 = arith.constant 0 : index
    %47 = vector.load %arg2[%c0_54, %c1_55, %c2_56, %c0_57] : memref<1x10x10x128xbf16, #tpu.memory_space<vmem>>, vector<1x8x8x128xbf16>
    %48 = vector.shape_cast %47 : vector<1x8x8x128xbf16> to vector<8x8x128xbf16>
    %49 = vector.shape_cast %48 : vector<8x8x128xbf16> to vector<64x128xbf16>
    %c0_58 = arith.constant 0 : index
    %c384_59 = arith.constant 384 : index
    %50 = vector.load %arg7[%c0_58, %c384_59] : memref<64x512xbf16, #tpu.memory_space<vmem>>, vector<64x128xbf16>
    tpu.vector_store %arg7[%c0_58, %c384_59], %49 {strides = array<i32>} : memref<64x512xbf16, #tpu.memory_space<vmem>>, vector<64x128xbf16>,
    %c0_60 = arith.constant 0 : index
    %c0_61 = arith.constant 0 : index
    %51 = vector.load %arg7[%c0_60, %c0_61] : memref<64x512xbf16, #tpu.memory_space<vmem>>, vector<64x512xbf16>
    %c0_62 = arith.constant 0 : index
    %c1_63 = arith.constant 1 : index
    %c0_64 = arith.constant 0 : index
    %c0_65 = arith.constant 0 : index
    %52 = vector.load %arg3[%c0_62, %c1_63, %c0_64, %c0_65] : memref<2x2x512x64xbf16, #tpu.memory_space<vmem>>, vector<1x1x512x64xbf16>
    %53 = vector.shape_cast %52 : vector<1x1x512x64xbf16> to vector<512x64xbf16>
    %cst_66 = arith.constant dense<0.000000e+00> : vector<64x64xf32>
    %54 = tpu.matmul %51, %53, %cst_66 {dimension_numbers = #tpu.dot_dimension_numbers<[1], [0], [0], [1], [0, 0, 1, 1], [], []>} : vector<64x512xbf16>, vector<512x64xbf16>, vector<64x64xf32> -> vector<64x64xf32>
    %c0_67 = arith.constant 0 : index
    %c0_68 = arith.constant 0 : index
    %55 = vector.load %arg4[%c0_67, %c0_68] : memref<1x64xf32, #tpu.memory_space<vmem>>, vector<1x64xf32>
    %56 = vector.broadcast %55 : vector<1x64xf32> to vector<64x64xf32>
    %57 = arith.mulf %54, %56 : vector<64x64xf32>
    %c0_69 = arith.constant 0 : index
    %c0_70 = arith.constant 0 : index
    %58 = vector.load %arg5[%c0_69, %c0_70] : memref<1x64xf32, #tpu.memory_space<vmem>>, vector<1x64xf32>
    %59 = vector.broadcast %58 : vector<1x64xf32> to vector<64x64xf32>
    %60 = arith.addf %57, %59 : vector<64x64xf32>
    %cst_71 = arith.constant 0.000000e+00 : f32
    %61 = vector.broadcast %cst_71 : f32 to vector<64x64xf32>
    %62 = arith.cmpf ogt, %60, %61 : vector<64x64xf32>
    %cst_72 = arith.constant 0.00999999977 : f32
    %63 = vector.broadcast %cst_72 : f32 to vector<64x64xf32>
    %64 = arith.mulf %63, %60 : vector<64x64xf32>
    %65 = arith.select %62, %60, %64 : vector<64x64xi1>, vector<64x64xf32>
    %66 = vector.shape_cast %65 : vector<64x64xf32> to vector<8x8x64xf32>
    %c0_73 = arith.constant 0 : index
    %c0_74 = arith.constant 0 : index
    %c1_75 = arith.constant 1 : index
    %c0_76 = arith.constant 0 : index
    %c0_77 = arith.constant 0 : index
    %c0_78 = arith.constant 0 : index
    %67 = vector.load %arg6[%c0_73, %c0_74, %c1_75, %c0_76, %c0_77, %c0_78] : memref<1x2x2x8x8x64xf32, #tpu.memory_space<vmem>>, vector<1x1x1x8x8x64xf32>
    %68 = vector.shape_cast %67 : vector<1x1x1x8x8x64xf32> to vector<8x8x64xf32>
    %69 = vector.shape_cast %66 : vector<8x8x64xf32> to vector<1x1x1x8x8x64xf32>
    tpu.vector_store %arg6[%c0_73, %c0_74, %c1_75, %c0_76, %c0_77, %c0_78], %69 {strides = array<i32>} : memref<1x2x2x8x8x64xf32, #tpu.memory_space<vmem>>, vector<1x1x1x8x8x64xf32>,
    %c0_79 = arith.constant 0 : index
    %c1_80 = arith.constant 1 : index
    %c0_81 = arith.constant 0 : index
    %c0_82 = arith.constant 0 : index
    %70 = vector.load %arg2[%c0_79, %c1_80, %c0_81, %c0_82] : memref<1x10x10x128xbf16, #tpu.memory_space<vmem>>, vector<1x8x8x128xbf16>
    %71 = vector.shape_cast %70 : vector<1x8x8x128xbf16> to vector<8x8x128xbf16>
    %72 = vector.shape_cast %71 : vector<8x8x128xbf16> to vector<64x128xbf16>
    %c0_83 = arith.constant 0 : index
    %c0_84 = arith.constant 0 : index
    %73 = vector.load %arg7[%c0_83, %c0_84] : memref<64x512xbf16, #tpu.memory_space<vmem>>, vector<64x128xbf16>
    tpu.vector_store %arg7[%c0_83, %c0_84], %72 {strides = array<i32>} : memref<64x512xbf16, #tpu.memory_space<vmem>>, vector<64x128xbf16>,
    %c0_85 = arith.constant 0 : index
    %c1_86 = arith.constant 1 : index
    %c1_87 = arith.constant 1 : index
    %c0_88 = arith.constant 0 : index
    %74 = vector.load %arg2[%c0_85, %c1_86, %c1_87, %c0_88] : memref<1x10x10x128xbf16, #tpu.memory_space<vmem>>, vector<1x8x8x128xbf16>
    %75 = vector.shape_cast %74 : vector<1x8x8x128xbf16> to vector<8x8x128xbf16>
    %76 = vector.shape_cast %75 : vector<8x8x128xbf16> to vector<64x128xbf16>
    %c0_89 = arith.constant 0 : index
    %c128_90 = arith.constant 128 : index
    %77 = vector.load %arg7[%c0_89, %c128_90] : memref<64x512xbf16, #tpu.memory_space<vmem>>, vector<64x128xbf16>
    tpu.vector_store %arg7[%c0_89, %c128_90], %76 {strides = array<i32>} : memref<64x512xbf16, #tpu.memory_space<vmem>>, vector<64x128xbf16>,
    %c0_91 = arith.constant 0 : index
    %c2_92 = arith.constant 2 : index
    %c0_93 = arith.constant 0 : index
    %c0_94 = arith.constant 0 : index
    %78 = vector.load %arg2[%c0_91, %c2_92, %c0_93, %c0_94] : memref<1x10x10x128xbf16, #tpu.memory_space<vmem>>, vector<1x8x8x128xbf16>
    %79 = vector.shape_cast %78 : vector<1x8x8x128xbf16> to vector<8x8x128xbf16>
    %80 = vector.shape_cast %79 : vector<8x8x128xbf16> to vector<64x128xbf16>
    %c0_95 = arith.constant 0 : index
    %c256_96 = arith.constant 256 : index
    %81 = vector.load %arg7[%c0_95, %c256_96] : memref<64x512xbf16, #tpu.memory_space<vmem>>, vector<64x128xbf16>
    tpu.vector_store %arg7[%c0_95, %c256_96], %80 {strides = array<i32>} : memref<64x512xbf16, #tpu.memory_space<vmem>>, vector<64x128xbf16>,
    %c0_97 = arith.constant 0 : index
    %c2_98 = arith.constant 2 : index
    %c1_99 = arith.constant 1 : index
    %c0_100 = arith.constant 0 : index
    %82 = vector.load %arg2[%c0_97, %c2_98, %c1_99, %c0_100] : memref<1x10x10x128xbf16, #tpu.memory_space<vmem>>, vector<1x8x8x128xbf16>
    %83 = vector.shape_cast %82 : vector<1x8x8x128xbf16> to vector<8x8x128xbf16>
    %84 = vector.shape_cast %83 : vector<8x8x128xbf16> to vector<64x128xbf16>
    %c0_101 = arith.constant 0 : index
    %c384_102 = arith.constant 384 : index
    %85 = vector.load %arg7[%c0_101, %c384_102] : memref<64x512xbf16, #tpu.memory_space<vmem>>, vector<64x128xbf16>
    tpu.vector_store %arg7[%c0_101, %c384_102], %84 {strides = array<i32>} : memref<64x512xbf16, #tpu.memory_space<vmem>>, vector<64x128xbf16>,
    %c0_103 = arith.constant 0 : index
    %c0_104 = arith.constant 0 : index
    %86 = vector.load %arg7[%c0_103, %c0_104] : memref<64x512xbf16, #tpu.memory_space<vmem>>, vector<64x512xbf16>
    %c1_105 = arith.constant 1 : index
    %c0_106 = arith.constant 0 : index
    %c0_107 = arith.constant 0 : index
    %c0_108 = arith.constant 0 : index
    %87 = vector.load %arg3[%c1_105, %c0_106, %c0_107, %c0_108] : memref<2x2x512x64xbf16, #tpu.memory_space<vmem>>, vector<1x1x512x64xbf16>
    %88 = vector.shape_cast %87 : vector<1x1x512x64xbf16> to vector<512x64xbf16>
    %cst_109 = arith.constant dense<0.000000e+00> : vector<64x64xf32>
    %89 = tpu.matmul %86, %88, %cst_109 {dimension_numbers = #tpu.dot_dimension_numbers<[1], [0], [0], [1], [0, 0, 1, 1], [], []>} : vector<64x512xbf16>, vector<512x64xbf16>, vector<64x64xf32> -> vector<64x64xf32>
    %c0_110 = arith.constant 0 : index
    %c0_111 = arith.constant 0 : index
    %90 = vector.load %arg4[%c0_110, %c0_111] : memref<1x64xf32, #tpu.memory_space<vmem>>, vector<1x64xf32>
    %91 = vector.broadcast %90 : vector<1x64xf32> to vector<64x64xf32>
    %92 = arith.mulf %89, %91 : vector<64x64xf32>
    %c0_112 = arith.constant 0 : index
    %c0_113 = arith.constant 0 : index
    %93 = vector.load %arg5[%c0_112, %c0_113] : memref<1x64xf32, #tpu.memory_space<vmem>>, vector<1x64xf32>
    %94 = vector.broadcast %93 : vector<1x64xf32> to vector<64x64xf32>
    %95 = arith.addf %92, %94 : vector<64x64xf32>
    %cst_114 = arith.constant 0.000000e+00 : f32
    %96 = vector.broadcast %cst_114 : f32 to vector<64x64xf32>
    %97 = arith.cmpf ogt, %95, %96 : vector<64x64xf32>
    %cst_115 = arith.constant 0.00999999977 : f32
    %98 = vector.broadcast %cst_115 : f32 to vector<64x64xf32>
    %99 = arith.mulf %98, %95 : vector<64x64xf32>
    %100 = arith.select %97, %95, %99 : vector<64x64xi1>, vector<64x64xf32>
    %101 = vector.shape_cast %100 : vector<64x64xf32> to vector<8x8x64xf32>
    %c0_116 = arith.constant 0 : index
    %c1_117 = arith.constant 1 : index
    %c0_118 = arith.constant 0 : index
    %c0_119 = arith.constant 0 : index
    %c0_120 = arith.constant 0 : index
    %c0_121 = arith.constant 0 : index
    %102 = vector.load %arg6[%c0_116, %c1_117, %c0_118, %c0_119, %c0_120, %c0_121] : memref<1x2x2x8x8x64xf32, #tpu.memory_space<vmem>>, vector<1x1x1x8x8x64xf32>
    %103 = vector.shape_cast %102 : vector<1x1x1x8x8x64xf32> to vector<8x8x64xf32>
    %104 = vector.shape_cast %101 : vector<8x8x64xf32> to vector<1x1x1x8x8x64xf32>
    tpu.vector_store %arg6[%c0_116, %c1_117, %c0_118, %c0_119, %c0_120, %c0_121], %104 {strides = array<i32>} : memref<1x2x2x8x8x64xf32, #tpu.memory_space<vmem>>, vector<1x1x1x8x8x64xf32>,
    %c0_122 = arith.constant 0 : index
    %c1_123 = arith.constant 1 : index
    %c1_124 = arith.constant 1 : index
    %c0_125 = arith.constant 0 : index
    %105 = vector.load %arg2[%c0_122, %c1_123, %c1_124, %c0_125] : memref<1x10x10x128xbf16, #tpu.memory_space<vmem>>, vector<1x8x8x128xbf16>
    %106 = vector.shape_cast %105 : vector<1x8x8x128xbf16> to vector<8x8x128xbf16>
    %107 = vector.shape_cast %106 : vector<8x8x128xbf16> to vector<64x128xbf16>
    %c0_126 = arith.constant 0 : index
    %c0_127 = arith.constant 0 : index
    %108 = vector.load %arg7[%c0_126, %c0_127] : memref<64x512xbf16, #tpu.memory_space<vmem>>, vector<64x128xbf16>
    tpu.vector_store %arg7[%c0_126, %c0_127], %107 {strides = array<i32>} : memref<64x512xbf16, #tpu.memory_space<vmem>>, vector<64x128xbf16>,
    %c0_128 = arith.constant 0 : index
    %c1_129 = arith.constant 1 : index
    %c2_130 = arith.constant 2 : index
    %c0_131 = arith.constant 0 : index
    %109 = vector.load %arg2[%c0_128, %c1_129, %c2_130, %c0_131] : memref<1x10x10x128xbf16, #tpu.memory_space<vmem>>, vector<1x8x8x128xbf16>
    %110 = vector.shape_cast %109 : vector<1x8x8x128xbf16> to vector<8x8x128xbf16>
    %111 = vector.shape_cast %110 : vector<8x8x128xbf16> to vector<64x128xbf16>
    %c0_132 = arith.constant 0 : index
    %c128_133 = arith.constant 128 : index
    %112 = vector.load %arg7[%c0_132, %c128_133] : memref<64x512xbf16, #tpu.memory_space<vmem>>, vector<64x128xbf16>
    tpu.vector_store %arg7[%c0_132, %c128_133], %111 {strides = array<i32>} : memref<64x512xbf16, #tpu.memory_space<vmem>>, vector<64x128xbf16>,
    %c0_134 = arith.constant 0 : index
    %c2_135 = arith.constant 2 : index
    %c1_136 = arith.constant 1 : index
    %c0_137 = arith.constant 0 : index
    %113 = vector.load %arg2[%c0_134, %c2_135, %c1_136, %c0_137] : memref<1x10x10x128xbf16, #tpu.memory_space<vmem>>, vector<1x8x8x128xbf16>
    %114 = vector.shape_cast %113 : vector<1x8x8x128xbf16> to vector<8x8x128xbf16>
    %115 = vector.shape_cast %114 : vector<8x8x128xbf16> to vector<64x128xbf16>
    %c0_138 = arith.constant 0 : index
    %c256_139 = arith.constant 256 : index
    %116 = vector.load %arg7[%c0_138, %c256_139] : memref<64x512xbf16, #tpu.memory_space<vmem>>, vector<64x128xbf16>
    tpu.vector_store %arg7[%c0_138, %c256_139], %115 {strides = array<i32>} : memref<64x512xbf16, #tpu.memory_space<vmem>>, vector<64x128xbf16>,
    %c0_140 = arith.constant 0 : index
    %c2_141 = arith.constant 2 : index
    %c2_142 = arith.constant 2 : index
    %c0_143 = arith.constant 0 : index
    %117 = vector.load %arg2[%c0_140, %c2_141, %c2_142, %c0_143] : memref<1x10x10x128xbf16, #tpu.memory_space<vmem>>, vector<1x8x8x128xbf16>
    %118 = vector.shape_cast %117 : vector<1x8x8x128xbf16> to vector<8x8x128xbf16>
    %119 = vector.shape_cast %118 : vector<8x8x128xbf16> to vector<64x128xbf16>
    %c0_144 = arith.constant 0 : index
    %c384_145 = arith.constant 384 : index
    %120 = vector.load %arg7[%c0_144, %c384_145] : memref<64x512xbf16, #tpu.memory_space<vmem>>, vector<64x128xbf16>
    tpu.vector_store %arg7[%c0_144, %c384_145], %119 {strides = array<i32>} : memref<64x512xbf16, #tpu.memory_space<vmem>>, vector<64x128xbf16>,
    %c0_146 = arith.constant 0 : index
    %c0_147 = arith.constant 0 : index
    %121 = vector.load %arg7[%c0_146, %c0_147] : memref<64x512xbf16, #tpu.memory_space<vmem>>, vector<64x512xbf16>
    %c1_148 = arith.constant 1 : index
    %c1_149 = arith.constant 1 : index
    %c0_150 = arith.constant 0 : index
    %c0_151 = arith.constant 0 : index
    %122 = vector.load %arg3[%c1_148, %c1_149, %c0_150, %c0_151] : memref<2x2x512x64xbf16, #tpu.memory_space<vmem>>, vector<1x1x512x64xbf16>
    %123 = vector.shape_cast %122 : vector<1x1x512x64xbf16> to vector<512x64xbf16>
    %cst_152 = arith.constant dense<0.000000e+00> : vector<64x64xf32>
    %124 = tpu.matmul %121, %123, %cst_152 {dimension_numbers = #tpu.dot_dimension_numbers<[1], [0], [0], [1], [0, 0, 1, 1], [], []>} : vector<64x512xbf16>, vector<512x64xbf16>, vector<64x64xf32> -> vector<64x64xf32>
    %c0_153 = arith.constant 0 : index
    %c0_154 = arith.constant 0 : index
    %125 = vector.load %arg4[%c0_153, %c0_154] : memref<1x64xf32, #tpu.memory_space<vmem>>, vector<1x64xf32>
    %126 = vector.broadcast %125 : vector<1x64xf32> to vector<64x64xf32>
    %127 = arith.mulf %124, %126 : vector<64x64xf32>
    %c0_155 = arith.constant 0 : index
    %c0_156 = arith.constant 0 : index
    %128 = vector.load %arg5[%c0_155, %c0_156] : memref<1x64xf32, #tpu.memory_space<vmem>>, vector<1x64xf32>
    %129 = vector.broadcast %128 : vector<1x64xf32> to vector<64x64xf32>
    %130 = arith.addf %127, %129 : vector<64x64xf32>
    %cst_157 = arith.constant 0.000000e+00 : f32
    %131 = vector.broadcast %cst_157 : f32 to vector<64x64xf32>
    %132 = arith.cmpf ogt, %130, %131 : vector<64x64xf32>
    %cst_158 = arith.constant 0.00999999977 : f32
    %133 = vector.broadcast %cst_158 : f32 to vector<64x64xf32>
    %134 = arith.mulf %133, %130 : vector<64x64xf32>
    %135 = arith.select %132, %130, %134 : vector<64x64xi1>, vector<64x64xf32>
    %136 = vector.shape_cast %135 : vector<64x64xf32> to vector<8x8x64xf32>
    %c0_159 = arith.constant 0 : index
    %c1_160 = arith.constant 1 : index
    %c1_161 = arith.constant 1 : index
    %c0_162 = arith.constant 0 : index
    %c0_163 = arith.constant 0 : index
    %c0_164 = arith.constant 0 : index
    %137 = vector.load %arg6[%c0_159, %c1_160, %c1_161, %c0_162, %c0_163, %c0_164] : memref<1x2x2x8x8x64xf32, #tpu.memory_space<vmem>>, vector<1x1x1x8x8x64xf32>
    %138 = vector.shape_cast %137 : vector<1x1x1x8x8x64xf32> to vector<8x8x64xf32>
    %139 = vector.shape_cast %136 : vector<8x8x64xf32> to vector<1x1x1x8x8x64xf32>
    tpu.vector_store %arg6[%c0_159, %c1_160, %c1_161, %c0_162, %c0_163, %c0_164], %139 {strides = array<i32>} : memref<1x2x2x8x8x64xf32, #tpu.memory_space<vmem>>, vector<1x1x1x8x8x64xf32>,
    return
  }
  func.func @transform_0(%arg0: i32, %arg1: i32) -> (i32, i32, i32, i32) {
    %c0_i32 = arith.constant 0 : i32
    %c0_i32_0 = arith.constant 0 : i32
    %c0_i32_1 = arith.constant 0 : i32
    %c0_i32_2 = arith.constant 0 : i32
    return %arg0, %c0_i32, %c0_i32_0, %c0_i32_1 : i32, i32, i32, i32
  }
  func.func @transform_1(%arg0: i32, %arg1: i32) -> (i32, i32, i32, i32) {
    %c0_i32 = arith.constant 0 : i32
    %c0_i32_0 = arith.constant 0 : i32
    %c0_i32_1 = arith.constant 0 : i32
    %c0_i32_2 = arith.constant 0 : i32
    return %c0_i32, %c0_i32_0, %c0_i32_1, %arg1 : i32, i32, i32, i32
  }
  func.func @transform_2(%arg0: i32, %arg1: i32) -> (i32, i32) {
    %c0_i32 = arith.constant 0 : i32
    %c0_i32_0 = arith.constant 0 : i32
    return %c0_i32, %arg1 : i32, i32
  }
  func.func @transform_3(%arg0: i32, %arg1: i32) -> (i32, i32) {
    %c0_i32 = arith.constant 0 : i32
    %c0_i32_0 = arith.constant 0 : i32
    return %c0_i32, %arg1 : i32, i32
  }
  func.func @transform_4(%arg0: i32, %arg1: i32) -> (i32, i32, i32, i32, i32, i32) {
    %c0_i32 = arith.constant 0 : i32
    %c0_i32_0 = arith.constant 0 : i32
    %c0_i32_1 = arith.constant 0 : i32
    %c0_i32_2 = arith.constant 0 : i32
    %c0_i32_3 = arith.constant 0 : i32
    return %arg0, %c0_i32, %c0_i32_0, %c0_i32_1, %c0_i32_2, %arg1 : i32, i32, i32, i32, i32, i32
  }
}

</mosaic_0001>

<llo_original>
// kernel: up_conv_forward.1
$region0: #{up_conv_forward.1}
  #allocation0 [shape = 'u32[]', space=smem, size = 0x4, offset = 0x4, fixed_abs, tag = 'smem constant byte address 0x4 - core index']
  #allocation1 [shape = 'u32[72,128]{1,0:T(1,128)}', space=vmem, size = 0x9000, scoped, tag = 'internal scratch']
  #allocation2 [shape = 'bf16[64,512]{1,0:T(8,128)(2,1)}', space=vmem, size = 0x10000, scoped, tag = 'scratch operand']
  %s0 = inlined_call_operand.vmem [shape: bf16[2,10,10,128], index: 0, kind: input, shape index: {}]
  %s1 = inlined_call_operand.vmem [shape: bf16[2,2,512,64], index: 1, kind: input, shape index: {}]
  %s2 = inlined_call_operand.vmem [shape: f32[1,64], index: 2, kind: input, shape index: {}]
  %s3 = inlined_call_operand.vmem [shape: f32[1,64], index: 3, kind: input, shape index: {}]
  %s4 = inlined_call_operand.vmem [shape: f32[2,2,2,8,8,64], index: 4, kind: output, shape index: {}]
  %s5 = sld [smem:[#allocation0]]
  $region49: #{up_conv_forward.1} parent=0
    _
  %s7 = ssub.s32 1, %s5
  %s8 = scalar_select 0, %s7, %s5
  loop: start=0, step=1, limit=4
  $region2: #{up_conv_forward.1} parent=0 // loop_pre_header
    _
  $region3: #{up_conv_forward.1} parent=0 // loop_header
    %s10 = sphi 0, %s14
    %p11 = scmp.ge.s32.totalorder %s10, 4
    %s17 = sphi 0, %s29
    %s18 = sphi 0, %s25
    %s19 = sphi 0, %s17
    %s20 = sphi 0, %s18
    %s21 = sphi 0, %s19
    %s22 = sphi 0, %s20
    %s32 = sphi 0, %s34
    %s35 = sphi 0, %s32
    %s36 = sphi 0, %s35
    %s52 = sphi 0, %s36
    %s58 = sphi 0, %s60
    %s61 = sphi 0, %s58
    %s62 = sphi 0, %s61
    %s78 = sphi 0, %s62
    %s84 = sphi 0, %s86
    %s87 = sphi 0, %s84
    %s88 = sphi 0, %s87
    %s104 = sphi 0, %s88
    %s110 = sphi 0, %s112
    %s113 = sphi 0, %s110
    %s114 = sphi 0, %s113
    %s130 = sphi 0, %s114
    %s138 = sphi 0, %s140
    %s141 = sphi 0, %s138
    %s142 = sphi 0, %s141
    %s158 = sphi 0, %s142
  $region4: #{up_conv_forward.1} parent=0 // loop_header_branch
    %13 = sbr.rel (%p11) target = $region8
  $region5: #{up_conv_forward.1} parent=0 // loop_body
    %s15 = ssub.s32 %s10, 1
    %s16 = ssub.s32 %s10, 2
    %s23 = sadd.s32 1, %s18
    %p24 = scmp.ge.s32.totalorder %s23, 1
    %s25 = scalar_select %p24, 0, %s23
    %s26 = sadd.s32 1, %s17
    %s27 = scalar_select %p24, %s26, %s17
    %p28 = scmp.ge.s32.totalorder %s27, 2
    %s29 = scalar_select %p28, 0, %s27
    %s30 = ssub.s32 %s17, %s29
    %p31 = scmp.eq.s32.totalorder %s30, 0
    %s33 = sadd.s32 %s32, 1
    %s34 = scalar_select %p31, %s32, %s33
    %p37 = pneg %p31
    %p38 = scmp.eq.s32.totalorder %s10, 1
    %p39 = por %p37, %p38
    %p40 = scmp.ne.s32.totalorder %s32, %s35
    %p41 = scmp.eq.s32.totalorder %s10, 0
    %p42 = por %p40, %p41
    %p43 = scmp.ne.s32.totalorder %s32, %s35
    %p44 = scmp.eq.s32.totalorder %s15, 1
    %p45 = por %p43, %p44
    %p46 = scmp.ne.s32.totalorder %s35, %s36
    %p47 = scmp.eq.s32.totalorder %s15, 0
    %p48 = por %p46, %p47
    %p49 = scmp.ne.s32.totalorder %s35, %s36
    %p50 = scmp.eq.s32.totalorder %s16, 1
    %p51 = por %p49, %p50
    %p53 = scmp.ne.s32.totalorder %s36, %s52
    %p54 = scmp.eq.s32.totalorder %s16, 0
    %p55 = por %p53, %p54
    %s56 = ssub.s32 %s18, %s25
    %p57 = scmp.eq.s32.totalorder %s56, 0
    %s59 = sadd.s32 %s58, 1
    %s60 = scalar_select %p57, %s58, %s59
    %p63 = pneg %p57
    %p64 = scmp.eq.s32.totalorder %s10, 1
    %p65 = por %p63, %p64
    %p66 = scmp.ne.s32.totalorder %s58, %s61
    %p67 = scmp.eq.s32.totalorder %s10, 0
    %p68 = por %p66, %p67
    %p69 = scmp.ne.s32.totalorder %s58, %s61
    %p70 = scmp.eq.s32.totalorder %s15, 1
    %p71 = por %p69, %p70
    %p72 = scmp.ne.s32.totalorder %s61, %s62
    %p73 = scmp.eq.s32.totalorder %s15, 0
    %p74 = por %p72, %p73
    %p75 = scmp.ne.s32.totalorder %s61, %s62
    %p76 = scmp.eq.s32.totalorder %s16, 1
    %p77 = por %p75, %p76
    %p79 = scmp.ne.s32.totalorder %s62, %s78
    %p80 = scmp.eq.s32.totalorder %s16, 0
    %p81 = por %p79, %p80
    %s82 = ssub.s32 %s18, %s25
    %p83 = scmp.eq.s32.totalorder %s82, 0
    %s85 = sadd.s32 %s84, 1
    %s86 = scalar_select %p83, %s84, %s85
    %p89 = pneg %p83
    %p90 = scmp.eq.s32.totalorder %s10, 1
    %p91 = por %p89, %p90
    %p92 = scmp.ne.s32.totalorder %s84, %s87
    %p93 = scmp.eq.s32.totalorder %s10, 0
    %p94 = por %p92, %p93
    %p95 = scmp.ne.s32.totalorder %s84, %s87
    %p96 = scmp.eq.s32.totalorder %s15, 1
    %p97 = por %p95, %p96
    %p98 = scmp.ne.s32.totalorder %s87, %s88
    %p99 = scmp.eq.s32.totalorder %s15, 0
    %p100 = por %p98, %p99
    %p101 = scmp.ne.s32.totalorder %s87, %s88
    %p102 = scmp.eq.s32.totalorder %s16, 1
    %p103 = por %p101, %p102
    %p105 = scmp.ne.s32.totalorder %s88, %s104
    %p106 = scmp.eq.s32.totalorder %s16, 0
    %p107 = por %p105, %p106
    %s108 = ssub.s32 %s18, %s25
    %p109 = scmp.eq.s32.totalorder %s108, 0
    %s111 = sadd.s32 %s110, 1
    %s112 = scalar_select %p109, %s110, %s111
    %p115 = pneg %p109
    %p116 = scmp.eq.s32.totalorder %s10, 1
    %p117 = por %p115, %p116
    %p118 = scmp.ne.s32.totalorder %s110, %s113
    %p119 = scmp.eq.s32.totalorder %s10, 0
    %p120 = por %p118, %p119
    %p121 = scmp.ne.s32.totalorder %s110, %s113
    %p122 = scmp.eq.s32.totalorder %s15, 1
    %p123 = por %p121, %p122
    %p124 = scmp.ne.s32.totalorder %s113, %s114
    %p125 = scmp.eq.s32.totalorder %s15, 0
    %p126 = por %p124, %p125
    %p127 = scmp.ne.s32.totalorder %s113, %s114
    %p128 = scmp.eq.s32.totalorder %s16, 1
    %p129 = por %p127, %p128
    %p131 = scmp.ne.s32.totalorder %s114, %s130
    %p132 = scmp.eq.s32.totalorder %s16, 0
    %p133 = por %p131, %p132
    %s134 = ssub.s32 %s17, %s29
    %s135 = ssub.s32 %s18, %s25
    %s136 = sor.u32 %s134, %s135
    %p137 = scmp.eq.s32.totalorder %s136, 0
    %s139 = sadd.s32 %s138, 1
    %s140 = scalar_select %p137, %s138, %s139
    %p143 = pneg %p137
    %p144 = scmp.eq.s32.totalorder %s10, 1
    %p145 = por %p143, %p144
    %p146 = scmp.ne.s32.totalorder %s138, %s141
    %p147 = scmp.eq.s32.totalorder %s10, 0
    %p148 = por %p146, %p147
    %p149 = scmp.ne.s32.totalorder %s138, %s141
    %p150 = scmp.eq.s32.totalorder %s15, 1
    %p151 = por %p149, %p150
    %p152 = scmp.ne.s32.totalorder %s141, %s142
    %p153 = scmp.eq.s32.totalorder %s15, 0
    %p154 = por %p152, %p153
    %p155 = scmp.ne.s32.totalorder %s141, %s142
    %p156 = scmp.eq.s32.totalorder %s16, 1
    %p157 = por %p155, %p156
    %p159 = scmp.ne.s32.totalorder %s142, %s158
    %p160 = scmp.eq.s32.totalorder %s16, 0
    %p161 = por %p159, %p160
    %p162 = scmp.le.s32.totalorder 1, %s10
    %p163 = scmp.lt.s32.totalorder %s10, 3
    %p164 = pnand %p162, %p163
    %p165 = pneg %p164
    // Predicated region
    $region9: #{up_conv_forward.1} parent=5 // pred_check
      _
    $region10: #{up_conv_forward.1} parent=5 // pred_check_branch
      %167 = sbr.rel (%p164) target = $region12
    $region11: #{up_conv_forward.1} parent=5 // pred_region
      %s168 = ssub.s32 %s10, 1
      // Predicated region
      $region13: #{up_conv_forward.1} parent=11 // pred_check
        %p169 = pneg %p74
      $region14: #{up_conv_forward.1} parent=11 // pred_check_branch
        %171 = sbr.rel (%p169) target = $region16
      $region15: #{up_conv_forward.1} parent=11 // pred_region
        %p172 = scmp.lt.s32.totalorder %s20, 0
        %s173 = scalar_select %p172, %s20, 0
        %s174 = smul.addr %s173, 4
        %s175 = scalar_lea.vmem %s1, %s174
      $region16: #{up_conv_forward.1} parent=11 // pred_fallthru
        _
      // Predicated region
      $region17: #{up_conv_forward.1} parent=11 // pred_check
        %p176 = pneg %p100
      $region18: #{up_conv_forward.1} parent=11 // pred_check_branch
        %178 = sbr.rel (%p176) target = $region20
      $region19: #{up_conv_forward.1} parent=11 // pred_region
        %p179 = scmp.lt.s32.totalorder %s20, 0
        %s180 = scalar_select %p179, %s20, 0
        %s181 = scalar_lea.vmem %s2, %s180
      $region20: #{up_conv_forward.1} parent=11 // pred_fallthru
        _
      // Predicated region
      $region21: #{up_conv_forward.1} parent=11 // pred_check
        %p182 = pneg %p126
      $region22: #{up_conv_forward.1} parent=11 // pred_check_branch
        %184 = sbr.rel (%p182) target = $region24
      $region23: #{up_conv_forward.1} parent=11 // pred_region
        %p185 = scmp.lt.s32.totalorder %s20, 0
        %s186 = scalar_select %p185, %s20, 0
        %s187 = scalar_lea.vmem %s3, %s186
      $region24: #{up_conv_forward.1} parent=11 // pred_fallthru
        _
    $region12: #{up_conv_forward.1} parent=5 // pred_fallthru
      _
    %p188 = scmp.lt.s32.totalorder %s10, 2
    // Predicated region
    $region25: #{up_conv_forward.1} parent=5 // pred_check
      %p189 = pneg %p188
    $region26: #{up_conv_forward.1} parent=5 // pred_check_branch
      %191 = sbr.rel (%p189) target = $region28
    $region27: #{up_conv_forward.1} parent=5 // pred_region
      // Predicated region
      $region29: #{up_conv_forward.1} parent=27 // pred_check
        %p192 = pneg %p42
      $region30: #{up_conv_forward.1} parent=27 // pred_check_branch
        %194 = sbr.rel (%p192) target = $region32
      $region31: #{up_conv_forward.1} parent=27 // pred_region
        %p195 = scmp.lt.s32.totalorder %s17, 1
        %s196 = scalar_select %p195, %s17, 1
        %s197 = smul.addr %s196, 20
        %s198 = smul.addr %s197, 4
        %s199 = scalar_lea.vmem %s0, %s198
      $region32: #{up_conv_forward.1} parent=27 // pred_fallthru
        _
    $region28: #{up_conv_forward.1} parent=5 // pred_fallthru
      _
    %p200 = scmp.le.s32.totalorder 1, %s10
    %p201 = scmp.lt.s32.totalorder %s10, 3
    %p202 = pnand %p200, %p201
    %p203 = pneg %p202
    // Predicated region
    $region33: #{up_conv_forward.1} parent=5 // pred_check
      _
    $region34: #{up_conv_forward.1} parent=5 // pred_check_branch
      %205 = sbr.rel (%p202) target = $region36
    $region35: #{up_conv_forward.1} parent=5 // pred_region
      %s206 = ssub.s32 %s10, 1
      %p207 = scmp.lt.s32.totalorder %s19, 1
      %s208 = scalar_select %p207, %s19, 1
      %s209 = smul.addr %s208, 20
      %s210 = smul.addr %s209, 4
      %s211 = scalar_lea.vmem %s0, %s210
      %p212 = pneg %p48
      %p213 = pneg %p45
      %p214 = scmp.lt.s32.totalorder %s20, 0
      %s215 = scalar_select %p214, %s20, 0
      %s216 = smul.addr %s215, 4
      %s217 = scalar_lea.vmem %s1, %s216
      %p218 = pneg %p74
      %p219 = pneg %p71
      %p220 = scmp.lt.s32.totalorder %s20, 0
      %s221 = scalar_select %p220, %s20, 0
      %s222 = scalar_lea.vmem %s2, %s221
      %p223 = pneg %p100
      %p224 = pneg %p97
      %p225 = scmp.lt.s32.totalorder %s20, 0
      %s226 = scalar_select %p225, %s20, 0
      %s227 = scalar_lea.vmem %s3, %s226
      %p228 = pneg %p126
      %p229 = pneg %p123
      %p230 = pneg %p154
      %p231 = pneg %p151
      %p232 = scmp.lt.s32.totalorder %s19, 1
      %s233 = scalar_select %p232, %s19, 1
      %p234 = scmp.lt.s32.totalorder %s20, 0
      %s235 = scalar_select %p234, %s20, 0
      %s236 = smul.addr %s233, 32
      %s237 = sadd.s32 %s235, %s236
      %s238 = smul.addr %s237, 8
      %s239 = scalar_lea.vmem %s4, %s238
      %p240 = scmp.lt.s32.totalorder %s19, 1
      %s241 = scalar_select %p240, %s19, 1
      %s242 = smul.addr %s241, 20
      %s243 = smul.addr %s242, 4
      %s244 = scalar_lea.vmem %s0, %s243
      %p245 = scmp.lt.s32.totalorder %s20, 0
      %s246 = scalar_select %p245, %s20, 0
      %s247 = smul.addr %s246, 4
      %s248 = scalar_lea.vmem %s1, %s247
      %p249 = scmp.lt.s32.totalorder %s20, 0
      %s250 = scalar_select %p249, %s20, 0
      %s251 = scalar_lea.vmem %s2, %s250
      %p252 = scmp.lt.s32.totalorder %s20, 0
      %s253 = scalar_select %p252, %s20, 0
      %s254 = scalar_lea.vmem %s3, %s253
      %p255 = scmp.lt.s32.totalorder %s19, 1
      %s256 = scalar_select %p255, %s19, 1
      %p257 = scmp.lt.s32.totalorder %s20, 0
      %s258 = scalar_select %p257, %s20, 0
      %s259 = smul.addr %s256, 32
      %s260 = sadd.s32 %s258, %s259
      %s261 = smul.addr %s260, 8
      %s262 = scalar_lea.vmem %s4, %s261
      %v263 = vld [vmem:[%s244] sm:$0xf]
      %v264 = vld [vmem:[%s244 + $0x8] sm:$0xf]
      %v265 = vld [vmem:[%s244 + $0x10] sm:$0xf]
      %v266 = vld [vmem:[%s244 + $0x18] sm:$0xf]
      %v267 = vld [vmem:[%s244 + $0x20] sm:$0xf]
      %v268 = vld [vmem:[%s244 + $0x28] sm:$0xf]
      %v269 = vld [vmem:[%s244 + $0x30] sm:$0xf]
      %v270 = vld [vmem:[%s244 + $0x38] sm:$0xf]
      %271 = vst [vmem:[#allocation2] sm:$0xf] %v263
      %272 = vst [vmem:[#allocation2 + $0x10] sm:$0xf] %v264
      %273 = vst [vmem:[#allocation2 + $0x20] sm:$0xf] %v265
      %274 = vst [vmem:[#allocation2 + $0x30] sm:$0xf] %v266
      %275 = vst [vmem:[#allocation2 + $0x40] sm:$0xf] %v267
      %276 = vst [vmem:[#allocation2 + $0x50] sm:$0xf] %v268
      %277 = vst [vmem:[#allocation2 + $0x60] sm:$0xf] %v269
      %278 = vst [vmem:[#allocation2 + $0x70] sm:$0xf] %v270
      %v279 = vld [vmem:[%s244] sm:$0xf]
      %v280 = vld [vmem:[%s244 + $0x4] sm:$0x1]
      %v281 = vld [vmem:[%s244 + $0x8] sm:$0xf]
      %v282 = vld [vmem:[%s244 + $0xc] sm:$0x1]
      %v283 = vld [vmem:[%s244 + $0x10] sm:$0xf]
      %v284 = vld [vmem:[%s244 + $0x14] sm:$0x1]
      %v285 = vld [vmem:[%s244 + $0x18] sm:$0xf]
      %v286 = vld [vmem:[%s244 + $0x1c] sm:$0x1]
      %v287 = vld [vmem:[%s244 + $0x20] sm:$0xf]
      %v288 = vld [vmem:[%s244 + $0x24] sm:$0x1]
      %v289 = vld [vmem:[%s244 + $0x28] sm:$0xf]
      %v290 = vld [vmem:[%s244 + $0x2c] sm:$0x1]
      %v291 = vld [vmem:[%s244 + $0x30] sm:$0xf]
      %v292 = vld [vmem:[%s244 + $0x34] sm:$0x1]
      %v293 = vld [vmem:[%s244 + $0x38] sm:$0xf]
      %v294 = vld [vmem:[%s244 + $0x3c] sm:$0x1]
      %vm295 = vsmask.f32 3328
      %vm296 = vsmask.f32 7440
      %vm297 = vmor %vm295, %vm296
      %v299 = vshrl.u32 %v279, 16
      %v301 = vrot.slane %v299, 4
      %v302 = vshll.u32 %v279, 16
      %v304 = vrot.slane %v302, 5
      %v305 = vor.u32 %v301, %v304
      %v306 = vrot.slane %v305, 4
      %v308 = vshll.u32 %v280, 16
      %v310 = vrot.slane %v308, 5
      %v311 = vsel %vm297, %v306, %v310
      %v313 = vshrl.u32 %v281, 16
      %v315 = vrot.slane %v313, 4
      %v316 = vshll.u32 %v281, 16
      %v318 = vrot.slane %v316, 5
      %v319 = vor.u32 %v315, %v318
      %v320 = vrot.slane %v319, 4
      %v322 = vshll.u32 %v282, 16
      %v324 = vrot.slane %v322, 5
      %v325 = vsel %vm297, %v320, %v324
      %v327 = vshrl.u32 %v283, 16
      %v329 = vrot.slane %v327, 4
      %v330 = vshll.u32 %v283, 16
      %v332 = vrot.slane %v330, 5
      %v333 = vor.u32 %v329, %v332
      %v334 = vrot.slane %v333, 4
      %v336 = vshll.u32 %v284, 16
      %v338 = vrot.slane %v336, 5
      %v339 = vsel %vm297, %v334, %v338
      %v341 = vshrl.u32 %v285, 16
      %v343 = vrot.slane %v341, 4
      %v344 = vshll.u32 %v285, 16
      %v346 = vrot.slane %v344, 5
      %v347 = vor.u32 %v343, %v346
      %v348 = vrot.slane %v347, 4
      %v350 = vshll.u32 %v286, 16
      %v352 = vrot.slane %v350, 5
      %v353 = vsel %vm297, %v348, %v352
      %v355 = vshrl.u32 %v287, 16
      %v357 = vrot.slane %v355, 4
      %v358 = vshll.u32 %v287, 16
      %v360 = vrot.slane %v358, 5
      %v361 = vor.u32 %v357, %v360
      %v362 = vrot.slane %v361, 4
      %v364 = vshll.u32 %v288, 16
      %v366 = vrot.slane %v364, 5
      %v367 = vsel %vm297, %v362, %v366
      %v369 = vshrl.u32 %v289, 16
      %v371 = vrot.slane %v369, 4
      %v372 = vshll.u32 %v289, 16
      %v374 = vrot.slane %v372, 5
      %v375 = vor.u32 %v371, %v374
      %v376 = vrot.slane %v375, 4
      %v378 = vshll.u32 %v290, 16
      %v380 = vrot.slane %v378, 5
      %v381 = vsel %vm297, %v376, %v380
      %v383 = vshrl.u32 %v291, 16
      %v385 = vrot.slane %v383, 4
      %v386 = vshll.u32 %v291, 16
      %v388 = vrot.slane %v386, 5
      %v389 = vor.u32 %v385, %v388
      %v390 = vrot.slane %v389, 4
      %v392 = vshll.u32 %v292, 16
      %v394 = vrot.slane %v392, 5
      %v395 = vsel %vm297, %v390, %v394
      %v397 = vshrl.u32 %v293, 16
      %v399 = vrot.slane %v397, 4
      %v400 = vshll.u32 %v293, 16
      %v402 = vrot.slane %v400, 5
      %v403 = vor.u32 %v399, %v402
      %v404 = vrot.slane %v403, 4
      %v406 = vshll.u32 %v294, 16
      %v408 = vrot.slane %v406, 5
      %v409 = vsel %vm297, %v404, %v408
      %418 = vst [vmem:[#allocation2 + $0x4] sm:$0xf] %v311
      %419 = vst [vmem:[#allocation2 + $0x14] sm:$0xf] %v325
      %420 = vst [vmem:[#allocation2 + $0x24] sm:$0xf] %v339
      %421 = vst [vmem:[#allocation2 + $0x34] sm:$0xf] %v353
      %422 = vst [vmem:[#allocation2 + $0x44] sm:$0xf] %v367
      %423 = vst [vmem:[#allocation2 + $0x54] sm:$0xf] %v381
      %424 = vst [vmem:[#allocation2 + $0x64] sm:$0xf] %v395
      %425 = vst [vmem:[#allocation2 + $0x74] sm:$0xf] %v409
      %s426 = scalar_lea.vmem %s244, 8
      %v427 = vld [vmem:[%s426] sm:$0xf]
      %v428 = vld [vmem:[%s426 + $0x8] sm:$0xf]
      %v429 = vld [vmem:[%s426 + $0x10] sm:$0xf]
      %v430 = vld [vmem:[%s426 + $0x18] sm:$0xf]
      %v431 = vld [vmem:[%s426 + $0x20] sm:$0xf]
      %v432 = vld [vmem:[%s426 + $0x28] sm:$0xf]
      %v433 = vld [vmem:[%s426 + $0x30] sm:$0xf]
      %v434 = vld [vmem:[%s426 + $0x38] sm:$0xf]
      %435 = vst [vmem:[#allocation2 + $0x8] sm:$0xf] %v427
      %436 = vst [vmem:[#allocation2 + $0x18] sm:$0xf] %v428
      %437 = vst [vmem:[#allocation2 + $0x28] sm:$0xf] %v429
      %438 = vst [vmem:[#allocation2 + $0x38] sm:$0xf] %v430
      %439 = vst [vmem:[#allocation2 + $0x48] sm:$0xf] %v431
      %440 = vst [vmem:[#allocation2 + $0x58] sm:$0xf] %v432
      %441 = vst [vmem:[#allocation2 + $0x68] sm:$0xf] %v433
      %442 = vst [vmem:[#allocation2 + $0x78] sm:$0xf] %v434
      %v443 = vld [vmem:[%s426] sm:$0xf]
      %v444 = vld [vmem:[%s426 + $0x4] sm:$0x1]
      %v445 = vld [vmem:[%s426 + $0x8] sm:$0xf]
      %v446 = vld [vmem:[%s426 + $0xc] sm:$0x1]
      %v447 = vld [vmem:[%s426 + $0x10] sm:$0xf]
      %v448 = vld [vmem:[%s426 + $0x14] sm:$0x1]
      %v449 = vld [vmem:[%s426 + $0x18] sm:$0xf]
      %v450 = vld [vmem:[%s426 + $0x1c] sm:$0x1]
      %v451 = vld [vmem:[%s426 + $0x20] sm:$0xf]
      %v452 = vld [vmem:[%s426 + $0x24] sm:$0x1]
      %v453 = vld [vmem:[%s426 + $0x28] sm:$0xf]
      %v454 = vld [vmem:[%s426 + $0x2c] sm:$0x1]
      %v455 = vld [vmem:[%s426 + $0x30] sm:$0xf]
      %v456 = vld [vmem:[%s426 + $0x34] sm:$0x1]
      %v457 = vld [vmem:[%s426 + $0x38] sm:$0xf]
      %v458 = vld [vmem:[%s426 + $0x3c] sm:$0x1]
      %v460 = vshrl.u32 %v443, 16
      %v462 = vrot.slane %v460, 4
      %v463 = vshll.u32 %v443, 16
      %v465 = vrot.slane %v463, 5
      %v466 = vor.u32 %v462, %v465
      %v467 = vrot.slane %v466, 4
      %v469 = vshll.u32 %v444, 16
      %v471 = vrot.slane %v469, 5
      %v472 = vsel %vm297, %v467, %v471
      %v474 = vshrl.u32 %v445, 16
      %v476 = vrot.slane %v474, 4
      %v477 = vshll.u32 %v445, 16
      %v479 = vrot.slane %v477, 5
      %v480 = vor.u32 %v476, %v479
      %v481 = vrot.slane %v480, 4
      %v483 = vshll.u32 %v446, 16
      %v485 = vrot.slane %v483, 5
      %v486 = vsel %vm297, %v481, %v485
      %v488 = vshrl.u32 %v447, 16
      %v490 = vrot.slane %v488, 4
      %v491 = vshll.u32 %v447, 16
      %v493 = vrot.slane %v491, 5
      %v494 = vor.u32 %v490, %v493
      %v495 = vrot.slane %v494, 4
      %v497 = vshll.u32 %v448, 16
      %v499 = vrot.slane %v497, 5
      %v500 = vsel %vm297, %v495, %v499
      %v502 = vshrl.u32 %v449, 16
      %v504 = vrot.slane %v502, 4
      %v505 = vshll.u32 %v449, 16
      %v507 = vrot.slane %v505, 5
      %v508 = vor.u32 %v504, %v507
      %v509 = vrot.slane %v508, 4
      %v511 = vshll.u32 %v450, 16
      %v513 = vrot.slane %v511, 5
      %v514 = vsel %vm297, %v509, %v513
      %v516 = vshrl.u32 %v451, 16
      %v518 = vrot.slane %v516, 4
      %v519 = vshll.u32 %v451, 16
      %v521 = vrot.slane %v519, 5
      %v522 = vor.u32 %v518, %v521
      %v523 = vrot.slane %v522, 4
      %v525 = vshll.u32 %v452, 16
      %v527 = vrot.slane %v525, 5
      %v528 = vsel %vm297, %v523, %v527
      %v530 = vshrl.u32 %v453, 16
      %v532 = vrot.slane %v530, 4
      %v533 = vshll.u32 %v453, 16
      %v535 = vrot.slane %v533, 5
      %v536 = vor.u32 %v532, %v535
      %v537 = vrot.slane %v536, 4
      %v539 = vshll.u32 %v454, 16
      %v541 = vrot.slane %v539, 5
      %v542 = vsel %vm297, %v537, %v541
      %v544 = vshrl.u32 %v455, 16
      %v546 = vrot.slane %v544, 4
      %v547 = vshll.u32 %v455, 16
      %v549 = vrot.slane %v547, 5
      %v550 = vor.u32 %v546, %v549
      %v551 = vrot.slane %v550, 4
      %v553 = vshll.u32 %v456, 16
      %v555 = vrot.slane %v553, 5
      %v556 = vsel %vm297, %v551, %v555
      %v558 = vshrl.u32 %v457, 16
      %v560 = vrot.slane %v558, 4
      %v561 = vshll.u32 %v457, 16
      %v563 = vrot.slane %v561, 5
      %v564 = vor.u32 %v560, %v563
      %v565 = vrot.slane %v564, 4
      %v567 = vshll.u32 %v458, 16
      %v569 = vrot.slane %v567, 5
      %v570 = vsel %vm297, %v565, %v569
      %579 = vst [vmem:[#allocation2 + $0xc] sm:$0xf] %v472
      %580 = vst [vmem:[#allocation2 + $0x1c] sm:$0xf] %v486
      %581 = vst [vmem:[#allocation2 + $0x2c] sm:$0xf] %v500
      %582 = vst [vmem:[#allocation2 + $0x3c] sm:$0xf] %v514
      %583 = vst [vmem:[#allocation2 + $0x4c] sm:$0xf] %v528
      %584 = vst [vmem:[#allocation2 + $0x5c] sm:$0xf] %v542
      %585 = vst [vmem:[#allocation2 + $0x6c] sm:$0xf] %v556
      %586 = vst [vmem:[#allocation2 + $0x7c] sm:$0xf] %v570
      %v587 = vld [vmem:[#allocation2] sm:$0xff]
      %v588 = vld [vmem:[#allocation2 + $0x8] sm:$0xff]
      %v589 = vld [vmem:[#allocation2 + $0x10] sm:$0xff]
      %v590 = vld [vmem:[#allocation2 + $0x18] sm:$0xff]
      %v591 = vld [vmem:[#allocation2 + $0x20] sm:$0xff]
      %v592 = vld [vmem:[#allocation2 + $0x28] sm:$0xff]
      %v593 = vld [vmem:[#allocation2 + $0x30] sm:$0xff]
      %v594 = vld [vmem:[#allocation2 + $0x38] sm:$0xff]
      %v595 = vld [vmem:[#allocation2 + $0x40] sm:$0xff]
      %v596 = vld [vmem:[#allocation2 + $0x48] sm:$0xff]
      %v597 = vld [vmem:[#allocation2 + $0x50] sm:$0xff]
      %v598 = vld [vmem:[#allocation2 + $0x58] sm:$0xff]
      %v599 = vld [vmem:[#allocation2 + $0x60] sm:$0xff]
      %v600 = vld [vmem:[#allocation2 + $0x68] sm:$0xff]
      %v601 = vld [vmem:[#allocation2 + $0x70] sm:$0xff]
      %v602 = vld [vmem:[#allocation2 + $0x78] sm:$0xff]
      %v603 = vld [vmem:[%s248] sm:$0xf]
      %v604 = vld [vmem:[%s248 + $0x4] sm:$0xf]
      %v605 = vld [vmem:[%s248 + $0x8] sm:$0xf]
      %v606 = vld [vmem:[%s248 + $0xc] sm:$0xf]
      %v607 = vld [vmem:[%s248 + $0x10] sm:$0xf]
      %v608 = vld [vmem:[%s248 + $0x14] sm:$0xf]
      %v609 = vld [vmem:[%s248 + $0x18] sm:$0xf]
      %v610 = vld [vmem:[%s248 + $0x1c] sm:$0xf]
      %v611 = vld [vmem:[%s248 + $0x20] sm:$0xf]
      %v612 = vld [vmem:[%s248 + $0x24] sm:$0xf]
      %v613 = vld [vmem:[%s248 + $0x28] sm:$0xf]
      %v614 = vld [vmem:[%s248 + $0x2c] sm:$0xf]
      %v615 = vld [vmem:[%s248 + $0x30] sm:$0xf]
      %v616 = vld [vmem:[%s248 + $0x34] sm:$0xf]
      %v617 = vld [vmem:[%s248 + $0x38] sm:$0xf]
      %v618 = vld [vmem:[%s248 + $0x3c] sm:$0xf]
      %v619 = vld [vmem:[%s248 + $0x40] sm:$0xf]
      %v620 = vld [vmem:[%s248 + $0x44] sm:$0xf]
      %v621 = vld [vmem:[%s248 + $0x48] sm:$0xf]
      %v622 = vld [vmem:[%s248 + $0x4c] sm:$0xf]
      %v623 = vld [vmem:[%s248 + $0x50] sm:$0xf]
      %v624 = vld [vmem:[%s248 + $0x54] sm:$0xf]
      %v625 = vld [vmem:[%s248 + $0x58] sm:$0xf]
      %v626 = vld [vmem:[%s248 + $0x5c] sm:$0xf]
      %v627 = vld [vmem:[%s248 + $0x60] sm:$0xf]
      %v628 = vld [vmem:[%s248 + $0x64] sm:$0xf]
      %v629 = vld [vmem:[%s248 + $0x68] sm:$0xf]
      %v630 = vld [vmem:[%s248 + $0x6c] sm:$0xf]
      %v631 = vld [vmem:[%s248 + $0x70] sm:$0xf]
      %v632 = vld [vmem:[%s248 + $0x74] sm:$0xf]
      %v633 = vld [vmem:[%s248 + $0x78] sm:$0xf]
      %v634 = vld [vmem:[%s248 + $0x7c] sm:$0xf]
      %v635 = vld [vmem:[%s248 + $0x80] sm:$0xf]
      %v636 = vld [vmem:[%s248 + $0x84] sm:$0xf]
      %v637 = vld [vmem:[%s248 + $0x88] sm:$0xf]
      %v638 = vld [vmem:[%s248 + $0x8c] sm:$0xf]
      %v639 = vld [vmem:[%s248 + $0x90] sm:$0xf]
      %v640 = vld [vmem:[%s248 + $0x94] sm:$0xf]
      %v641 = vld [vmem:[%s248 + $0x98] sm:$0xf]
      %v642 = vld [vmem:[%s248 + $0x9c] sm:$0xf]
      %v643 = vld [vmem:[%s248 + $0xa0] sm:$0xf]
      %v644 = vld [vmem:[%s248 + $0xa4] sm:$0xf]
      %v645 = vld [vmem:[%s248 + $0xa8] sm:$0xf]
      %v646 = vld [vmem:[%s248 + $0xac] sm:$0xf]
      %v647 = vld [vmem:[%s248 + $0xb0] sm:$0xf]
      %v648 = vld [vmem:[%s248 + $0xb4] sm:$0xf]
      %v649 = vld [vmem:[%s248 + $0xb8] sm:$0xf]
      %v650 = vld [vmem:[%s248 + $0xbc] sm:$0xf]
      %v651 = vld [vmem:[%s248 + $0xc0] sm:$0xf]
      %v652 = vld [vmem:[%s248 + $0xc4] sm:$0xf]
      %v653 = vld [vmem:[%s248 + $0xc8] sm:$0xf]
      %v654 = vld [vmem:[%s248 + $0xcc] sm:$0xf]
      %v655 = vld [vmem:[%s248 + $0xd0] sm:$0xf]
      %v656 = vld [vmem:[%s248 + $0xd4] sm:$0xf]
      %v657 = vld [vmem:[%s248 + $0xd8] sm:$0xf]
      %v658 = vld [vmem:[%s248 + $0xdc] sm:$0xf]
      %v659 = vld [vmem:[%s248 + $0xe0] sm:$0xf]
      %v660 = vld [vmem:[%s248 + $0xe4] sm:$0xf]
      %v661 = vld [vmem:[%s248 + $0xe8] sm:$0xf]
      %v662 = vld [vmem:[%s248 + $0xec] sm:$0xf]
      %v663 = vld [vmem:[%s248 + $0xf0] sm:$0xf]
      %v664 = vld [vmem:[%s248 + $0xf4] sm:$0xf]
      %v665 = vld [vmem:[%s248 + $0xf8] sm:$0xf]
      %v666 = vld [vmem:[%s248 + $0xfc] sm:$0xf]
      %v683 = vunpack.c.l.b16 %v587
      %v684 = vunpack.c.h.b16 %v587
      %v685 = vunpack.c.l.b16 %v588
      %v686 = vunpack.c.h.b16 %v588
      %v687 = vunpack.c.l.b16 %v589
      %v688 = vunpack.c.h.b16 %v589
      %v689 = vunpack.c.l.b16 %v590
      %v690 = vunpack.c.h.b16 %v590
      %v691 = vunpack.c.l.b16 %v591
      %v692 = vunpack.c.h.b16 %v591
      %v693 = vunpack.c.l.b16 %v592
      %v694 = vunpack.c.h.b16 %v592
      %v695 = vunpack.c.l.b16 %v593
      %v696 = vunpack.c.h.b16 %v593
      %v697 = vunpack.c.l.b16 %v594
      %v698 = vunpack.c.h.b16 %v594
      %v699 = vunpack.c.l.b16 %v595
      %v700 = vunpack.c.h.b16 %v595
      %v701 = vunpack.c.l.b16 %v596
      %v702 = vunpack.c.h.b16 %v596
      %v703 = vunpack.c.l.b16 %v597
      %v704 = vunpack.c.h.b16 %v597
      %v705 = vunpack.c.l.b16 %v598
      %v706 = vunpack.c.h.b16 %v598
      %v707 = vunpack.c.l.b16 %v599
      %v708 = vunpack.c.h.b16 %v599
      %v709 = vunpack.c.l.b16 %v600
      %v710 = vunpack.c.h.b16 %v600
      %v711 = vunpack.c.l.b16 %v601
      %v712 = vunpack.c.h.b16 %v601
      %v713 = vunpack.c.l.b16 %v602
      %v714 = vunpack.c.h.b16 %v602
      %v715 = vpack.c.b16 %v687, %v683
      %v716 = vpack.c.b16 %v688, %v684
      %v717 = vpack.c.b16 %v689, %v685
      %v718 = vpack.c.b16 %v690, %v686
      %v719 = vpack.c.b16 %v695, %v691
      %v720 = vpack.c.b16 %v696, %v692
      %v721 = vpack.c.b16 %v697, %v693
      %v722 = vpack.c.b16 %v698, %v694
      %v723 = vpack.c.b16 %v703, %v699
      %v724 = vpack.c.b16 %v704, %v700
      %v725 = vpack.c.b16 %v705, %v701
      %v726 = vpack.c.b16 %v706, %v702
      %v727 = vpack.c.b16 %v711, %v707
      %v728 = vpack.c.b16 %v712, %v708
      %v729 = vpack.c.b16 %v713, %v709
      %v730 = vpack.c.b16 %v714, %v710
      %v811 = vunpack.c.l.b16 %v603
      %v812 = vunpack.c.l.b16 %v604
      %v813 = vunpack.c.l.b16 %v605
      %v814 = vunpack.c.l.b16 %v606
      %v815 = vunpack.c.l.b16 %v607
      %v816 = vunpack.c.l.b16 %v608
      %v817 = vunpack.c.l.b16 %v609
      %v818 = vunpack.c.l.b16 %v610
      %v819 = vunpack.c.l.b16 %v611
      %v820 = vunpack.c.l.b16 %v612
      %v821 = vunpack.c.l.b16 %v613
      %v822 = vunpack.c.l.b16 %v614
      %v823 = vunpack.c.l.b16 %v615
      %v824 = vunpack.c.l.b16 %v616
      %v825 = vunpack.c.l.b16 %v617
      %v826 = vunpack.c.l.b16 %v618
      %v827 = vunpack.c.l.b16 %v619
      %v828 = vunpack.c.l.b16 %v620
      %v829 = vunpack.c.l.b16 %v621
      %v830 = vunpack.c.l.b16 %v622
      %v831 = vunpack.c.l.b16 %v623
      %v832 = vunpack.c.l.b16 %v624
      %v833 = vunpack.c.l.b16 %v625
      %v834 = vunpack.c.l.b16 %v626
      %v835 = vunpack.c.l.b16 %v627
      %v836 = vunpack.c.l.b16 %v628
      %v837 = vunpack.c.l.b16 %v629
      %v838 = vunpack.c.l.b16 %v630
      %v839 = vunpack.c.l.b16 %v631
      %v840 = vunpack.c.l.b16 %v632
      %v841 = vunpack.c.l.b16 %v633
      %v842 = vunpack.c.l.b16 %v634
      %v843 = vunpack.c.l.b16 %v635
      %v844 = vunpack.c.l.b16 %v636
      %v845 = vunpack.c.l.b16 %v637
      %v846 = vunpack.c.l.b16 %v638
      %v847 = vunpack.c.l.b16 %v639
      %v848 = vunpack.c.l.b16 %v640
      %v849 = vunpack.c.l.b16 %v641
      %v850 = vunpack.c.l.b16 %v642
      %v851 = vunpack.c.l.b16 %v643
      %v852 = vunpack.c.l.b16 %v644
      %v853 = vunpack.c.l.b16 %v645
      %v854 = vunpack.c.l.b16 %v646
      %v855 = vunpack.c.l.b16 %v647
      %v856 = vunpack.c.l.b16 %v648
      %v857 = vunpack.c.l.b16 %v649
      %v858 = vunpack.c.l.b16 %v650
      %v859 = vunpack.c.l.b16 %v651
      %v860 = vunpack.c.l.b16 %v652
      %v861 = vunpack.c.l.b16 %v653
      %v862 = vunpack.c.l.b16 %v654
      %v863 = vunpack.c.l.b16 %v655
      %v864 = vunpack.c.l.b16 %v656
      %v865 = vunpack.c.l.b16 %v657
      %v866 = vunpack.c.l.b16 %v658
      %v867 = vunpack.c.l.b16 %v659
      %v868 = vunpack.c.l.b16 %v660
      %v869 = vunpack.c.l.b16 %v661
      %v870 = vunpack.c.l.b16 %v662
      %v871 = vunpack.c.l.b16 %v663
      %v872 = vunpack.c.l.b16 %v664
      %v873 = vunpack.c.l.b16 %v665
      %v874 = vunpack.c.l.b16 %v666
      %v875 = vpack.c.b16 %v812, %v811
      %v876 = vpack.c.b16 %v814, %v813
      %v877 = vpack.c.b16 %v816, %v815
      %v878 = vpack.c.b16 %v818, %v817
      %v879 = vpack.c.b16 %v820, %v819
      %v880 = vpack.c.b16 %v822, %v821
      %v881 = vpack.c.b16 %v824, %v823
      %v882 = vpack.c.b16 %v826, %v825
      %v883 = vpack.c.b16 %v828, %v827
      %v884 = vpack.c.b16 %v830, %v829
      %v885 = vpack.c.b16 %v832, %v831
      %v886 = vpack.c.b16 %v834, %v833
      %v887 = vpack.c.b16 %v836, %v835
      %v888 = vpack.c.b16 %v838, %v837
      %v889 = vpack.c.b16 %v840, %v839
      %v890 = vpack.c.b16 %v842, %v841
      %v891 = vpack.c.b16 %v844, %v843
      %v892 = vpack.c.b16 %v846, %v845
      %v893 = vpack.c.b16 %v848, %v847
      %v894 = vpack.c.b16 %v850, %v849
      %v895 = vpack.c.b16 %v852, %v851
      %v896 = vpack.c.b16 %v854, %v853
      %v897 = vpack.c.b16 %v856, %v855
      %v898 = vpack.c.b16 %v858, %v857
      %v899 = vpack.c.b16 %v860, %v859
      %v900 = vpack.c.b16 %v862, %v861
      %v901 = vpack.c.b16 %v864, %v863
      %v902 = vpack.c.b16 %v866, %v865
      %v903 = vpack.c.b16 %v868, %v867
      %v904 = vpack.c.b16 %v870, %v869
      %v905 = vpack.c.b16 %v872, %v871
      %v906 = vpack.c.b16 %v874, %v873
      %939 = vmatpush.bf16.msra.mxu0 %v882
      %940 = vmatpush.bf16.msra.mxu0 %v881
      %941 = vmatpush.bf16.msra.mxu0 %v880
      %942 = vmatpush.bf16.msra.mxu0 %v879
      %943 = vmatpush.bf16.msra.mxu0 %v878
      %944 = vmatpush.bf16.msra.mxu0 %v877
      %945 = vmatpush.bf16.msra.mxu0 %v876
      %946 = vmatpush.bf16.msra.mxu0 %v875
      %947 = vmatmul.bf16.gmra.mxu0 %v715
      %v948 = vpop.f32.mrf.mxu0
      %v949 = vadd.f32 0.0, %v948
      %v950 = vpop.f32.mrf.mxu0
      %v951 = vadd.f32 0.0, %v950
      %952 = vmatmul.bf16.gmra.mxu0 %v719
      %v953 = vpop.f32.mrf.mxu0
      %v954 = vadd.f32 0.0, %v953
      %v955 = vpop.f32.mrf.mxu0
      %v956 = vadd.f32 0.0, %v955
      %957 = vmatmul.bf16.gmra.mxu0 %v723
      %v958 = vpop.f32.mrf.mxu0
      %v959 = vadd.f32 0.0, %v958
      %v960 = vpop.f32.mrf.mxu0
      %v961 = vadd.f32 0.0, %v960
      %962 = vmatmul.bf16.gmra.mxu0 %v727
      %v963 = vpop.f32.mrf.mxu0
      %v964 = vadd.f32 0.0, %v963
      %v965 = vpop.f32.mrf.mxu0
      %v966 = vadd.f32 0.0, %v965
      %967 = vdwg.mxu0
      %968 = vmatpush.bf16.msra.mxu0 %v890
      %969 = vmatpush.bf16.msra.mxu0 %v889
      %970 = vmatpush.bf16.msra.mxu0 %v888
      %971 = vmatpush.bf16.msra.mxu0 %v887
      %972 = vmatpush.bf16.msra.mxu0 %v886
      %973 = vmatpush.bf16.msra.mxu0 %v885
      %974 = vmatpush.bf16.msra.mxu0 %v884
      %975 = vmatpush.bf16.msra.mxu0 %v883
      %976 = vmatmul.bf16.gmra.mxu0 %v716
      %v977 = vpop.f32.mrf.mxu0
      %v978 = vadd.f32 %v949, %v977
      %v979 = vpop.f32.mrf.mxu0
      %v980 = vadd.f32 %v951, %v979
      %981 = vmatmul.bf16.gmra.mxu0 %v720
      %v982 = vpop.f32.mrf.mxu0
      %v983 = vadd.f32 %v954, %v982
      %v984 = vpop.f32.mrf.mxu0
      %v985 = vadd.f32 %v956, %v984
      %986 = vmatmul.bf16.gmra.mxu0 %v724
      %v987 = vpop.f32.mrf.mxu0
      %v988 = vadd.f32 %v959, %v987
      %v989 = vpop.f32.mrf.mxu0
      %v990 = vadd.f32 %v961, %v989
      %991 = vmatmul.bf16.gmra.mxu0 %v728
      %v992 = vpop.f32.mrf.mxu0
      %v993 = vadd.f32 %v964, %v992
      %v994 = vpop.f32.mrf.mxu0
      %v995 = vadd.f32 %v966, %v994
      %996 = vdwg.mxu0
      %997 = vmatpush.bf16.msra.mxu0 %v898
      %998 = vmatpush.bf16.msra.mxu0 %v897
      %999 = vmatpush.bf16.msra.mxu0 %v896
      %1000 = vmatpush.bf16.msra.mxu0 %v895
      %1001 = vmatpush.bf16.msra.mxu0 %v894
      %1002 = vmatpush.bf16.msra.mxu0 %v893
      %1003 = vmatpush.bf16.msra.mxu0 %v892
      %1004 = vmatpush.bf16.msra.mxu0 %v891
      %1005 = vmatmul.bf16.gmra.mxu0 %v717
      %v1006 = vpop.f32.mrf.mxu0
      %v1007 = vadd.f32 %v978, %v1006
      %v1008 = vpop.f32.mrf.mxu0
      %v1009 = vadd.f32 %v980, %v1008
      %1010 = vmatmul.bf16.gmra.mxu0 %v721
      %v1011 = vpop.f32.mrf.mxu0
      %v1012 = vadd.f32 %v983, %v1011
      %v1013 = vpop.f32.mrf.mxu0
      %v1014 = vadd.f32 %v985, %v1013
      %1015 = vmatmul.bf16.gmra.mxu0 %v725
      %v1016 = vpop.f32.mrf.mxu0
      %v1017 = vadd.f32 %v988, %v1016
      %v1018 = vpop.f32.mrf.mxu0
      %v1019 = vadd.f32 %v990, %v1018
      %1020 = vmatmul.bf16.gmra.mxu0 %v729
      %v1021 = vpop.f32.mrf.mxu0
      %v1022 = vadd.f32 %v993, %v1021
      %v1023 = vpop.f32.mrf.mxu0
      %v1024 = vadd.f32 %v995, %v1023
      %1025 = vdwg.mxu0
      %1026 = vmatpush.bf16.msra.mxu0 %v906
      %1027 = vmatpush.bf16.msra.mxu0 %v905
      %1028 = vmatpush.bf16.msra.mxu0 %v904
      %1029 = vmatpush.bf16.msra.mxu0 %v903
      %1030 = vmatpush.bf16.msra.mxu0 %v902
      %1031 = vmatpush.bf16.msra.mxu0 %v901
      %1032 = vmatpush.bf16.msra.mxu0 %v900
      %1033 = vmatpush.bf16.msra.mxu0 %v899
      %1034 = vmatmul.bf16.gmra.mxu0 %v718
      %v1035 = vpop.f32.mrf.mxu0
      %v1036 = vadd.f32 %v1007, %v1035
      %v1037 = vpop.f32.mrf.mxu0
      %v1038 = vadd.f32 %v1009, %v1037
      %1039 = vmatmul.bf16.gmra.mxu0 %v722
      %v1040 = vpop.f32.mrf.mxu0
      %v1041 = vadd.f32 %v1012, %v1040
      %v1042 = vpop.f32.mrf.mxu0
      %v1043 = vadd.f32 %v1014, %v1042
      %1044 = vmatmul.bf16.gmra.mxu0 %v726
      %v1045 = vpop.f32.mrf.mxu0
      %v1046 = vadd.f32 %v1017, %v1045
      %v1047 = vpop.f32.mrf.mxu0
      %v1048 = vadd.f32 %v1019, %v1047
      %1049 = vmatmul.bf16.gmra.mxu0 %v730
      %v1050 = vpop.f32.mrf.mxu0
      %v1051 = vadd.f32 %v1022, %v1050
      %v1052 = vpop.f32.mrf.mxu0
      %v1053 = vadd.f32 %v1024, %v1052
      %1054 = vdwg.mxu0
      %v1055 = vld [vmem:[%s251] sm:$0x1]
      %v1057 = vperm.slane %v1055, 0
      %v1059 = vmul.f32 %v1036, %v1057
      %v1060 = vmul.f32 %v1038, %v1057
      %v1061 = vmul.f32 %v1041, %v1057
      %v1062 = vmul.f32 %v1043, %v1057
      %v1063 = vmul.f32 %v1046, %v1057
      %v1064 = vmul.f32 %v1048, %v1057
      %v1065 = vmul.f32 %v1051, %v1057
      %v1066 = vmul.f32 %v1053, %v1057
      %v1067 = vld [vmem:[%s254] sm:$0x1]
      %v1069 = vperm.slane %v1067, 0
      %v1071 = vadd.f32 %v1059, %v1069
      %v1072 = vadd.f32 %v1060, %v1069
      %v1073 = vadd.f32 %v1061, %v1069
      %v1074 = vadd.f32 %v1062, %v1069
      %v1075 = vadd.f32 %v1063, %v1069
      %v1076 = vadd.f32 %v1064, %v1069
      %v1077 = vadd.f32 %v1065, %v1069
      %v1078 = vadd.f32 %v1066, %v1069
      %vm1079 = vcmp.gt.f32.partialorder %v1071, 0.0
      %vm1080 = vcmp.gt.f32.partialorder %v1072, 0.0
      %vm1081 = vcmp.gt.f32.partialorder %v1073, 0.0
      %vm1082 = vcmp.gt.f32.partialorder %v1074, 0.0
      %vm1083 = vcmp.gt.f32.partialorder %v1075, 0.0
      %vm1084 = vcmp.gt.f32.partialorder %v1076, 0.0
      %vm1085 = vcmp.gt.f32.partialorder %v1077, 0.0
      %vm1086 = vcmp.gt.f32.partialorder %v1078, 0.0
      %v1087 = vmul.f32 %v1071, 0.01
      %v1088 = vmul.f32 %v1072, 0.01
      %v1089 = vmul.f32 %v1073, 0.01
      %v1090 = vmul.f32 %v1074, 0.01
      %v1091 = vmul.f32 %v1075, 0.01
      %v1092 = vmul.f32 %v1076, 0.01
      %v1093 = vmul.f32 %v1077, 0.01
      %v1094 = vmul.f32 %v1078, 0.01
      %v1095 = vsel %vm1079, %v1071, %v1087
      %v1096 = vsel %vm1080, %v1072, %v1088
      %v1097 = vsel %vm1081, %v1073, %v1089
      %v1098 = vsel %vm1082, %v1074, %v1090
      %v1099 = vsel %vm1083, %v1075, %v1091
      %v1100 = vsel %vm1084, %v1076, %v1092
      %v1101 = vsel %vm1085, %v1077, %v1093
      %v1102 = vsel %vm1086, %v1078, %v1094
      %vm1103 = vcmask 523264
      %1104 = vst.msk [vmem:[%s262] sm:$0xff] %vm1103, %v1095
      %1105 = vst.msk [vmem:[%s262 + $0x8] sm:$0xff] %vm1103, %v1096
      %1106 = vst.msk [vmem:[%s262 + $0x10] sm:$0xff] %vm1103, %v1097
      %1107 = vst.msk [vmem:[%s262 + $0x18] sm:$0xff] %vm1103, %v1098
      %1108 = vst.msk [vmem:[%s262 + $0x20] sm:$0xff] %vm1103, %v1099
      %1109 = vst.msk [vmem:[%s262 + $0x28] sm:$0xff] %vm1103, %v1100
      %1110 = vst.msk [vmem:[%s262 + $0x30] sm:$0xff] %vm1103, %v1101
      %1111 = vst.msk [vmem:[%s262 + $0x38] sm:$0xff] %vm1103, %v1102
      %v1112 = vld [vmem:[%s244] sm:$0xf]
      %v1113 = vld [vmem:[%s244 + $0x4] sm:$0x1]
      %v1114 = vld [vmem:[%s244 + $0x8] sm:$0xf]
      %v1115 = vld [vmem:[%s244 + $0xc] sm:$0x1]
      %v1116 = vld [vmem:[%s244 + $0x10] sm:$0xf]
      %v1117 = vld [vmem:[%s244 + $0x14] sm:$0x1]
      %v1118 = vld [vmem:[%s244 + $0x18] sm:$0xf]
      %v1119 = vld [vmem:[%s244 + $0x1c] sm:$0x1]
      %v1120 = vld [vmem:[%s244 + $0x20] sm:$0xf]
      %v1121 = vld [vmem:[%s244 + $0x24] sm:$0x1]
      %v1122 = vld [vmem:[%s244 + $0x28] sm:$0xf]
      %v1123 = vld [vmem:[%s244 + $0x2c] sm:$0x1]
      %v1124 = vld [vmem:[%s244 + $0x30] sm:$0xf]
      %v1125 = vld [vmem:[%s244 + $0x34] sm:$0x1]
      %v1126 = vld [vmem:[%s244 + $0x38] sm:$0xf]
      %v1127 = vld [vmem:[%s244 + $0x3c] sm:$0x1]
      %v1129 = vshrl.u32 %v1112, 16
      %v1131 = vrot.slane %v1129, 4
      %v1132 = vshll.u32 %v1112, 16
      %v1134 = vrot.slane %v1132, 5
      %v1135 = vor.u32 %v1131, %v1134
      %v1136 = vrot.slane %v1135, 4
      %v1138 = vshll.u32 %v1113, 16
      %v1140 = vrot.slane %v1138, 5
      %v1141 = vsel %vm297, %v1136, %v1140
      %v1143 = vshrl.u32 %v1114, 16
      %v1145 = vrot.slane %v1143, 4
      %v1146 = vshll.u32 %v1114, 16
      %v1148 = vrot.slane %v1146, 5
      %v1149 = vor.u32 %v1145, %v1148
      %v1150 = vrot.slane %v1149, 4
      %v1152 = vshll.u32 %v1115, 16
      %v1154 = vrot.slane %v1152, 5
      %v1155 = vsel %vm297, %v1150, %v1154
      %v1157 = vshrl.u32 %v1116, 16
      %v1159 = vrot.slane %v1157, 4
      %v1160 = vshll.u32 %v1116, 16
      %v1162 = vrot.slane %v1160, 5
      %v1163 = vor.u32 %v1159, %v1162
      %v1164 = vrot.slane %v1163, 4
      %v1166 = vshll.u32 %v1117, 16
      %v1168 = vrot.slane %v1166, 5
      %v1169 = vsel %vm297, %v1164, %v1168
      %v1171 = vshrl.u32 %v1118, 16
      %v1173 = vrot.slane %v1171, 4
      %v1174 = vshll.u32 %v1118, 16
      %v1176 = vrot.slane %v1174, 5
      %v1177 = vor.u32 %v1173, %v1176
      %v1178 = vrot.slane %v1177, 4
      %v1180 = vshll.u32 %v1119, 16
      %v1182 = vrot.slane %v1180, 5
      %v1183 = vsel %vm297, %v1178, %v1182
      %v1185 = vshrl.u32 %v1120, 16
      %v1187 = vrot.slane %v1185, 4
      %v1188 = vshll.u32 %v1120, 16
      %v1190 = vrot.slane %v1188, 5
      %v1191 = vor.u32 %v1187, %v1190
      %v1192 = vrot.slane %v1191, 4
      %v1194 = vshll.u32 %v1121, 16
      %v1196 = vrot.slane %v1194, 5
      %v1197 = vsel %vm297, %v1192, %v1196
      %v1199 = vshrl.u32 %v1122, 16
      %v1201 = vrot.slane %v1199, 4
      %v1202 = vshll.u32 %v1122, 16
      %v1204 = vrot.slane %v1202, 5
      %v1205 = vor.u32 %v1201, %v1204
      %v1206 = vrot.slane %v1205, 4
      %v1208 = vshll.u32 %v1123, 16
      %v1210 = vrot.slane %v1208, 5
      %v1211 = vsel %vm297, %v1206, %v1210
      %v1213 = vshrl.u32 %v1124, 16
      %v1215 = vrot.slane %v1213, 4
      %v1216 = vshll.u32 %v1124, 16
      %v1218 = vrot.slane %v1216, 5
      %v1219 = vor.u32 %v1215, %v1218
      %v1220 = vrot.slane %v1219, 4
      %v1222 = vshll.u32 %v1125, 16
      %v1224 = vrot.slane %v1222, 5
      %v1225 = vsel %vm297, %v1220, %v1224
      %v1227 = vshrl.u32 %v1126, 16
      %v1229 = vrot.slane %v1227, 4
      %v1230 = vshll.u32 %v1126, 16
      %v1232 = vrot.slane %v1230, 5
      %v1233 = vor.u32 %v1229, %v1232
      %v1234 = vrot.slane %v1233, 4
      %v1236 = vshll.u32 %v1127, 16
      %v1238 = vrot.slane %v1236, 5
      %v1239 = vsel %vm297, %v1234, %v1238
      %1248 = vst [vmem:[#allocation2] sm:$0xf] %v1141
      %1249 = vst [vmem:[#allocation2 + $0x10] sm:$0xf] %v1155
      %1250 = vst [vmem:[#allocation2 + $0x20] sm:$0xf] %v1169
      %1251 = vst [vmem:[#allocation2 + $0x30] sm:$0xf] %v1183
      %1252 = vst [vmem:[#allocation2 + $0x40] sm:$0xf] %v1197
      %1253 = vst [vmem:[#allocation2 + $0x50] sm:$0xf] %v1211
      %1254 = vst [vmem:[#allocation2 + $0x60] sm:$0xf] %v1225
      %1255 = vst [vmem:[#allocation2 + $0x70] sm:$0xf] %v1239
      %v1256 = vld [vmem:[%s244] sm:$0xe]
      %v1257 = vld [vmem:[%s244 + $0x4] sm:$0x1]
      %v1258 = vld [vmem:[%s244 + $0x8] sm:$0xe]
      %v1259 = vld [vmem:[%s244 + $0xc] sm:$0x1]
      %v1260 = vld [vmem:[%s244 + $0x10] sm:$0xe]
      %v1261 = vld [vmem:[%s244 + $0x14] sm:$0x1]
      %v1262 = vld [vmem:[%s244 + $0x18] sm:$0xe]
      %v1263 = vld [vmem:[%s244 + $0x1c] sm:$0x1]
      %v1264 = vld [vmem:[%s244 + $0x20] sm:$0xe]
      %v1265 = vld [vmem:[%s244 + $0x24] sm:$0x1]
      %v1266 = vld [vmem:[%s244 + $0x28] sm:$0xe]
      %v1267 = vld [vmem:[%s244 + $0x2c] sm:$0x1]
      %v1268 = vld [vmem:[%s244 + $0x30] sm:$0xe]
      %v1269 = vld [vmem:[%s244 + $0x34] sm:$0x1]
      %v1270 = vld [vmem:[%s244 + $0x38] sm:$0xe]
      %v1271 = vld [vmem:[%s244 + $0x3c] sm:$0x1]
      %vm1288 = vcmask 1042432
      %vm1289 = vcmask 1046532
      %vm1290 = vmor %vm1288, %vm1289
      %v1291 = vrot.slane %v1256, 5
      %v1292 = vrot.slane %v1291, 4
      %v1293 = vrot.slane %v1257, 5
      %v1294 = vsel %vm1290, %v1292, %v1293
      %v1295 = vrot.slane %v1258, 5
      %v1296 = vrot.slane %v1295, 4
      %v1297 = vrot.slane %v1259, 5
      %v1298 = vsel %vm1290, %v1296, %v1297
      %v1299 = vrot.slane %v1260, 5
      %v1300 = vrot.slane %v1299, 4
      %v1301 = vrot.slane %v1261, 5
      %v1302 = vsel %vm1290, %v1300, %v1301
      %v1303 = vrot.slane %v1262, 5
      %v1304 = vrot.slane %v1303, 4
      %v1305 = vrot.slane %v1263, 5
      %v1306 = vsel %vm1290, %v1304, %v1305
      %v1307 = vrot.slane %v1264, 5
      %v1308 = vrot.slane %v1307, 4
      %v1309 = vrot.slane %v1265, 5
      %v1310 = vsel %vm1290, %v1308, %v1309
      %v1311 = vrot.slane %v1266, 5
      %v1312 = vrot.slane %v1311, 4
      %v1313 = vrot.slane %v1267, 5
      %v1314 = vsel %vm1290, %v1312, %v1313
      %v1315 = vrot.slane %v1268, 5
      %v1316 = vrot.slane %v1315, 4
      %v1317 = vrot.slane %v1269, 5
      %v1318 = vsel %vm1290, %v1316, %v1317
      %v1319 = vrot.slane %v1270, 5
      %v1320 = vrot.slane %v1319, 4
      %v1321 = vrot.slane %v1271, 5
      %v1322 = vsel %vm1290, %v1320, %v1321
      %1331 = vst [vmem:[#allocation2 + $0x4] sm:$0xf] %v1294
      %1332 = vst [vmem:[#allocation2 + $0x14] sm:$0xf] %v1298
      %1333 = vst [vmem:[#allocation2 + $0x24] sm:$0xf] %v1302
      %1334 = vst [vmem:[#allocation2 + $0x34] sm:$0xf] %v1306
      %1335 = vst [vmem:[#allocation2 + $0x44] sm:$0xf] %v1310
      %1336 = vst [vmem:[#allocation2 + $0x54] sm:$0xf] %v1314
      %1337 = vst [vmem:[#allocation2 + $0x64] sm:$0xf] %v1318
      %1338 = vst [vmem:[#allocation2 + $0x74] sm:$0xf] %v1322
      %v1339 = vld [vmem:[%s426] sm:$0xf]
      %v1340 = vld [vmem:[%s426 + $0x4] sm:$0x1]
      %v1341 = vld [vmem:[%s426 + $0x8] sm:$0xf]
      %v1342 = vld [vmem:[%s426 + $0xc] sm:$0x1]
      %v1343 = vld [vmem:[%s426 + $0x10] sm:$0xf]
      %v1344 = vld [vmem:[%s426 + $0x14] sm:$0x1]
      %v1345 = vld [vmem:[%s426 + $0x18] sm:$0xf]
      %v1346 = vld [vmem:[%s426 + $0x1c] sm:$0x1]
      %v1347 = vld [vmem:[%s426 + $0x20] sm:$0xf]
      %v1348 = vld [vmem:[%s426 + $0x24] sm:$0x1]
      %v1349 = vld [vmem:[%s426 + $0x28] sm:$0xf]
      %v1350 = vld [vmem:[%s426 + $0x2c] sm:$0x1]
      %v1351 = vld [vmem:[%s426 + $0x30] sm:$0xf]
      %v1352 = vld [vmem:[%s426 + $0x34] sm:$0x1]
      %v1353 = vld [vmem:[%s426 + $0x38] sm:$0xf]
      %v1354 = vld [vmem:[%s426 + $0x3c] sm:$0x1]
      %v1356 = vshrl.u32 %v1339, 16
      %v1358 = vrot.slane %v1356, 4
      %v1359 = vshll.u32 %v1339, 16
      %v1361 = vrot.slane %v1359, 5
      %v1362 = vor.u32 %v1358, %v1361
      %v1363 = vrot.slane %v1362, 4
      %v1365 = vshll.u32 %v1340, 16
      %v1367 = vrot.slane %v1365, 5
      %v1368 = vsel %vm297, %v1363, %v1367
      %v1370 = vshrl.u32 %v1341, 16
      %v1372 = vrot.slane %v1370, 4
      %v1373 = vshll.u32 %v1341, 16
      %v1375 = vrot.slane %v1373, 5
      %v1376 = vor.u32 %v1372, %v1375
      %v1377 = vrot.slane %v1376, 4
      %v1379 = vshll.u32 %v1342, 16
      %v1381 = vrot.slane %v1379, 5
      %v1382 = vsel %vm297, %v1377, %v1381
      %v1384 = vshrl.u32 %v1343, 16
      %v1386 = vrot.slane %v1384, 4
      %v1387 = vshll.u32 %v1343, 16
      %v1389 = vrot.slane %v1387, 5
      %v1390 = vor.u32 %v1386, %v1389
      %v1391 = vrot.slane %v1390, 4
      %v1393 = vshll.u32 %v1344, 16
      %v1395 = vrot.slane %v1393, 5
      %v1396 = vsel %vm297, %v1391, %v1395
      %v1398 = vshrl.u32 %v1345, 16
      %v1400 = vrot.slane %v1398, 4
      %v1401 = vshll.u32 %v1345, 16
      %v1403 = vrot.slane %v1401, 5
      %v1404 = vor.u32 %v1400, %v1403
      %v1405 = vrot.slane %v1404, 4
      %v1407 = vshll.u32 %v1346, 16
      %v1409 = vrot.slane %v1407, 5
      %v1410 = vsel %vm297, %v1405, %v1409
      %v1412 = vshrl.u32 %v1347, 16
      %v1414 = vrot.slane %v1412, 4
      %v1415 = vshll.u32 %v1347, 16
      %v1417 = vrot.slane %v1415, 5
      %v1418 = vor.u32 %v1414, %v1417
      %v1419 = vrot.slane %v1418, 4
      %v1421 = vshll.u32 %v1348, 16
      %v1423 = vrot.slane %v1421, 5
      %v1424 = vsel %vm297, %v1419, %v1423
      %v1426 = vshrl.u32 %v1349, 16
      %v1428 = vrot.slane %v1426, 4
      %v1429 = vshll.u32 %v1349, 16
      %v1431 = vrot.slane %v1429, 5
      %v1432 = vor.u32 %v1428, %v1431
      %v1433 = vrot.slane %v1432, 4
      %v1435 = vshll.u32 %v1350, 16
      %v1437 = vrot.slane %v1435, 5
      %v1438 = vsel %vm297, %v1433, %v1437
      %v1440 = vshrl.u32 %v1351, 16
      %v1442 = vrot.slane %v1440, 4
      %v1443 = vshll.u32 %v1351, 16
      %v1445 = vrot.slane %v1443, 5
      %v1446 = vor.u32 %v1442, %v1445
      %v1447 = vrot.slane %v1446, 4
      %v1449 = vshll.u32 %v1352, 16
      %v1451 = vrot.slane %v1449, 5
      %v1452 = vsel %vm297, %v1447, %v1451
      %v1454 = vshrl.u32 %v1353, 16
      %v1456 = vrot.slane %v1454, 4
      %v1457 = vshll.u32 %v1353, 16
      %v1459 = vrot.slane %v1457, 5
      %v1460 = vor.u32 %v1456, %v1459
      %v1461 = vrot.slane %v1460, 4
      %v1463 = vshll.u32 %v1354, 16
      %v1465 = vrot.slane %v1463, 5
      %v1466 = vsel %vm297, %v1461, %v1465
      %1475 = vst [vmem:[#allocation2 + $0x8] sm:$0xf] %v1368
      %1476 = vst [vmem:[#allocation2 + $0x18] sm:$0xf] %v1382
      %1477 = vst [vmem:[#allocation2 + $0x28] sm:$0xf] %v1396
      %1478 = vst [vmem:[#allocation2 + $0x38] sm:$0xf] %v1410
      %1479 = vst [vmem:[#allocation2 + $0x48] sm:$0xf] %v1424
      %1480 = vst [vmem:[#allocation2 + $0x58] sm:$0xf] %v1438
      %1481 = vst [vmem:[#allocation2 + $0x68] sm:$0xf] %v1452
      %1482 = vst [vmem:[#allocation2 + $0x78] sm:$0xf] %v1466
      %v1483 = vld [vmem:[%s426] sm:$0xe]
      %v1484 = vld [vmem:[%s426 + $0x4] sm:$0x1]
      %v1485 = vld [vmem:[%s426 + $0x8] sm:$0xe]
      %v1486 = vld [vmem:[%s426 + $0xc] sm:$0x1]
      %v1487 = vld [vmem:[%s426 + $0x10] sm:$0xe]
      %v1488 = vld [vmem:[%s426 + $0x14] sm:$0x1]
      %v1489 = vld [vmem:[%s426 + $0x18] sm:$0xe]
      %v1490 = vld [vmem:[%s426 + $0x1c] sm:$0x1]
      %v1491 = vld [vmem:[%s426 + $0x20] sm:$0xe]
      %v1492 = vld [vmem:[%s426 + $0x24] sm:$0x1]
      %v1493 = vld [vmem:[%s426 + $0x28] sm:$0xe]
      %v1494 = vld [vmem:[%s426 + $0x2c] sm:$0x1]
      %v1495 = vld [vmem:[%s426 + $0x30] sm:$0xe]
      %v1496 = vld [vmem:[%s426 + $0x34] sm:$0x1]
      %v1497 = vld [vmem:[%s426 + $0x38] sm:$0xe]
      %v1498 = vld [vmem:[%s426 + $0x3c] sm:$0x1]
      %v1515 = vrot.slane %v1483, 5
      %v1516 = vrot.slane %v1515, 4
      %v1517 = vrot.slane %v1484, 5
      %v1518 = vsel %vm1290, %v1516, %v1517
      %v1519 = vrot.slane %v1485, 5
      %v1520 = vrot.slane %v1519, 4
      %v1521 = vrot.slane %v1486, 5
      %v1522 = vsel %vm1290, %v1520, %v1521
      %v1523 = vrot.slane %v1487, 5
      %v1524 = vrot.slane %v1523, 4
      %v1525 = vrot.slane %v1488, 5
      %v1526 = vsel %vm1290, %v1524, %v1525
      %v1527 = vrot.slane %v1489, 5
      %v1528 = vrot.slane %v1527, 4
      %v1529 = vrot.slane %v1490, 5
      %v1530 = vsel %vm1290, %v1528, %v1529
      %v1531 = vrot.slane %v1491, 5
      %v1532 = vrot.slane %v1531, 4
      %v1533 = vrot.slane %v1492, 5
      %v1534 = vsel %vm1290, %v1532, %v1533
      %v1535 = vrot.slane %v1493, 5
      %v1536 = vrot.slane %v1535, 4
      %v1537 = vrot.slane %v1494, 5
      %v1538 = vsel %vm1290, %v1536, %v1537
      %v1539 = vrot.slane %v1495, 5
      %v1540 = vrot.slane %v1539, 4
      %v1541 = vrot.slane %v1496, 5
      %v1542 = vsel %vm1290, %v1540, %v1541
      %v1543 = vrot.slane %v1497, 5
      %v1544 = vrot.slane %v1543, 4
      %v1545 = vrot.slane %v1498, 5
      %v1546 = vsel %vm1290, %v1544, %v1545
      %1555 = vst [vmem:[#allocation2 + $0xc] sm:$0xf] %v1518
      %1556 = vst [vmem:[#allocation2 + $0x1c] sm:$0xf] %v1522
      %1557 = vst [vmem:[#allocation2 + $0x2c] sm:$0xf] %v1526
      %1558 = vst [vmem:[#allocation2 + $0x3c] sm:$0xf] %v1530
      %1559 = vst [vmem:[#allocation2 + $0x4c] sm:$0xf] %v1534
      %1560 = vst [vmem:[#allocation2 + $0x5c] sm:$0xf] %v1538
      %1561 = vst [vmem:[#allocation2 + $0x6c] sm:$0xf] %v1542
      %1562 = vst [vmem:[#allocation2 + $0x7c] sm:$0xf] %v1546
      %v1563 = vld [vmem:[#allocation2] sm:$0xff]
      %v1564 = vld [vmem:[#allocation2 + $0x8] sm:$0xff]
      %v1565 = vld [vmem:[#allocation2 + $0x10] sm:$0xff]
      %v1566 = vld [vmem:[#allocation2 + $0x18] sm:$0xff]
      %v1567 = vld [vmem:[#allocation2 + $0x20] sm:$0xff]
      %v1568 = vld [vmem:[#allocation2 + $0x28] sm:$0xff]
      %v1569 = vld [vmem:[#allocation2 + $0x30] sm:$0xff]
      %v1570 = vld [vmem:[#allocation2 + $0x38] sm:$0xff]
      %v1571 = vld [vmem:[#allocation2 + $0x40] sm:$0xff]
      %v1572 = vld [vmem:[#allocation2 + $0x48] sm:$0xff]
      %v1573 = vld [vmem:[#allocation2 + $0x50] sm:$0xff]
      %v1574 = vld [vmem:[#allocation2 + $0x58] sm:$0xff]
      %v1575 = vld [vmem:[#allocation2 + $0x60] sm:$0xff]
      %v1576 = vld [vmem:[#allocation2 + $0x68] sm:$0xff]
      %v1577 = vld [vmem:[#allocation2 + $0x70] sm:$0xff]
      %v1578 = vld [vmem:[#allocation2 + $0x78] sm:$0xff]
      %s1579 = scalar_lea.vmem %s248, 256
      %v1580 = vld [vmem:[%s1579] sm:$0xf]
      %v1581 = vld [vmem:[%s1579 + $0x4] sm:$0xf]
      %v1582 = vld [vmem:[%s1579 + $0x8] sm:$0xf]
      %v1583 = vld [vmem:[%s1579 + $0xc] sm:$0xf]
      %v1584 = vld [vmem:[%s1579 + $0x10] sm:$0xf]
      %v1585 = vld [vmem:[%s1579 + $0x14] sm:$0xf]
      %v1586 = vld [vmem:[%s1579 + $0x18] sm:$0xf]
      %v1587 = vld [vmem:[%s1579 + $0x1c] sm:$0xf]
      %v1588 = vld [vmem:[%s1579 + $0x20] sm:$0xf]
      %v1589 = vld [vmem:[%s1579 + $0x24] sm:$0xf]
      %v1590 = vld [vmem:[%s1579 + $0x28] sm:$0xf]
      %v1591 = vld [vmem:[%s1579 + $0x2c] sm:$0xf]
      %v1592 = vld [vmem:[%s1579 + $0x30] sm:$0xf]
      %v1593 = vld [vmem:[%s1579 + $0x34] sm:$0xf]
      %v1594 = vld [vmem:[%s1579 + $0x38] sm:$0xf]
      %v1595 = vld [vmem:[%s1579 + $0x3c] sm:$0xf]
      %v1596 = vld [vmem:[%s1579 + $0x40] sm:$0xf]
      %v1597 = vld [vmem:[%s1579 + $0x44] sm:$0xf]
      %v1598 = vld [vmem:[%s1579 + $0x48] sm:$0xf]
      %v1599 = vld [vmem:[%s1579 + $0x4c] sm:$0xf]
      %v1600 = vld [vmem:[%s1579 + $0x50] sm:$0xf]
      %v1601 = vld [vmem:[%s1579 + $0x54] sm:$0xf]
      %v1602 = vld [vmem:[%s1579 + $0x58] sm:$0xf]
      %v1603 = vld [vmem:[%s1579 + $0x5c] sm:$0xf]
      %v1604 = vld [vmem:[%s1579 + $0x60] sm:$0xf]
      %v1605 = vld [vmem:[%s1579 + $0x64] sm:$0xf]
      %v1606 = vld [vmem:[%s1579 + $0x68] sm:$0xf]
      %v1607 = vld [vmem:[%s1579 + $0x6c] sm:$0xf]
      %v1608 = vld [vmem:[%s1579 + $0x70] sm:$0xf]
      %v1609 = vld [vmem:[%s1579 + $0x74] sm:$0xf]
      %v1610 = vld [vmem:[%s1579 + $0x78] sm:$0xf]
      %v1611 = vld [vmem:[%s1579 + $0x7c] sm:$0xf]
      %v1612 = vld [vmem:[%s1579 + $0x80] sm:$0xf]
      %v1613 = vld [vmem:[%s1579 + $0x84] sm:$0xf]
      %v1614 = vld [vmem:[%s1579 + $0x88] sm:$0xf]
      %v1615 = vld [vmem:[%s1579 + $0x8c] sm:$0xf]
      %v1616 = vld [vmem:[%s1579 + $0x90] sm:$0xf]
      %v1617 = vld [vmem:[%s1579 + $0x94] sm:$0xf]
      %v1618 = vld [vmem:[%s1579 + $0x98] sm:$0xf]
      %v1619 = vld [vmem:[%s1579 + $0x9c] sm:$0xf]
      %v1620 = vld [vmem:[%s1579 + $0xa0] sm:$0xf]
      %v1621 = vld [vmem:[%s1579 + $0xa4] sm:$0xf]
      %v1622 = vld [vmem:[%s1579 + $0xa8] sm:$0xf]
      %v1623 = vld [vmem:[%s1579 + $0xac] sm:$0xf]
      %v1624 = vld [vmem:[%s1579 + $0xb0] sm:$0xf]
      %v1625 = vld [vmem:[%s1579 + $0xb4] sm:$0xf]
      %v1626 = vld [vmem:[%s1579 + $0xb8] sm:$0xf]
      %v1627 = vld [vmem:[%s1579 + $0xbc] sm:$0xf]
      %v1628 = vld [vmem:[%s1579 + $0xc0] sm:$0xf]
      %v1629 = vld [vmem:[%s1579 + $0xc4] sm:$0xf]
      %v1630 = vld [vmem:[%s1579 + $0xc8] sm:$0xf]
      %v1631 = vld [vmem:[%s1579 + $0xcc] sm:$0xf]
      %v1632 = vld [vmem:[%s1579 + $0xd0] sm:$0xf]
      %v1633 = vld [vmem:[%s1579 + $0xd4] sm:$0xf]
      %v1634 = vld [vmem:[%s1579 + $0xd8] sm:$0xf]
      %v1635 = vld [vmem:[%s1579 + $0xdc] sm:$0xf]
      %v1636 = vld [vmem:[%s1579 + $0xe0] sm:$0xf]
      %v1637 = vld [vmem:[%s1579 + $0xe4] sm:$0xf]
      %v1638 = vld [vmem:[%s1579 + $0xe8] sm:$0xf]
      %v1639 = vld [vmem:[%s1579 + $0xec] sm:$0xf]
      %v1640 = vld [vmem:[%s1579 + $0xf0] sm:$0xf]
      %v1641 = vld [vmem:[%s1579 + $0xf4] sm:$0xf]
      %v1642 = vld [vmem:[%s1579 + $0xf8] sm:$0xf]
      %v1643 = vld [vmem:[%s1579 + $0xfc] sm:$0xf]
      %v1660 = vunpack.c.l.b16 %v1563
      %v1661 = vunpack.c.h.b16 %v1563
      %v1662 = vunpack.c.l.b16 %v1564
      %v1663 = vunpack.c.h.b16 %v1564
      %v1664 = vunpack.c.l.b16 %v1565
      %v1665 = vunpack.c.h.b16 %v1565
      %v1666 = vunpack.c.l.b16 %v1566
      %v1667 = vunpack.c.h.b16 %v1566
      %v1668 = vunpack.c.l.b16 %v1567
      %v1669 = vunpack.c.h.b16 %v1567
      %v1670 = vunpack.c.l.b16 %v1568
      %v1671 = vunpack.c.h.b16 %v1568
      %v1672 = vunpack.c.l.b16 %v1569
      %v1673 = vunpack.c.h.b16 %v1569
      %v1674 = vunpack.c.l.b16 %v1570
      %v1675 = vunpack.c.h.b16 %v1570
      %v1676 = vunpack.c.l.b16 %v1571
      %v1677 = vunpack.c.h.b16 %v1571
      %v1678 = vunpack.c.l.b16 %v1572
      %v1679 = vunpack.c.h.b16 %v1572
      %v1680 = vunpack.c.l.b16 %v1573
      %v1681 = vunpack.c.h.b16 %v1573
      %v1682 = vunpack.c.l.b16 %v1574
      %v1683 = vunpack.c.h.b16 %v1574
      %v1684 = vunpack.c.l.b16 %v1575
      %v1685 = vunpack.c.h.b16 %v1575
      %v1686 = vunpack.c.l.b16 %v1576
      %v1687 = vunpack.c.h.b16 %v1576
      %v1688 = vunpack.c.l.b16 %v1577
      %v1689 = vunpack.c.h.b16 %v1577
      %v1690 = vunpack.c.l.b16 %v1578
      %v1691 = vunpack.c.h.b16 %v1578
      %v1692 = vpack.c.b16 %v1664, %v1660
      %v1693 = vpack.c.b16 %v1665, %v1661
      %v1694 = vpack.c.b16 %v1666, %v1662
      %v1695 = vpack.c.b16 %v1667, %v1663
      %v1696 = vpack.c.b16 %v1672, %v1668
      %v1697 = vpack.c.b16 %v1673, %v1669
      %v1698 = vpack.c.b16 %v1674, %v1670
      %v1699 = vpack.c.b16 %v1675, %v1671
      %v1700 = vpack.c.b16 %v1680, %v1676
      %v1701 = vpack.c.b16 %v1681, %v1677
      %v1702 = vpack.c.b16 %v1682, %v1678
      %v1703 = vpack.c.b16 %v1683, %v1679
      %v1704 = vpack.c.b16 %v1688, %v1684
      %v1705 = vpack.c.b16 %v1689, %v1685
      %v1706 = vpack.c.b16 %v1690, %v1686
      %v1707 = vpack.c.b16 %v1691, %v1687
      %v1788 = vunpack.c.l.b16 %v1580
      %v1789 = vunpack.c.l.b16 %v1581
      %v1790 = vunpack.c.l.b16 %v1582
      %v1791 = vunpack.c.l.b16 %v1583
      %v1792 = vunpack.c.l.b16 %v1584
      %v1793 = vunpack.c.l.b16 %v1585
      %v1794 = vunpack.c.l.b16 %v1586
      %v1795 = vunpack.c.l.b16 %v1587
      %v1796 = vunpack.c.l.b16 %v1588
      %v1797 = vunpack.c.l.b16 %v1589
      %v1798 = vunpack.c.l.b16 %v1590
      %v1799 = vunpack.c.l.b16 %v1591
      %v1800 = vunpack.c.l.b16 %v1592
      %v1801 = vunpack.c.l.b16 %v1593
      %v1802 = vunpack.c.l.b16 %v1594
      %v1803 = vunpack.c.l.b16 %v1595
      %v1804 = vunpack.c.l.b16 %v1596
      %v1805 = vunpack.c.l.b16 %v1597
      %v1806 = vunpack.c.l.b16 %v1598
      %v1807 = vunpack.c.l.b16 %v1599
      %v1808 = vunpack.c.l.b16 %v1600
      %v1809 = vunpack.c.l.b16 %v1601
      %v1810 = vunpack.c.l.b16 %v1602
      %v1811 = vunpack.c.l.b16 %v1603
      %v1812 = vunpack.c.l.b16 %v1604
      %v1813 = vunpack.c.l.b16 %v1605
      %v1814 = vunpack.c.l.b16 %v1606
      %v1815 = vunpack.c.l.b16 %v1607
      %v1816 = vunpack.c.l.b16 %v1608
      %v1817 = vunpack.c.l.b16 %v1609
      %v1818 = vunpack.c.l.b16 %v1610
      %v1819 = vunpack.c.l.b16 %v1611
      %v1820 = vunpack.c.l.b16 %v1612
      %v1821 = vunpack.c.l.b16 %v1613
      %v1822 = vunpack.c.l.b16 %v1614
      %v1823 = vunpack.c.l.b16 %v1615
      %v1824 = vunpack.c.l.b16 %v1616
      %v1825 = vunpack.c.l.b16 %v1617
      %v1826 = vunpack.c.l.b16 %v1618
      %v1827 = vunpack.c.l.b16 %v1619
      %v1828 = vunpack.c.l.b16 %v1620
      %v1829 = vunpack.c.l.b16 %v1621
      %v1830 = vunpack.c.l.b16 %v1622
      %v1831 = vunpack.c.l.b16 %v1623
      %v1832 = vunpack.c.l.b16 %v1624
      %v1833 = vunpack.c.l.b16 %v1625
      %v1834 = vunpack.c.l.b16 %v1626
      %v1835 = vunpack.c.l.b16 %v1627
      %v1836 = vunpack.c.l.b16 %v1628
      %v1837 = vunpack.c.l.b16 %v1629
      %v1838 = vunpack.c.l.b16 %v1630
      %v1839 = vunpack.c.l.b16 %v1631
      %v1840 = vunpack.c.l.b16 %v1632
      %v1841 = vunpack.c.l.b16 %v1633
      %v1842 = vunpack.c.l.b16 %v1634
      %v1843 = vunpack.c.l.b16 %v1635
      %v1844 = vunpack.c.l.b16 %v1636
      %v1845 = vunpack.c.l.b16 %v1637
      %v1846 = vunpack.c.l.b16 %v1638
      %v1847 = vunpack.c.l.b16 %v1639
      %v1848 = vunpack.c.l.b16 %v1640
      %v1849 = vunpack.c.l.b16 %v1641
      %v1850 = vunpack.c.l.b16 %v1642
      %v1851 = vunpack.c.l.b16 %v1643
      %v1852 = vpack.c.b16 %v1789, %v1788
      %v1853 = vpack.c.b16 %v1791, %v1790
      %v1854 = vpack.c.b16 %v1793, %v1792
      %v1855 = vpack.c.b16 %v1795, %v1794
      %v1856 = vpack.c.b16 %v1797, %v1796
      %v1857 = vpack.c.b16 %v1799, %v1798
      %v1858 = vpack.c.b16 %v1801, %v1800
      %v1859 = vpack.c.b16 %v1803, %v1802
      %v1860 = vpack.c.b16 %v1805, %v1804
      %v1861 = vpack.c.b16 %v1807, %v1806
      %v1862 = vpack.c.b16 %v1809, %v1808
      %v1863 = vpack.c.b16 %v1811, %v1810
      %v1864 = vpack.c.b16 %v1813, %v1812
      %v1865 = vpack.c.b16 %v1815, %v1814
      %v1866 = vpack.c.b16 %v1817, %v1816
      %v1867 = vpack.c.b16 %v1819, %v1818
      %v1868 = vpack.c.b16 %v1821, %v1820
      %v1869 = vpack.c.b16 %v1823, %v1822
      %v1870 = vpack.c.b16 %v1825, %v1824
      %v1871 = vpack.c.b16 %v1827, %v1826
      %v1872 = vpack.c.b16 %v1829, %v1828
      %v1873 = vpack.c.b16 %v1831, %v1830
      %v1874 = vpack.c.b16 %v1833, %v1832
      %v1875 = vpack.c.b16 %v1835, %v1834
      %v1876 = vpack.c.b16 %v1837, %v1836
      %v1877 = vpack.c.b16 %v1839, %v1838
      %v1878 = vpack.c.b16 %v1841, %v1840
      %v1879 = vpack.c.b16 %v1843, %v1842
      %v1880 = vpack.c.b16 %v1845, %v1844
      %v1881 = vpack.c.b16 %v1847, %v1846
      %v1882 = vpack.c.b16 %v1849, %v1848
      %v1883 = vpack.c.b16 %v1851, %v1850
      %1916 = vmatpush.bf16.msra.mxu0 %v1859
      %1917 = vmatpush.bf16.msra.mxu0 %v1858
      %1918 = vmatpush.bf16.msra.mxu0 %v1857
      %1919 = vmatpush.bf16.msra.mxu0 %v1856
      %1920 = vmatpush.bf16.msra.mxu0 %v1855
      %1921 = vmatpush.bf16.msra.mxu0 %v1854
      %1922 = vmatpush.bf16.msra.mxu0 %v1853
      %1923 = vmatpush.bf16.msra.mxu0 %v1852
      %1924 = vmatmul.bf16.gmra.mxu0 %v1692
      %v1925 = vpop.f32.mrf.mxu0
      %v1926 = vadd.f32 0.0, %v1925
      %v1927 = vpop.f32.mrf.mxu0
      %v1928 = vadd.f32 0.0, %v1927
      %1929 = vmatmul.bf16.gmra.mxu0 %v1696
      %v1930 = vpop.f32.mrf.mxu0
      %v1931 = vadd.f32 0.0, %v1930
      %v1932 = vpop.f32.mrf.mxu0
      %v1933 = vadd.f32 0.0, %v1932
      %1934 = vmatmul.bf16.gmra.mxu0 %v1700
      %v1935 = vpop.f32.mrf.mxu0
      %v1936 = vadd.f32 0.0, %v1935
      %v1937 = vpop.f32.mrf.mxu0
      %v1938 = vadd.f32 0.0, %v1937
      %1939 = vmatmul.bf16.gmra.mxu0 %v1704
      %v1940 = vpop.f32.mrf.mxu0
      %v1941 = vadd.f32 0.0, %v1940
      %v1942 = vpop.f32.mrf.mxu0
      %v1943 = vadd.f32 0.0, %v1942
      %1944 = vdwg.mxu0
      %1945 = vmatpush.bf16.msra.mxu0 %v1867
      %1946 = vmatpush.bf16.msra.mxu0 %v1866
      %1947 = vmatpush.bf16.msra.mxu0 %v1865
      %1948 = vmatpush.bf16.msra.mxu0 %v1864
      %1949 = vmatpush.bf16.msra.mxu0 %v1863
      %1950 = vmatpush.bf16.msra.mxu0 %v1862
      %1951 = vmatpush.bf16.msra.mxu0 %v1861
      %1952 = vmatpush.bf16.msra.mxu0 %v1860
      %1953 = vmatmul.bf16.gmra.mxu0 %v1693
      %v1954 = vpop.f32.mrf.mxu0
      %v1955 = vadd.f32 %v1926, %v1954
      %v1956 = vpop.f32.mrf.mxu0
      %v1957 = vadd.f32 %v1928, %v1956
      %1958 = vmatmul.bf16.gmra.mxu0 %v1697
      %v1959 = vpop.f32.mrf.mxu0
      %v1960 = vadd.f32 %v1931, %v1959
      %v1961 = vpop.f32.mrf.mxu0
      %v1962 = vadd.f32 %v1933, %v1961
      %1963 = vmatmul.bf16.gmra.mxu0 %v1701
      %v1964 = vpop.f32.mrf.mxu0
      %v1965 = vadd.f32 %v1936, %v1964
      %v1966 = vpop.f32.mrf.mxu0
      %v1967 = vadd.f32 %v1938, %v1966
      %1968 = vmatmul.bf16.gmra.mxu0 %v1705
      %v1969 = vpop.f32.mrf.mxu0
      %v1970 = vadd.f32 %v1941, %v1969
      %v1971 = vpop.f32.mrf.mxu0
      %v1972 = vadd.f32 %v1943, %v1971
      %1973 = vdwg.mxu0
      %1974 = vmatpush.bf16.msra.mxu0 %v1875
      %1975 = vmatpush.bf16.msra.mxu0 %v1874
      %1976 = vmatpush.bf16.msra.mxu0 %v1873
      %1977 = vmatpush.bf16.msra.mxu0 %v1872
      %1978 = vmatpush.bf16.msra.mxu0 %v1871
      %1979 = vmatpush.bf16.msra.mxu0 %v1870
      %1980 = vmatpush.bf16.msra.mxu0 %v1869
      %1981 = vmatpush.bf16.msra.mxu0 %v1868
      %1982 = vmatmul.bf16.gmra.mxu0 %v1694
      %v1983 = vpop.f32.mrf.mxu0
      %v1984 = vadd.f32 %v1955, %v1983
      %v1985 = vpop.f32.mrf.mxu0
      %v1986 = vadd.f32 %v1957, %v1985
      %1987 = vmatmul.bf16.gmra.mxu0 %v1698
      %v1988 = vpop.f32.mrf.mxu0
      %v1989 = vadd.f32 %v1960, %v1988
      %v1990 = vpop.f32.mrf.mxu0
      %v1991 = vadd.f32 %v1962, %v1990
      %1992 = vmatmul.bf16.gmra.mxu0 %v1702
      %v1993 = vpop.f32.mrf.mxu0
      %v1994 = vadd.f32 %v1965, %v1993
      %v1995 = vpop.f32.mrf.mxu0
      %v1996 = vadd.f32 %v1967, %v1995
      %1997 = vmatmul.bf16.gmra.mxu0 %v1706
      %v1998 = vpop.f32.mrf.mxu0
      %v1999 = vadd.f32 %v1970, %v1998
      %v2000 = vpop.f32.mrf.mxu0
      %v2001 = vadd.f32 %v1972, %v2000
      %2002 = vdwg.mxu0
      %2003 = vmatpush.bf16.msra.mxu0 %v1883
      %2004 = vmatpush.bf16.msra.mxu0 %v1882
      %2005 = vmatpush.bf16.msra.mxu0 %v1881
      %2006 = vmatpush.bf16.msra.mxu0 %v1880
      %2007 = vmatpush.bf16.msra.mxu0 %v1879
      %2008 = vmatpush.bf16.msra.mxu0 %v1878
      %2009 = vmatpush.bf16.msra.mxu0 %v1877
      %2010 = vmatpush.bf16.msra.mxu0 %v1876
      %2011 = vmatmul.bf16.gmra.mxu0 %v1695
      %v2012 = vpop.f32.mrf.mxu0
      %v2013 = vadd.f32 %v1984, %v2012
      %v2014 = vpop.f32.mrf.mxu0
      %v2015 = vadd.f32 %v1986, %v2014
      %2016 = vmatmul.bf16.gmra.mxu0 %v1699
      %v2017 = vpop.f32.mrf.mxu0
      %v2018 = vadd.f32 %v1989, %v2017
      %v2019 = vpop.f32.mrf.mxu0
      %v2020 = vadd.f32 %v1991, %v2019
      %2021 = vmatmul.bf16.gmra.mxu0 %v1703
      %v2022 = vpop.f32.mrf.mxu0
      %v2023 = vadd.f32 %v1994, %v2022
      %v2024 = vpop.f32.mrf.mxu0
      %v2025 = vadd.f32 %v1996, %v2024
      %2026 = vmatmul.bf16.gmra.mxu0 %v1707
      %v2027 = vpop.f32.mrf.mxu0
      %v2028 = vadd.f32 %v1999, %v2027
      %v2029 = vpop.f32.mrf.mxu0
      %v2030 = vadd.f32 %v2001, %v2029
      %2031 = vdwg.mxu0
      %v2032 = vld [vmem:[%s251] sm:$0x1]
      %v2034 = vperm.slane %v2032, 0
      %v2036 = vmul.f32 %v2013, %v2034
      %v2037 = vmul.f32 %v2015, %v2034
      %v2038 = vmul.f32 %v2018, %v2034
      %v2039 = vmul.f32 %v2020, %v2034
      %v2040 = vmul.f32 %v2023, %v2034
      %v2041 = vmul.f32 %v2025, %v2034
      %v2042 = vmul.f32 %v2028, %v2034
      %v2043 = vmul.f32 %v2030, %v2034
      %v2044 = vld [vmem:[%s254] sm:$0x1]
      %v2046 = vperm.slane %v2044, 0
      %v2048 = vadd.f32 %v2036, %v2046
      %v2049 = vadd.f32 %v2037, %v2046
      %v2050 = vadd.f32 %v2038, %v2046
      %v2051 = vadd.f32 %v2039, %v2046
      %v2052 = vadd.f32 %v2040, %v2046
      %v2053 = vadd.f32 %v2041, %v2046
      %v2054 = vadd.f32 %v2042, %v2046
      %v2055 = vadd.f32 %v2043, %v2046
      %vm2056 = vcmp.gt.f32.partialorder %v2048, 0.0
      %vm2057 = vcmp.gt.f32.partialorder %v2049, 0.0
      %vm2058 = vcmp.gt.f32.partialorder %v2050, 0.0
      %vm2059 = vcmp.gt.f32.partialorder %v2051, 0.0
      %vm2060 = vcmp.gt.f32.partialorder %v2052, 0.0
      %vm2061 = vcmp.gt.f32.partialorder %v2053, 0.0
      %vm2062 = vcmp.gt.f32.partialorder %v2054, 0.0
      %vm2063 = vcmp.gt.f32.partialorder %v2055, 0.0
      %v2064 = vmul.f32 %v2048, 0.01
      %v2065 = vmul.f32 %v2049, 0.01
      %v2066 = vmul.f32 %v2050, 0.01
      %v2067 = vmul.f32 %v2051, 0.01
      %v2068 = vmul.f32 %v2052, 0.01
      %v2069 = vmul.f32 %v2053, 0.01
      %v2070 = vmul.f32 %v2054, 0.01
      %v2071 = vmul.f32 %v2055, 0.01
      %v2072 = vsel %vm2056, %v2048, %v2064
      %v2073 = vsel %vm2057, %v2049, %v2065
      %v2074 = vsel %vm2058, %v2050, %v2066
      %v2075 = vsel %vm2059, %v2051, %v2067
      %v2076 = vsel %vm2060, %v2052, %v2068
      %v2077 = vsel %vm2061, %v2053, %v2069
      %v2078 = vsel %vm2062, %v2054, %v2070
      %v2079 = vsel %vm2063, %v2055, %v2071
      %s2080 = scalar_lea.vmem %s262, 64
      %2081 = vst.msk [vmem:[%s2080] sm:$0xff] %vm1103, %v2072
      %2082 = vst.msk [vmem:[%s2080 + $0x8] sm:$0xff] %vm1103, %v2073
      %2083 = vst.msk [vmem:[%s2080 + $0x10] sm:$0xff] %vm1103, %v2074
      %2084 = vst.msk [vmem:[%s2080 + $0x18] sm:$0xff] %vm1103, %v2075
      %2085 = vst.msk [vmem:[%s2080 + $0x20] sm:$0xff] %vm1103, %v2076
      %2086 = vst.msk [vmem:[%s2080 + $0x28] sm:$0xff] %vm1103, %v2077
      %2087 = vst.msk [vmem:[%s2080 + $0x30] sm:$0xff] %vm1103, %v2078
      %2088 = vst.msk [vmem:[%s2080 + $0x38] sm:$0xff] %vm1103, %v2079
      %v2089 = vld [vmem:[%s426] sm:$0xf]
      %v2090 = vld [vmem:[%s426 + $0x8] sm:$0xf]
      %v2091 = vld [vmem:[%s426 + $0x10] sm:$0xf]
      %v2092 = vld [vmem:[%s426 + $0x18] sm:$0xf]
      %v2093 = vld [vmem:[%s426 + $0x20] sm:$0xf]
      %v2094 = vld [vmem:[%s426 + $0x28] sm:$0xf]
      %v2095 = vld [vmem:[%s426 + $0x30] sm:$0xf]
      %v2096 = vld [vmem:[%s426 + $0x38] sm:$0xf]
      %2097 = vst [vmem:[#allocation2] sm:$0xf] %v2089
      %2098 = vst [vmem:[#allocation2 + $0x10] sm:$0xf] %v2090
      %2099 = vst [vmem:[#allocation2 + $0x20] sm:$0xf] %v2091
      %2100 = vst [vmem:[#allocation2 + $0x30] sm:$0xf] %v2092
      %2101 = vst [vmem:[#allocation2 + $0x40] sm:$0xf] %v2093
      %2102 = vst [vmem:[#allocation2 + $0x50] sm:$0xf] %v2094
      %2103 = vst [vmem:[#allocation2 + $0x60] sm:$0xf] %v2095
      %2104 = vst [vmem:[#allocation2 + $0x70] sm:$0xf] %v2096
      %v2105 = vld [vmem:[%s426] sm:$0xf]
      %v2106 = vld [vmem:[%s426 + $0x4] sm:$0x1]
      %v2107 = vld [vmem:[%s426 + $0x8] sm:$0xf]
      %v2108 = vld [vmem:[%s426 + $0xc] sm:$0x1]
      %v2109 = vld [vmem:[%s426 + $0x10] sm:$0xf]
      %v2110 = vld [vmem:[%s426 + $0x14] sm:$0x1]
      %v2111 = vld [vmem:[%s426 + $0x18] sm:$0xf]
      %v2112 = vld [vmem:[%s426 + $0x1c] sm:$0x1]
      %v2113 = vld [vmem:[%s426 + $0x20] sm:$0xf]
      %v2114 = vld [vmem:[%s426 + $0x24] sm:$0x1]
      %v2115 = vld [vmem:[%s426 + $0x28] sm:$0xf]
      %v2116 = vld [vmem:[%s426 + $0x2c] sm:$0x1]
      %v2117 = vld [vmem:[%s426 + $0x30] sm:$0xf]
      %v2118 = vld [vmem:[%s426 + $0x34] sm:$0x1]
      %v2119 = vld [vmem:[%s426 + $0x38] sm:$0xf]
      %v2120 = vld [vmem:[%s426 + $0x3c] sm:$0x1]
      %v2122 = vshrl.u32 %v2105, 16
      %v2124 = vrot.slane %v2122, 4
      %v2125 = vshll.u32 %v2105, 16
      %v2127 = vrot.slane %v2125, 5
      %v2128 = vor.u32 %v2124, %v2127
      %v2129 = vrot.slane %v2128, 4
      %v2131 = vshll.u32 %v2106, 16
      %v2133 = vrot.slane %v2131, 5
      %v2134 = vsel %vm297, %v2129, %v2133
      %v2136 = vshrl.u32 %v2107, 16
      %v2138 = vrot.slane %v2136, 4
      %v2139 = vshll.u32 %v2107, 16
      %v2141 = vrot.slane %v2139, 5
      %v2142 = vor.u32 %v2138, %v2141
      %v2143 = vrot.slane %v2142, 4
      %v2145 = vshll.u32 %v2108, 16
      %v2147 = vrot.slane %v2145, 5
      %v2148 = vsel %vm297, %v2143, %v2147
      %v2150 = vshrl.u32 %v2109, 16
      %v2152 = vrot.slane %v2150, 4
      %v2153 = vshll.u32 %v2109, 16
      %v2155 = vrot.slane %v2153, 5
      %v2156 = vor.u32 %v2152, %v2155
      %v2157 = vrot.slane %v2156, 4
      %v2159 = vshll.u32 %v2110, 16
      %v2161 = vrot.slane %v2159, 5
      %v2162 = vsel %vm297, %v2157, %v2161
      %v2164 = vshrl.u32 %v2111, 16
      %v2166 = vrot.slane %v2164, 4
      %v2167 = vshll.u32 %v2111, 16
      %v2169 = vrot.slane %v2167, 5
      %v2170 = vor.u32 %v2166, %v2169
      %v2171 = vrot.slane %v2170, 4
      %v2173 = vshll.u32 %v2112, 16
      %v2175 = vrot.slane %v2173, 5
      %v2176 = vsel %vm297, %v2171, %v2175
      %v2178 = vshrl.u32 %v2113, 16
      %v2180 = vrot.slane %v2178, 4
      %v2181 = vshll.u32 %v2113, 16
      %v2183 = vrot.slane %v2181, 5
      %v2184 = vor.u32 %v2180, %v2183
      %v2185 = vrot.slane %v2184, 4
      %v2187 = vshll.u32 %v2114, 16
      %v2189 = vrot.slane %v2187, 5
      %v2190 = vsel %vm297, %v2185, %v2189
      %v2192 = vshrl.u32 %v2115, 16
      %v2194 = vrot.slane %v2192, 4
      %v2195 = vshll.u32 %v2115, 16
      %v2197 = vrot.slane %v2195, 5
      %v2198 = vor.u32 %v2194, %v2197
      %v2199 = vrot.slane %v2198, 4
      %v2201 = vshll.u32 %v2116, 16
      %v2203 = vrot.slane %v2201, 5
      %v2204 = vsel %vm297, %v2199, %v2203
      %v2206 = vshrl.u32 %v2117, 16
      %v2208 = vrot.slane %v2206, 4
      %v2209 = vshll.u32 %v2117, 16
      %v2211 = vrot.slane %v2209, 5
      %v2212 = vor.u32 %v2208, %v2211
      %v2213 = vrot.slane %v2212, 4
      %v2215 = vshll.u32 %v2118, 16
      %v2217 = vrot.slane %v2215, 5
      %v2218 = vsel %vm297, %v2213, %v2217
      %v2220 = vshrl.u32 %v2119, 16
      %v2222 = vrot.slane %v2220, 4
      %v2223 = vshll.u32 %v2119, 16
      %v2225 = vrot.slane %v2223, 5
      %v2226 = vor.u32 %v2222, %v2225
      %v2227 = vrot.slane %v2226, 4
      %v2229 = vshll.u32 %v2120, 16
      %v2231 = vrot.slane %v2229, 5
      %v2232 = vsel %vm297, %v2227, %v2231
      %2241 = vst [vmem:[#allocation2 + $0x4] sm:$0xf] %v2134
      %2242 = vst [vmem:[#allocation2 + $0x14] sm:$0xf] %v2148
      %2243 = vst [vmem:[#allocation2 + $0x24] sm:$0xf] %v2162
      %2244 = vst [vmem:[#allocation2 + $0x34] sm:$0xf] %v2176
      %2245 = vst [vmem:[#allocation2 + $0x44] sm:$0xf] %v2190
      %2246 = vst [vmem:[#allocation2 + $0x54] sm:$0xf] %v2204
      %2247 = vst [vmem:[#allocation2 + $0x64] sm:$0xf] %v2218
      %2248 = vst [vmem:[#allocation2 + $0x74] sm:$0xf] %v2232
      %s2249 = scalar_lea.vmem %s244, 16
      %v2250 = vld [vmem:[%s2249] sm:$0xf]
      %v2251 = vld [vmem:[%s2249 + $0x8] sm:$0xf]
      %v2252 = vld [vmem:[%s2249 + $0x10] sm:$0xf]
      %v2253 = vld [vmem:[%s2249 + $0x18] sm:$0xf]
      %v2254 = vld [vmem:[%s2249 + $0x20] sm:$0xf]
      %v2255 = vld [vmem:[%s2249 + $0x28] sm:$0xf]
      %v2256 = vld [vmem:[%s2249 + $0x30] sm:$0xf]
      %v2257 = vld [vmem:[%s2249 + $0x38] sm:$0xf]
      %2258 = vst [vmem:[#allocation2 + $0x8] sm:$0xf] %v2250
      %2259 = vst [vmem:[#allocation2 + $0x18] sm:$0xf] %v2251
      %2260 = vst [vmem:[#allocation2 + $0x28] sm:$0xf] %v2252
      %2261 = vst [vmem:[#allocation2 + $0x38] sm:$0xf] %v2253
      %2262 = vst [vmem:[#allocation2 + $0x48] sm:$0xf] %v2254
      %2263 = vst [vmem:[#allocation2 + $0x58] sm:$0xf] %v2255
      %2264 = vst [vmem:[#allocation2 + $0x68] sm:$0xf] %v2256
      %2265 = vst [vmem:[#allocation2 + $0x78] sm:$0xf] %v2257
      %v2266 = vld [vmem:[%s2249] sm:$0xf]
      %v2267 = vld [vmem:[%s2249 + $0x4] sm:$0x1]
      %v2268 = vld [vmem:[%s2249 + $0x8] sm:$0xf]
      %v2269 = vld [vmem:[%s2249 + $0xc] sm:$0x1]
      %v2270 = vld [vmem:[%s2249 + $0x10] sm:$0xf]
      %v2271 = vld [vmem:[%s2249 + $0x14] sm:$0x1]
      %v2272 = vld [vmem:[%s2249 + $0x18] sm:$0xf]
      %v2273 = vld [vmem:[%s2249 + $0x1c] sm:$0x1]
      %v2274 = vld [vmem:[%s2249 + $0x20] sm:$0xf]
      %v2275 = vld [vmem:[%s2249 + $0x24] sm:$0x1]
      %v2276 = vld [vmem:[%s2249 + $0x28] sm:$0xf]
      %v2277 = vld [vmem:[%s2249 + $0x2c] sm:$0x1]
      %v2278 = vld [vmem:[%s2249 + $0x30] sm:$0xf]
      %v2279 = vld [vmem:[%s2249 + $0x34] sm:$0x1]
      %v2280 = vld [vmem:[%s2249 + $0x38] sm:$0xf]
      %v2281 = vld [vmem:[%s2249 + $0x3c] sm:$0x1]
      %v2283 = vshrl.u32 %v2266, 16
      %v2285 = vrot.slane %v2283, 4
      %v2286 = vshll.u32 %v2266, 16
      %v2288 = vrot.slane %v2286, 5
      %v2289 = vor.u32 %v2285, %v2288
      %v2290 = vrot.slane %v2289, 4
      %v2292 = vshll.u32 %v2267, 16
      %v2294 = vrot.slane %v2292, 5
      %v2295 = vsel %vm297, %v2290, %v2294
      %v2297 = vshrl.u32 %v2268, 16
      %v2299 = vrot.slane %v2297, 4
      %v2300 = vshll.u32 %v2268, 16
      %v2302 = vrot.slane %v2300, 5
      %v2303 = vor.u32 %v2299, %v2302
      %v2304 = vrot.slane %v2303, 4
      %v2306 = vshll.u32 %v2269, 16
      %v2308 = vrot.slane %v2306, 5
      %v2309 = vsel %vm297, %v2304, %v2308
      %v2311 = vshrl.u32 %v2270, 16
      %v2313 = vrot.slane %v2311, 4
      %v2314 = vshll.u32 %v2270, 16
      %v2316 = vrot.slane %v2314, 5
      %v2317 = vor.u32 %v2313, %v2316
      %v2318 = vrot.slane %v2317, 4
      %v2320 = vshll.u32 %v2271, 16
      %v2322 = vrot.slane %v2320, 5
      %v2323 = vsel %vm297, %v2318, %v2322
      %v2325 = vshrl.u32 %v2272, 16
      %v2327 = vrot.slane %v2325, 4
      %v2328 = vshll.u32 %v2272, 16
      %v2330 = vrot.slane %v2328, 5
      %v2331 = vor.u32 %v2327, %v2330
      %v2332 = vrot.slane %v2331, 4
      %v2334 = vshll.u32 %v2273, 16
      %v2336 = vrot.slane %v2334, 5
      %v2337 = vsel %vm297, %v2332, %v2336
      %v2339 = vshrl.u32 %v2274, 16
      %v2341 = vrot.slane %v2339, 4
      %v2342 = vshll.u32 %v2274, 16
      %v2344 = vrot.slane %v2342, 5
      %v2345 = vor.u32 %v2341, %v2344
      %v2346 = vrot.slane %v2345, 4
      %v2348 = vshll.u32 %v2275, 16
      %v2350 = vrot.slane %v2348, 5
      %v2351 = vsel %vm297, %v2346, %v2350
      %v2353 = vshrl.u32 %v2276, 16
      %v2355 = vrot.slane %v2353, 4
      %v2356 = vshll.u32 %v2276, 16
      %v2358 = vrot.slane %v2356, 5
      %v2359 = vor.u32 %v2355, %v2358
      %v2360 = vrot.slane %v2359, 4
      %v2362 = vshll.u32 %v2277, 16
      %v2364 = vrot.slane %v2362, 5
      %v2365 = vsel %vm297, %v2360, %v2364
      %v2367 = vshrl.u32 %v2278, 16
      %v2369 = vrot.slane %v2367, 4
      %v2370 = vshll.u32 %v2278, 16
      %v2372 = vrot.slane %v2370, 5
      %v2373 = vor.u32 %v2369, %v2372
      %v2374 = vrot.slane %v2373, 4
      %v2376 = vshll.u32 %v2279, 16
      %v2378 = vrot.slane %v2376, 5
      %v2379 = vsel %vm297, %v2374, %v2378
      %v2381 = vshrl.u32 %v2280, 16
      %v2383 = vrot.slane %v2381, 4
      %v2384 = vshll.u32 %v2280, 16
      %v2386 = vrot.slane %v2384, 5
      %v2387 = vor.u32 %v2383, %v2386
      %v2388 = vrot.slane %v2387, 4
      %v2390 = vshll.u32 %v2281, 16
      %v2392 = vrot.slane %v2390, 5
      %v2393 = vsel %vm297, %v2388, %v2392
      %2402 = vst [vmem:[#allocation2 + $0xc] sm:$0xf] %v2295
      %2403 = vst [vmem:[#allocation2 + $0x1c] sm:$0xf] %v2309
      %2404 = vst [vmem:[#allocation2 + $0x2c] sm:$0xf] %v2323
      %2405 = vst [vmem:[#allocation2 + $0x3c] sm:$0xf] %v2337
      %2406 = vst [vmem:[#allocation2 + $0x4c] sm:$0xf] %v2351
      %2407 = vst [vmem:[#allocation2 + $0x5c] sm:$0xf] %v2365
      %2408 = vst [vmem:[#allocation2 + $0x6c] sm:$0xf] %v2379
      %2409 = vst [vmem:[#allocation2 + $0x7c] sm:$0xf] %v2393
      %v2410 = vld [vmem:[#allocation2] sm:$0xff]
      %v2411 = vld [vmem:[#allocation2 + $0x8] sm:$0xff]
      %v2412 = vld [vmem:[#allocation2 + $0x10] sm:$0xff]
      %v2413 = vld [vmem:[#allocation2 + $0x18] sm:$0xff]
      %v2414 = vld [vmem:[#allocation2 + $0x20] sm:$0xff]
      %v2415 = vld [vmem:[#allocation2 + $0x28] sm:$0xff]
      %v2416 = vld [vmem:[#allocation2 + $0x30] sm:$0xff]
      %v2417 = vld [vmem:[#allocation2 + $0x38] sm:$0xff]
      %v2418 = vld [vmem:[#allocation2 + $0x40] sm:$0xff]
      %v2419 = vld [vmem:[#allocation2 + $0x48] sm:$0xff]
      %v2420 = vld [vmem:[#allocation2 + $0x50] sm:$0xff]
      %v2421 = vld [vmem:[#allocation2 + $0x58] sm:$0xff]
      %v2422 = vld [vmem:[#allocation2 + $0x60] sm:$0xff]
      %v2423 = vld [vmem:[#allocation2 + $0x68] sm:$0xff]
      %v2424 = vld [vmem:[#allocation2 + $0x70] sm:$0xff]
      %v2425 = vld [vmem:[#allocation2 + $0x78] sm:$0xff]
      %s2426 = scalar_lea.vmem %s248, 512
      %v2427 = vld [vmem:[%s2426] sm:$0xf]
      %v2428 = vld [vmem:[%s2426 + $0x4] sm:$0xf]
      %v2429 = vld [vmem:[%s2426 + $0x8] sm:$0xf]
      %v2430 = vld [vmem:[%s2426 + $0xc] sm:$0xf]
      %v2431 = vld [vmem:[%s2426 + $0x10] sm:$0xf]
      %v2432 = vld [vmem:[%s2426 + $0x14] sm:$0xf]
      %v2433 = vld [vmem:[%s2426 + $0x18] sm:$0xf]
      %v2434 = vld [vmem:[%s2426 + $0x1c] sm:$0xf]
      %v2435 = vld [vmem:[%s2426 + $0x20] sm:$0xf]
      %v2436 = vld [vmem:[%s2426 + $0x24] sm:$0xf]
      %v2437 = vld [vmem:[%s2426 + $0x28] sm:$0xf]
      %v2438 = vld [vmem:[%s2426 + $0x2c] sm:$0xf]
      %v2439 = vld [vmem:[%s2426 + $0x30] sm:$0xf]
      %v2440 = vld [vmem:[%s2426 + $0x34] sm:$0xf]
      %v2441 = vld [vmem:[%s2426 + $0x38] sm:$0xf]
      %v2442 = vld [vmem:[%s2426 + $0x3c] sm:$0xf]
      %v2443 = vld [vmem:[%s2426 + $0x40] sm:$0xf]
      %v2444 = vld [vmem:[%s2426 + $0x44] sm:$0xf]
      %v2445 = vld [vmem:[%s2426 + $0x48] sm:$0xf]
      %v2446 = vld [vmem:[%s2426 + $0x4c] sm:$0xf]
      %v2447 = vld [vmem:[%s2426 + $0x50] sm:$0xf]
      %v2448 = vld [vmem:[%s2426 + $0x54] sm:$0xf]
      %v2449 = vld [vmem:[%s2426 + $0x58] sm:$0xf]
      %v2450 = vld [vmem:[%s2426 + $0x5c] sm:$0xf]
      %v2451 = vld [vmem:[%s2426 + $0x60] sm:$0xf]
      %v2452 = vld [vmem:[%s2426 + $0x64] sm:$0xf]
      %v2453 = vld [vmem:[%s2426 + $0x68] sm:$0xf]
      %v2454 = vld [vmem:[%s2426 + $0x6c] sm:$0xf]
      %v2455 = vld [vmem:[%s2426 + $0x70] sm:$0xf]
      %v2456 = vld [vmem:[%s2426 + $0x74] sm:$0xf]
      %v2457 = vld [vmem:[%s2426 + $0x78] sm:$0xf]
      %v2458 = vld [vmem:[%s2426 + $0x7c] sm:$0xf]
      %v2459 = vld [vmem:[%s2426 + $0x80] sm:$0xf]
      %v2460 = vld [vmem:[%s2426 + $0x84] sm:$0xf]
      %v2461 = vld [vmem:[%s2426 + $0x88] sm:$0xf]
      %v2462 = vld [vmem:[%s2426 + $0x8c] sm:$0xf]
      %v2463 = vld [vmem:[%s2426 + $0x90] sm:$0xf]
      %v2464 = vld [vmem:[%s2426 + $0x94] sm:$0xf]
      %v2465 = vld [vmem:[%s2426 + $0x98] sm:$0xf]
      %v2466 = vld [vmem:[%s2426 + $0x9c] sm:$0xf]
      %v2467 = vld [vmem:[%s2426 + $0xa0] sm:$0xf]
      %v2468 = vld [vmem:[%s2426 + $0xa4] sm:$0xf]
      %v2469 = vld [vmem:[%s2426 + $0xa8] sm:$0xf]
      %v2470 = vld [vmem:[%s2426 + $0xac] sm:$0xf]
      %v2471 = vld [vmem:[%s2426 + $0xb0] sm:$0xf]
      %v2472 = vld [vmem:[%s2426 + $0xb4] sm:$0xf]
      %v2473 = vld [vmem:[%s2426 + $0xb8] sm:$0xf]
      %v2474 = vld [vmem:[%s2426 + $0xbc] sm:$0xf]
      %v2475 = vld [vmem:[%s2426 + $0xc0] sm:$0xf]
      %v2476 = vld [vmem:[%s2426 + $0xc4] sm:$0xf]
      %v2477 = vld [vmem:[%s2426 + $0xc8] sm:$0xf]
      %v2478 = vld [vmem:[%s2426 + $0xcc] sm:$0xf]
      %v2479 = vld [vmem:[%s2426 + $0xd0] sm:$0xf]
      %v2480 = vld [vmem:[%s2426 + $0xd4] sm:$0xf]
      %v2481 = vld [vmem:[%s2426 + $0xd8] sm:$0xf]
      %v2482 = vld [vmem:[%s2426 + $0xdc] sm:$0xf]
      %v2483 = vld [vmem:[%s2426 + $0xe0] sm:$0xf]
      %v2484 = vld [vmem:[%s2426 + $0xe4] sm:$0xf]
      %v2485 = vld [vmem:[%s2426 + $0xe8] sm:$0xf]
      %v2486 = vld [vmem:[%s2426 + $0xec] sm:$0xf]
      %v2487 = vld [vmem:[%s2426 + $0xf0] sm:$0xf]
      %v2488 = vld [vmem:[%s2426 + $0xf4] sm:$0xf]
      %v2489 = vld [vmem:[%s2426 + $0xf8] sm:$0xf]
      %v2490 = vld [vmem:[%s2426 + $0xfc] sm:$0xf]
      %v2507 = vunpack.c.l.b16 %v2410
      %v2508 = vunpack.c.h.b16 %v2410
      %v2509 = vunpack.c.l.b16 %v2411
      %v2510 = vunpack.c.h.b16 %v2411
      %v2511 = vunpack.c.l.b16 %v2412
      %v2512 = vunpack.c.h.b16 %v2412
      %v2513 = vunpack.c.l.b16 %v2413
      %v2514 = vunpack.c.h.b16 %v2413
      %v2515 = vunpack.c.l.b16 %v2414
      %v2516 = vunpack.c.h.b16 %v2414
      %v2517 = vunpack.c.l.b16 %v2415
      %v2518 = vunpack.c.h.b16 %v2415
      %v2519 = vunpack.c.l.b16 %v2416
      %v2520 = vunpack.c.h.b16 %v2416
      %v2521 = vunpack.c.l.b16 %v2417
      %v2522 = vunpack.c.h.b16 %v2417
      %v2523 = vunpack.c.l.b16 %v2418
      %v2524 = vunpack.c.h.b16 %v2418
      %v2525 = vunpack.c.l.b16 %v2419
      %v2526 = vunpack.c.h.b16 %v2419
      %v2527 = vunpack.c.l.b16 %v2420
      %v2528 = vunpack.c.h.b16 %v2420
      %v2529 = vunpack.c.l.b16 %v2421
      %v2530 = vunpack.c.h.b16 %v2421
      %v2531 = vunpack.c.l.b16 %v2422
      %v2532 = vunpack.c.h.b16 %v2422
      %v2533 = vunpack.c.l.b16 %v2423
      %v2534 = vunpack.c.h.b16 %v2423
      %v2535 = vunpack.c.l.b16 %v2424
      %v2536 = vunpack.c.h.b16 %v2424
      %v2537 = vunpack.c.l.b16 %v2425
      %v2538 = vunpack.c.h.b16 %v2425
      %v2539 = vpack.c.b16 %v2511, %v2507
      %v2540 = vpack.c.b16 %v2512, %v2508
      %v2541 = vpack.c.b16 %v2513, %v2509
      %v2542 = vpack.c.b16 %v2514, %v2510
      %v2543 = vpack.c.b16 %v2519, %v2515
      %v2544 = vpack.c.b16 %v2520, %v2516
      %v2545 = vpack.c.b16 %v2521, %v2517
      %v2546 = vpack.c.b16 %v2522, %v2518
      %v2547 = vpack.c.b16 %v2527, %v2523
      %v2548 = vpack.c.b16 %v2528, %v2524
      %v2549 = vpack.c.b16 %v2529, %v2525
      %v2550 = vpack.c.b16 %v2530, %v2526
      %v2551 = vpack.c.b16 %v2535, %v2531
      %v2552 = vpack.c.b16 %v2536, %v2532
      %v2553 = vpack.c.b16 %v2537, %v2533
      %v2554 = vpack.c.b16 %v2538, %v2534
      %v2635 = vunpack.c.l.b16 %v2427
      %v2636 = vunpack.c.l.b16 %v2428
      %v2637 = vunpack.c.l.b16 %v2429
      %v2638 = vunpack.c.l.b16 %v2430
      %v2639 = vunpack.c.l.b16 %v2431
      %v2640 = vunpack.c.l.b16 %v2432
      %v2641 = vunpack.c.l.b16 %v2433
      %v2642 = vunpack.c.l.b16 %v2434
      %v2643 = vunpack.c.l.b16 %v2435
      %v2644 = vunpack.c.l.b16 %v2436
      %v2645 = vunpack.c.l.b16 %v2437
      %v2646 = vunpack.c.l.b16 %v2438
      %v2647 = vunpack.c.l.b16 %v2439
      %v2648 = vunpack.c.l.b16 %v2440
      %v2649 = vunpack.c.l.b16 %v2441
      %v2650 = vunpack.c.l.b16 %v2442
      %v2651 = vunpack.c.l.b16 %v2443
      %v2652 = vunpack.c.l.b16 %v2444
      %v2653 = vunpack.c.l.b16 %v2445
      %v2654 = vunpack.c.l.b16 %v2446
      %v2655 = vunpack.c.l.b16 %v2447
      %v2656 = vunpack.c.l.b16 %v2448
      %v2657 = vunpack.c.l.b16 %v2449
      %v2658 = vunpack.c.l.b16 %v2450
      %v2659 = vunpack.c.l.b16 %v2451
      %v2660 = vunpack.c.l.b16 %v2452
      %v2661 = vunpack.c.l.b16 %v2453
      %v2662 = vunpack.c.l.b16 %v2454
      %v2663 = vunpack.c.l.b16 %v2455
      %v2664 = vunpack.c.l.b16 %v2456
      %v2665 = vunpack.c.l.b16 %v2457
      %v2666 = vunpack.c.l.b16 %v2458
      %v2667 = vunpack.c.l.b16 %v2459
      %v2668 = vunpack.c.l.b16 %v2460
      %v2669 = vunpack.c.l.b16 %v2461
      %v2670 = vunpack.c.l.b16 %v2462
      %v2671 = vunpack.c.l.b16 %v2463
      %v2672 = vunpack.c.l.b16 %v2464
      %v2673 = vunpack.c.l.b16 %v2465
      %v2674 = vunpack.c.l.b16 %v2466
      %v2675 = vunpack.c.l.b16 %v2467
      %v2676 = vunpack.c.l.b16 %v2468
      %v2677 = vunpack.c.l.b16 %v2469
      %v2678 = vunpack.c.l.b16 %v2470
      %v2679 = vunpack.c.l.b16 %v2471
      %v2680 = vunpack.c.l.b16 %v2472
      %v2681 = vunpack.c.l.b16 %v2473
      %v2682 = vunpack.c.l.b16 %v2474
      %v2683 = vunpack.c.l.b16 %v2475
      %v2684 = vunpack.c.l.b16 %v2476
      %v2685 = vunpack.c.l.b16 %v2477
      %v2686 = vunpack.c.l.b16 %v2478
      %v2687 = vunpack.c.l.b16 %v2479
      %v2688 = vunpack.c.l.b16 %v2480
      %v2689 = vunpack.c.l.b16 %v2481
      %v2690 = vunpack.c.l.b16 %v2482
      %v2691 = vunpack.c.l.b16 %v2483
      %v2692 = vunpack.c.l.b16 %v2484
      %v2693 = vunpack.c.l.b16 %v2485
      %v2694 = vunpack.c.l.b16 %v2486
      %v2695 = vunpack.c.l.b16 %v2487
      %v2696 = vunpack.c.l.b16 %v2488
      %v2697 = vunpack.c.l.b16 %v2489
      %v2698 = vunpack.c.l.b16 %v2490
      %v2699 = vpack.c.b16 %v2636, %v2635
      %v2700 = vpack.c.b16 %v2638, %v2637
      %v2701 = vpack.c.b16 %v2640, %v2639
      %v2702 = vpack.c.b16 %v2642, %v2641
      %v2703 = vpack.c.b16 %v2644, %v2643
      %v2704 = vpack.c.b16 %v2646, %v2645
      %v2705 = vpack.c.b16 %v2648, %v2647
      %v2706 = vpack.c.b16 %v2650, %v2649
      %v2707 = vpack.c.b16 %v2652, %v2651
      %v2708 = vpack.c.b16 %v2654, %v2653
      %v2709 = vpack.c.b16 %v2656, %v2655
      %v2710 = vpack.c.b16 %v2658, %v2657
      %v2711 = vpack.c.b16 %v2660, %v2659
      %v2712 = vpack.c.b16 %v2662, %v2661
      %v2713 = vpack.c.b16 %v2664, %v2663
      %v2714 = vpack.c.b16 %v2666, %v2665
      %v2715 = vpack.c.b16 %v2668, %v2667
      %v2716 = vpack.c.b16 %v2670, %v2669
      %v2717 = vpack.c.b16 %v2672, %v2671
      %v2718 = vpack.c.b16 %v2674, %v2673
      %v2719 = vpack.c.b16 %v2676, %v2675
      %v2720 = vpack.c.b16 %v2678, %v2677
      %v2721 = vpack.c.b16 %v2680, %v2679
      %v2722 = vpack.c.b16 %v2682, %v2681
      %v2723 = vpack.c.b16 %v2684, %v2683
      %v2724 = vpack.c.b16 %v2686, %v2685
      %v2725 = vpack.c.b16 %v2688, %v2687
      %v2726 = vpack.c.b16 %v2690, %v2689
      %v2727 = vpack.c.b16 %v2692, %v2691
      %v2728 = vpack.c.b16 %v2694, %v2693
      %v2729 = vpack.c.b16 %v2696, %v2695
      %v2730 = vpack.c.b16 %v2698, %v2697
      %2763 = vmatpush.bf16.msra.mxu0 %v2706
      %2764 = vmatpush.bf16.msra.mxu0 %v2705
      %2765 = vmatpush.bf16.msra.mxu0 %v2704
      %2766 = vmatpush.bf16.msra.mxu0 %v2703
      %2767 = vmatpush.bf16.msra.mxu0 %v2702
      %2768 = vmatpush.bf16.msra.mxu0 %v2701
      %2769 = vmatpush.bf16.msra.mxu0 %v2700
      %2770 = vmatpush.bf16.msra.mxu0 %v2699
      %2771 = vmatmul.bf16.gmra.mxu0 %v2539
      %v2772 = vpop.f32.mrf.mxu0
      %v2773 = vadd.f32 0.0, %v2772
      %v2774 = vpop.f32.mrf.mxu0
      %v2775 = vadd.f32 0.0, %v2774
      %2776 = vmatmul.bf16.gmra.mxu0 %v2543
      %v2777 = vpop.f32.mrf.mxu0
      %v2778 = vadd.f32 0.0, %v2777
      %v2779 = vpop.f32.mrf.mxu0
      %v2780 = vadd.f32 0.0, %v2779
      %2781 = vmatmul.bf16.gmra.mxu0 %v2547
      %v2782 = vpop.f32.mrf.mxu0
      %v2783 = vadd.f32 0.0, %v2782
      %v2784 = vpop.f32.mrf.mxu0
      %v2785 = vadd.f32 0.0, %v2784
      %2786 = vmatmul.bf16.gmra.mxu0 %v2551
      %v2787 = vpop.f32.mrf.mxu0
      %v2788 = vadd.f32 0.0, %v2787
      %v2789 = vpop.f32.mrf.mxu0
      %v2790 = vadd.f32 0.0, %v2789
      %2791 = vdwg.mxu0
      %2792 = vmatpush.bf16.msra.mxu0 %v2714
      %2793 = vmatpush.bf16.msra.mxu0 %v2713
      %2794 = vmatpush.bf16.msra.mxu0 %v2712
      %2795 = vmatpush.bf16.msra.mxu0 %v2711
      %2796 = vmatpush.bf16.msra.mxu0 %v2710
      %2797 = vmatpush.bf16.msra.mxu0 %v2709
      %2798 = vmatpush.bf16.msra.mxu0 %v2708
      %2799 = vmatpush.bf16.msra.mxu0 %v2707
      %2800 = vmatmul.bf16.gmra.mxu0 %v2540
      %v2801 = vpop.f32.mrf.mxu0
      %v2802 = vadd.f32 %v2773, %v2801
      %v2803 = vpop.f32.mrf.mxu0
      %v2804 = vadd.f32 %v2775, %v2803
      %2805 = vmatmul.bf16.gmra.mxu0 %v2544
      %v2806 = vpop.f32.mrf.mxu0
      %v2807 = vadd.f32 %v2778, %v2806
      %v2808 = vpop.f32.mrf.mxu0
      %v2809 = vadd.f32 %v2780, %v2808
      %2810 = vmatmul.bf16.gmra.mxu0 %v2548
      %v2811 = vpop.f32.mrf.mxu0
      %v2812 = vadd.f32 %v2783, %v2811
      %v2813 = vpop.f32.mrf.mxu0
      %v2814 = vadd.f32 %v2785, %v2813
      %2815 = vmatmul.bf16.gmra.mxu0 %v2552
      %v2816 = vpop.f32.mrf.mxu0
      %v2817 = vadd.f32 %v2788, %v2816
      %v2818 = vpop.f32.mrf.mxu0
      %v2819 = vadd.f32 %v2790, %v2818
      %2820 = vdwg.mxu0
      %2821 = vmatpush.bf16.msra.mxu0 %v2722
      %2822 = vmatpush.bf16.msra.mxu0 %v2721
      %2823 = vmatpush.bf16.msra.mxu0 %v2720
      %2824 = vmatpush.bf16.msra.mxu0 %v2719
      %2825 = vmatpush.bf16.msra.mxu0 %v2718
      %2826 = vmatpush.bf16.msra.mxu0 %v2717
      %2827 = vmatpush.bf16.msra.mxu0 %v2716
      %2828 = vmatpush.bf16.msra.mxu0 %v2715
      %2829 = vmatmul.bf16.gmra.mxu0 %v2541
      %v2830 = vpop.f32.mrf.mxu0
      %v2831 = vadd.f32 %v2802, %v2830
      %v2832 = vpop.f32.mrf.mxu0
      %v2833 = vadd.f32 %v2804, %v2832
      %2834 = vmatmul.bf16.gmra.mxu0 %v2545
      %v2835 = vpop.f32.mrf.mxu0
      %v2836 = vadd.f32 %v2807, %v2835
      %v2837 = vpop.f32.mrf.mxu0
      %v2838 = vadd.f32 %v2809, %v2837
      %2839 = vmatmul.bf16.gmra.mxu0 %v2549
      %v2840 = vpop.f32.mrf.mxu0
      %v2841 = vadd.f32 %v2812, %v2840
      %v2842 = vpop.f32.mrf.mxu0
      %v2843 = vadd.f32 %v2814, %v2842
      %2844 = vmatmul.bf16.gmra.mxu0 %v2553
      %v2845 = vpop.f32.mrf.mxu0
      %v2846 = vadd.f32 %v2817, %v2845
      %v2847 = vpop.f32.mrf.mxu0
      %v2848 = vadd.f32 %v2819, %v2847
      %2849 = vdwg.mxu0
      %2850 = vmatpush.bf16.msra.mxu0 %v2730
      %2851 = vmatpush.bf16.msra.mxu0 %v2729
      %2852 = vmatpush.bf16.msra.mxu0 %v2728
      %2853 = vmatpush.bf16.msra.mxu0 %v2727
      %2854 = vmatpush.bf16.msra.mxu0 %v2726
      %2855 = vmatpush.bf16.msra.mxu0 %v2725
      %2856 = vmatpush.bf16.msra.mxu0 %v2724
      %2857 = vmatpush.bf16.msra.mxu0 %v2723
      %2858 = vmatmul.bf16.gmra.mxu0 %v2542
      %v2859 = vpop.f32.mrf.mxu0
      %v2860 = vadd.f32 %v2831, %v2859
      %v2861 = vpop.f32.mrf.mxu0
      %v2862 = vadd.f32 %v2833, %v2861
      %2863 = vmatmul.bf16.gmra.mxu0 %v2546
      %v2864 = vpop.f32.mrf.mxu0
      %v2865 = vadd.f32 %v2836, %v2864
      %v2866 = vpop.f32.mrf.mxu0
      %v2867 = vadd.f32 %v2838, %v2866
      %2868 = vmatmul.bf16.gmra.mxu0 %v2550
      %v2869 = vpop.f32.mrf.mxu0
      %v2870 = vadd.f32 %v2841, %v2869
      %v2871 = vpop.f32.mrf.mxu0
      %v2872 = vadd.f32 %v2843, %v2871
      %2873 = vmatmul.bf16.gmra.mxu0 %v2554
      %v2874 = vpop.f32.mrf.mxu0
      %v2875 = vadd.f32 %v2846, %v2874
      %v2876 = vpop.f32.mrf.mxu0
      %v2877 = vadd.f32 %v2848, %v2876
      %2878 = vdwg.mxu0
      %v2879 = vld [vmem:[%s251] sm:$0x1]
      %v2881 = vperm.slane %v2879, 0
      %v2883 = vmul.f32 %v2860, %v2881
      %v2884 = vmul.f32 %v2862, %v2881
      %v2885 = vmul.f32 %v2865, %v2881
      %v2886 = vmul.f32 %v2867, %v2881
      %v2887 = vmul.f32 %v2870, %v2881
      %v2888 = vmul.f32 %v2872, %v2881
      %v2889 = vmul.f32 %v2875, %v2881
      %v2890 = vmul.f32 %v2877, %v2881
      %v2891 = vld [vmem:[%s254] sm:$0x1]
      %v2893 = vperm.slane %v2891, 0
      %v2895 = vadd.f32 %v2883, %v2893
      %v2896 = vadd.f32 %v2884, %v2893
      %v2897 = vadd.f32 %v2885, %v2893
      %v2898 = vadd.f32 %v2886, %v2893
      %v2899 = vadd.f32 %v2887, %v2893
      %v2900 = vadd.f32 %v2888, %v2893
      %v2901 = vadd.f32 %v2889, %v2893
      %v2902 = vadd.f32 %v2890, %v2893
      %vm2903 = vcmp.gt.f32.partialorder %v2895, 0.0
      %vm2904 = vcmp.gt.f32.partialorder %v2896, 0.0
      %vm2905 = vcmp.gt.f32.partialorder %v2897, 0.0
      %vm2906 = vcmp.gt.f32.partialorder %v2898, 0.0
      %vm2907 = vcmp.gt.f32.partialorder %v2899, 0.0
      %vm2908 = vcmp.gt.f32.partialorder %v2900, 0.0
      %vm2909 = vcmp.gt.f32.partialorder %v2901, 0.0
      %vm2910 = vcmp.gt.f32.partialorder %v2902, 0.0
      %v2911 = vmul.f32 %v2895, 0.01
      %v2912 = vmul.f32 %v2896, 0.01
      %v2913 = vmul.f32 %v2897, 0.01
      %v2914 = vmul.f32 %v2898, 0.01
      %v2915 = vmul.f32 %v2899, 0.01
      %v2916 = vmul.f32 %v2900, 0.01
      %v2917 = vmul.f32 %v2901, 0.01
      %v2918 = vmul.f32 %v2902, 0.01
      %v2919 = vsel %vm2903, %v2895, %v2911
      %v2920 = vsel %vm2904, %v2896, %v2912
      %v2921 = vsel %vm2905, %v2897, %v2913
      %v2922 = vsel %vm2906, %v2898, %v2914
      %v2923 = vsel %vm2907, %v2899, %v2915
      %v2924 = vsel %vm2908, %v2900, %v2916
      %v2925 = vsel %vm2909, %v2901, %v2917
      %v2926 = vsel %vm2910, %v2902, %v2918
      %s2927 = scalar_lea.vmem %s262, 128
      %2928 = vst.msk [vmem:[%s2927] sm:$0xff] %vm1103, %v2919
      %2929 = vst.msk [vmem:[%s2927 + $0x8] sm:$0xff] %vm1103, %v2920
      %2930 = vst.msk [vmem:[%s2927 + $0x10] sm:$0xff] %vm1103, %v2921
      %2931 = vst.msk [vmem:[%s2927 + $0x18] sm:$0xff] %vm1103, %v2922
      %2932 = vst.msk [vmem:[%s2927 + $0x20] sm:$0xff] %vm1103, %v2923
      %2933 = vst.msk [vmem:[%s2927 + $0x28] sm:$0xff] %vm1103, %v2924
      %2934 = vst.msk [vmem:[%s2927 + $0x30] sm:$0xff] %vm1103, %v2925
      %2935 = vst.msk [vmem:[%s2927 + $0x38] sm:$0xff] %vm1103, %v2926
      %v2936 = vld [vmem:[%s426] sm:$0xf]
      %v2937 = vld [vmem:[%s426 + $0x4] sm:$0x1]
      %v2938 = vld [vmem:[%s426 + $0x8] sm:$0xf]
      %v2939 = vld [vmem:[%s426 + $0xc] sm:$0x1]
      %v2940 = vld [vmem:[%s426 + $0x10] sm:$0xf]
      %v2941 = vld [vmem:[%s426 + $0x14] sm:$0x1]
      %v2942 = vld [vmem:[%s426 + $0x18] sm:$0xf]
      %v2943 = vld [vmem:[%s426 + $0x1c] sm:$0x1]
      %v2944 = vld [vmem:[%s426 + $0x20] sm:$0xf]
      %v2945 = vld [vmem:[%s426 + $0x24] sm:$0x1]
      %v2946 = vld [vmem:[%s426 + $0x28] sm:$0xf]
      %v2947 = vld [vmem:[%s426 + $0x2c] sm:$0x1]
      %v2948 = vld [vmem:[%s426 + $0x30] sm:$0xf]
      %v2949 = vld [vmem:[%s426 + $0x34] sm:$0x1]
      %v2950 = vld [vmem:[%s426 + $0x38] sm:$0xf]
      %v2951 = vld [vmem:[%s426 + $0x3c] sm:$0x1]
      %v2953 = vshrl.u32 %v2936, 16
      %v2955 = vrot.slane %v2953, 4
      %v2956 = vshll.u32 %v2936, 16
      %v2958 = vrot.slane %v2956, 5
      %v2959 = vor.u32 %v2955, %v2958
      %v2960 = vrot.slane %v2959, 4
      %v2962 = vshll.u32 %v2937, 16
      %v2964 = vrot.slane %v2962, 5
      %v2965 = vsel %vm297, %v2960, %v2964
      %v2967 = vshrl.u32 %v2938, 16
      %v2969 = vrot.slane %v2967, 4
      %v2970 = vshll.u32 %v2938, 16
      %v2972 = vrot.slane %v2970, 5
      %v2973 = vor.u32 %v2969, %v2972
      %v2974 = vrot.slane %v2973, 4
      %v2976 = vshll.u32 %v2939, 16
      %v2978 = vrot.slane %v2976, 5
      %v2979 = vsel %vm297, %v2974, %v2978
      %v2981 = vshrl.u32 %v2940, 16
      %v2983 = vrot.slane %v2981, 4
      %v2984 = vshll.u32 %v2940, 16
      %v2986 = vrot.slane %v2984, 5
      %v2987 = vor.u32 %v2983, %v2986
      %v2988 = vrot.slane %v2987, 4
      %v2990 = vshll.u32 %v2941, 16
      %v2992 = vrot.slane %v2990, 5
      %v2993 = vsel %vm297, %v2988, %v2992
      %v2995 = vshrl.u32 %v2942, 16
      %v2997 = vrot.slane %v2995, 4
      %v2998 = vshll.u32 %v2942, 16
      %v3000 = vrot.slane %v2998, 5
      %v3001 = vor.u32 %v2997, %v3000
      %v3002 = vrot.slane %v3001, 4
      %v3004 = vshll.u32 %v2943, 16
      %v3006 = vrot.slane %v3004, 5
      %v3007 = vsel %vm297, %v3002, %v3006
      %v3009 = vshrl.u32 %v2944, 16
      %v3011 = vrot.slane %v3009, 4
      %v3012 = vshll.u32 %v2944, 16
      %v3014 = vrot.slane %v3012, 5
      %v3015 = vor.u32 %v3011, %v3014
      %v3016 = vrot.slane %v3015, 4
      %v3018 = vshll.u32 %v2945, 16
      %v3020 = vrot.slane %v3018, 5
      %v3021 = vsel %vm297, %v3016, %v3020
      %v3023 = vshrl.u32 %v2946, 16
      %v3025 = vrot.slane %v3023, 4
      %v3026 = vshll.u32 %v2946, 16
      %v3028 = vrot.slane %v3026, 5
      %v3029 = vor.u32 %v3025, %v3028
      %v3030 = vrot.slane %v3029, 4
      %v3032 = vshll.u32 %v2947, 16
      %v3034 = vrot.slane %v3032, 5
      %v3035 = vsel %vm297, %v3030, %v3034
      %v3037 = vshrl.u32 %v2948, 16
      %v3039 = vrot.slane %v3037, 4
      %v3040 = vshll.u32 %v2948, 16
      %v3042 = vrot.slane %v3040, 5
      %v3043 = vor.u32 %v3039, %v3042
      %v3044 = vrot.slane %v3043, 4
      %v3046 = vshll.u32 %v2949, 16
      %v3048 = vrot.slane %v3046, 5
      %v3049 = vsel %vm297, %v3044, %v3048
      %v3051 = vshrl.u32 %v2950, 16
      %v3053 = vrot.slane %v3051, 4
      %v3054 = vshll.u32 %v2950, 16
      %v3056 = vrot.slane %v3054, 5
      %v3057 = vor.u32 %v3053, %v3056
      %v3058 = vrot.slane %v3057, 4
      %v3060 = vshll.u32 %v2951, 16
      %v3062 = vrot.slane %v3060, 5
      %v3063 = vsel %vm297, %v3058, %v3062
      %3072 = vst [vmem:[#allocation2] sm:$0xf] %v2965
      %3073 = vst [vmem:[#allocation2 + $0x10] sm:$0xf] %v2979
      %3074 = vst [vmem:[#allocation2 + $0x20] sm:$0xf] %v2993
      %3075 = vst [vmem:[#allocation2 + $0x30] sm:$0xf] %v3007
      %3076 = vst [vmem:[#allocation2 + $0x40] sm:$0xf] %v3021
      %3077 = vst [vmem:[#allocation2 + $0x50] sm:$0xf] %v3035
      %3078 = vst [vmem:[#allocation2 + $0x60] sm:$0xf] %v3049
      %3079 = vst [vmem:[#allocation2 + $0x70] sm:$0xf] %v3063
      %v3080 = vld [vmem:[%s426] sm:$0xe]
      %v3081 = vld [vmem:[%s426 + $0x4] sm:$0x1]
      %v3082 = vld [vmem:[%s426 + $0x8] sm:$0xe]
      %v3083 = vld [vmem:[%s426 + $0xc] sm:$0x1]
      %v3084 = vld [vmem:[%s426 + $0x10] sm:$0xe]
      %v3085 = vld [vmem:[%s426 + $0x14] sm:$0x1]
      %v3086 = vld [vmem:[%s426 + $0x18] sm:$0xe]
      %v3087 = vld [vmem:[%s426 + $0x1c] sm:$0x1]
      %v3088 = vld [vmem:[%s426 + $0x20] sm:$0xe]
      %v3089 = vld [vmem:[%s426 + $0x24] sm:$0x1]
      %v3090 = vld [vmem:[%s426 + $0x28] sm:$0xe]
      %v3091 = vld [vmem:[%s426 + $0x2c] sm:$0x1]
      %v3092 = vld [vmem:[%s426 + $0x30] sm:$0xe]
      %v3093 = vld [vmem:[%s426 + $0x34] sm:$0x1]
      %v3094 = vld [vmem:[%s426 + $0x38] sm:$0xe]
      %v3095 = vld [vmem:[%s426 + $0x3c] sm:$0x1]
      %v3112 = vrot.slane %v3080, 5
      %v3113 = vrot.slane %v3112, 4
      %v3114 = vrot.slane %v3081, 5
      %v3115 = vsel %vm1290, %v3113, %v3114
      %v3116 = vrot.slane %v3082, 5
      %v3117 = vrot.slane %v3116, 4
      %v3118 = vrot.slane %v3083, 5
      %v3119 = vsel %vm1290, %v3117, %v3118
      %v3120 = vrot.slane %v3084, 5
      %v3121 = vrot.slane %v3120, 4
      %v3122 = vrot.slane %v3085, 5
      %v3123 = vsel %vm1290, %v3121, %v3122
      %v3124 = vrot.slane %v3086, 5
      %v3125 = vrot.slane %v3124, 4
      %v3126 = vrot.slane %v3087, 5
      %v3127 = vsel %vm1290, %v3125, %v3126
      %v3128 = vrot.slane %v3088, 5
      %v3129 = vrot.slane %v3128, 4
      %v3130 = vrot.slane %v3089, 5
      %v3131 = vsel %vm1290, %v3129, %v3130
      %v3132 = vrot.slane %v3090, 5
      %v3133 = vrot.slane %v3132, 4
      %v3134 = vrot.slane %v3091, 5
      %v3135 = vsel %vm1290, %v3133, %v3134
      %v3136 = vrot.slane %v3092, 5
      %v3137 = vrot.slane %v3136, 4
      %v3138 = vrot.slane %v3093, 5
      %v3139 = vsel %vm1290, %v3137, %v3138
      %v3140 = vrot.slane %v3094, 5
      %v3141 = vrot.slane %v3140, 4
      %v3142 = vrot.slane %v3095, 5
      %v3143 = vsel %vm1290, %v3141, %v3142
      %3152 = vst [vmem:[#allocation2 + $0x4] sm:$0xf] %v3115
      %3153 = vst [vmem:[#allocation2 + $0x14] sm:$0xf] %v3119
      %3154 = vst [vmem:[#allocation2 + $0x24] sm:$0xf] %v3123
      %3155 = vst [vmem:[#allocation2 + $0x34] sm:$0xf] %v3127
      %3156 = vst [vmem:[#allocation2 + $0x44] sm:$0xf] %v3131
      %3157 = vst [vmem:[#allocation2 + $0x54] sm:$0xf] %v3135
      %3158 = vst [vmem:[#allocation2 + $0x64] sm:$0xf] %v3139
      %3159 = vst [vmem:[#allocation2 + $0x74] sm:$0xf] %v3143
      %v3160 = vld [vmem:[%s2249] sm:$0xf]
      %v3161 = vld [vmem:[%s2249 + $0x4] sm:$0x1]
      %v3162 = vld [vmem:[%s2249 + $0x8] sm:$0xf]
      %v3163 = vld [vmem:[%s2249 + $0xc] sm:$0x1]
      %v3164 = vld [vmem:[%s2249 + $0x10] sm:$0xf]
      %v3165 = vld [vmem:[%s2249 + $0x14] sm:$0x1]
      %v3166 = vld [vmem:[%s2249 + $0x18] sm:$0xf]
      %v3167 = vld [vmem:[%s2249 + $0x1c] sm:$0x1]
      %v3168 = vld [vmem:[%s2249 + $0x20] sm:$0xf]
      %v3169 = vld [vmem:[%s2249 + $0x24] sm:$0x1]
      %v3170 = vld [vmem:[%s2249 + $0x28] sm:$0xf]
      %v3171 = vld [vmem:[%s2249 + $0x2c] sm:$0x1]
      %v3172 = vld [vmem:[%s2249 + $0x30] sm:$0xf]
      %v3173 = vld [vmem:[%s2249 + $0x34] sm:$0x1]
      %v3174 = vld [vmem:[%s2249 + $0x38] sm:$0xf]
      %v3175 = vld [vmem:[%s2249 + $0x3c] sm:$0x1]
      %v3177 = vshrl.u32 %v3160, 16
      %v3179 = vrot.slane %v3177, 4
      %v3180 = vshll.u32 %v3160, 16
      %v3182 = vrot.slane %v3180, 5
      %v3183 = vor.u32 %v3179, %v3182
      %v3184 = vrot.slane %v3183, 4
      %v3186 = vshll.u32 %v3161, 16
      %v3188 = vrot.slane %v3186, 5
      %v3189 = vsel %vm297, %v3184, %v3188
      %v3191 = vshrl.u32 %v3162, 16
      %v3193 = vrot.slane %v3191, 4
      %v3194 = vshll.u32 %v3162, 16
      %v3196 = vrot.slane %v3194, 5
      %v3197 = vor.u32 %v3193, %v3196
      %v3198 = vrot.slane %v3197, 4
      %v3200 = vshll.u32 %v3163, 16
      %v3202 = vrot.slane %v3200, 5
      %v3203 = vsel %vm297, %v3198, %v3202
      %v3205 = vshrl.u32 %v3164, 16
      %v3207 = vrot.slane %v3205, 4
      %v3208 = vshll.u32 %v3164, 16
      %v3210 = vrot.slane %v3208, 5
      %v3211 = vor.u32 %v3207, %v3210
      %v3212 = vrot.slane %v3211, 4
      %v3214 = vshll.u32 %v3165, 16
      %v3216 = vrot.slane %v3214, 5
      %v3217 = vsel %vm297, %v3212, %v3216
      %v3219 = vshrl.u32 %v3166, 16
      %v3221 = vrot.slane %v3219, 4
      %v3222 = vshll.u32 %v3166, 16
      %v3224 = vrot.slane %v3222, 5
      %v3225 = vor.u32 %v3221, %v3224
      %v3226 = vrot.slane %v3225, 4
      %v3228 = vshll.u32 %v3167, 16
      %v3230 = vrot.slane %v3228, 5
      %v3231 = vsel %vm297, %v3226, %v3230
      %v3233 = vshrl.u32 %v3168, 16
      %v3235 = vrot.slane %v3233, 4
      %v3236 = vshll.u32 %v3168, 16
      %v3238 = vrot.slane %v3236, 5
      %v3239 = vor.u32 %v3235, %v3238
      %v3240 = vrot.slane %v3239, 4
      %v3242 = vshll.u32 %v3169, 16
      %v3244 = vrot.slane %v3242, 5
      %v3245 = vsel %vm297, %v3240, %v3244
      %v3247 = vshrl.u32 %v3170, 16
      %v3249 = vrot.slane %v3247, 4
      %v3250 = vshll.u32 %v3170, 16
      %v3252 = vrot.slane %v3250, 5
      %v3253 = vor.u32 %v3249, %v3252
      %v3254 = vrot.slane %v3253, 4
      %v3256 = vshll.u32 %v3171, 16
      %v3258 = vrot.slane %v3256, 5
      %v3259 = vsel %vm297, %v3254, %v3258
      %v3261 = vshrl.u32 %v3172, 16
      %v3263 = vrot.slane %v3261, 4
      %v3264 = vshll.u32 %v3172, 16
      %v3266 = vrot.slane %v3264, 5
      %v3267 = vor.u32 %v3263, %v3266
      %v3268 = vrot.slane %v3267, 4
      %v3270 = vshll.u32 %v3173, 16
      %v3272 = vrot.slane %v3270, 5
      %v3273 = vsel %vm297, %v3268, %v3272
      %v3275 = vshrl.u32 %v3174, 16
      %v3277 = vrot.slane %v3275, 4
      %v3278 = vshll.u32 %v3174, 16
      %v3280 = vrot.slane %v3278, 5
      %v3281 = vor.u32 %v3277, %v3280
      %v3282 = vrot.slane %v3281, 4
      %v3284 = vshll.u32 %v3175, 16
      %v3286 = vrot.slane %v3284, 5
      %v3287 = vsel %vm297, %v3282, %v3286
      %3296 = vst [vmem:[#allocation2 + $0x8] sm:$0xf] %v3189
      %3297 = vst [vmem:[#allocation2 + $0x18] sm:$0xf] %v3203
      %3298 = vst [vmem:[#allocation2 + $0x28] sm:$0xf] %v3217
      %3299 = vst [vmem:[#allocation2 + $0x38] sm:$0xf] %v3231
      %3300 = vst [vmem:[#allocation2 + $0x48] sm:$0xf] %v3245
      %3301 = vst [vmem:[#allocation2 + $0x58] sm:$0xf] %v3259
      %3302 = vst [vmem:[#allocation2 + $0x68] sm:$0xf] %v3273
      %3303 = vst [vmem:[#allocation2 + $0x78] sm:$0xf] %v3287
      %v3304 = vld [vmem:[%s2249] sm:$0xe]
      %v3305 = vld [vmem:[%s2249 + $0x4] sm:$0x1]
      %v3306 = vld [vmem:[%s2249 + $0x8] sm:$0xe]
      %v3307 = vld [vmem:[%s2249 + $0xc] sm:$0x1]
      %v3308 = vld [vmem:[%s2249 + $0x10] sm:$0xe]
      %v3309 = vld [vmem:[%s2249 + $0x14] sm:$0x1]
      %v3310 = vld [vmem:[%s2249 + $0x18] sm:$0xe]
      %v3311 = vld [vmem:[%s2249 + $0x1c] sm:$0x1]
      %v3312 = vld [vmem:[%s2249 + $0x20] sm:$0xe]
      %v3313 = vld [vmem:[%s2249 + $0x24] sm:$0x1]
      %v3314 = vld [vmem:[%s2249 + $0x28] sm:$0xe]
      %v3315 = vld [vmem:[%s2249 + $0x2c] sm:$0x1]
      %v3316 = vld [vmem:[%s2249 + $0x30] sm:$0xe]
      %v3317 = vld [vmem:[%s2249 + $0x34] sm:$0x1]
      %v3318 = vld [vmem:[%s2249 + $0x38] sm:$0xe]
      %v3319 = vld [vmem:[%s2249 + $0x3c] sm:$0x1]
      %v3336 = vrot.slane %v3304, 5
      %v3337 = vrot.slane %v3336, 4
      %v3338 = vrot.slane %v3305, 5
      %v3339 = vsel %vm1290, %v3337, %v3338
      %v3340 = vrot.slane %v3306, 5
      %v3341 = vrot.slane %v3340, 4
      %v3342 = vrot.slane %v3307, 5
      %v3343 = vsel %vm1290, %v3341, %v3342
      %v3344 = vrot.slane %v3308, 5
      %v3345 = vrot.slane %v3344, 4
      %v3346 = vrot.slane %v3309, 5
      %v3347 = vsel %vm1290, %v3345, %v3346
      %v3348 = vrot.slane %v3310, 5
      %v3349 = vrot.slane %v3348, 4
      %v3350 = vrot.slane %v3311, 5
      %v3351 = vsel %vm1290, %v3349, %v3350
      %v3352 = vrot.slane %v3312, 5
      %v3353 = vrot.slane %v3352, 4
      %v3354 = vrot.slane %v3313, 5
      %v3355 = vsel %vm1290, %v3353, %v3354
      %v3356 = vrot.slane %v3314, 5
      %v3357 = vrot.slane %v3356, 4
      %v3358 = vrot.slane %v3315, 5
      %v3359 = vsel %vm1290, %v3357, %v3358
      %v3360 = vrot.slane %v3316, 5
      %v3361 = vrot.slane %v3360, 4
      %v3362 = vrot.slane %v3317, 5
      %v3363 = vsel %vm1290, %v3361, %v3362
      %v3364 = vrot.slane %v3318, 5
      %v3365 = vrot.slane %v3364, 4
      %v3366 = vrot.slane %v3319, 5
      %v3367 = vsel %vm1290, %v3365, %v3366
      %3376 = vst [vmem:[#allocation2 + $0xc] sm:$0xf] %v3339
      %3377 = vst [vmem:[#allocation2 + $0x1c] sm:$0xf] %v3343
      %3378 = vst [vmem:[#allocation2 + $0x2c] sm:$0xf] %v3347
      %3379 = vst [vmem:[#allocation2 + $0x3c] sm:$0xf] %v3351
      %3380 = vst [vmem:[#allocation2 + $0x4c] sm:$0xf] %v3355
      %3381 = vst [vmem:[#allocation2 + $0x5c] sm:$0xf] %v3359
      %3382 = vst [vmem:[#allocation2 + $0x6c] sm:$0xf] %v3363
      %3383 = vst [vmem:[#allocation2 + $0x7c] sm:$0xf] %v3367
      %v3384 = vld [vmem:[#allocation2] sm:$0xff]
      %v3385 = vld [vmem:[#allocation2 + $0x8] sm:$0xff]
      %v3386 = vld [vmem:[#allocation2 + $0x10] sm:$0xff]
      %v3387 = vld [vmem:[#allocation2 + $0x18] sm:$0xff]
      %v3388 = vld [vmem:[#allocation2 + $0x20] sm:$0xff]
      %v3389 = vld [vmem:[#allocation2 + $0x28] sm:$0xff]
      %v3390 = vld [vmem:[#allocation2 + $0x30] sm:$0xff]
      %v3391 = vld [vmem:[#allocation2 + $0x38] sm:$0xff]
      %v3392 = vld [vmem:[#allocation2 + $0x40] sm:$0xff]
      %v3393 = vld [vmem:[#allocation2 + $0x48] sm:$0xff]
      %v3394 = vld [vmem:[#allocation2 + $0x50] sm:$0xff]
      %v3395 = vld [vmem:[#allocation2 + $0x58] sm:$0xff]
      %v3396 = vld [vmem:[#allocation2 + $0x60] sm:$0xff]
      %v3397 = vld [vmem:[#allocation2 + $0x68] sm:$0xff]
      %v3398 = vld [vmem:[#allocation2 + $0x70] sm:$0xff]
      %v3399 = vld [vmem:[#allocation2 + $0x78] sm:$0xff]
      %s3400 = scalar_lea.vmem %s248, 768
      %v3401 = vld [vmem:[%s3400] sm:$0xf]
      %v3402 = vld [vmem:[%s3400 + $0x4] sm:$0xf]
      %v3403 = vld [vmem:[%s3400 + $0x8] sm:$0xf]
      %v3404 = vld [vmem:[%s3400 + $0xc] sm:$0xf]
      %v3405 = vld [vmem:[%s3400 + $0x10] sm:$0xf]
      %v3406 = vld [vmem:[%s3400 + $0x14] sm:$0xf]
      %v3407 = vld [vmem:[%s3400 + $0x18] sm:$0xf]
      %v3408 = vld [vmem:[%s3400 + $0x1c] sm:$0xf]
      %v3409 = vld [vmem:[%s3400 + $0x20] sm:$0xf]
      %v3410 = vld [vmem:[%s3400 + $0x24] sm:$0xf]
      %v3411 = vld [vmem:[%s3400 + $0x28] sm:$0xf]
      %v3412 = vld [vmem:[%s3400 + $0x2c] sm:$0xf]
      %v3413 = vld [vmem:[%s3400 + $0x30] sm:$0xf]
      %v3414 = vld [vmem:[%s3400 + $0x34] sm:$0xf]
      %v3415 = vld [vmem:[%s3400 + $0x38] sm:$0xf]
      %v3416 = vld [vmem:[%s3400 + $0x3c] sm:$0xf]
      %v3417 = vld [vmem:[%s3400 + $0x40] sm:$0xf]
      %v3418 = vld [vmem:[%s3400 + $0x44] sm:$0xf]
      %v3419 = vld [vmem:[%s3400 + $0x48] sm:$0xf]
      %v3420 = vld [vmem:[%s3400 + $0x4c] sm:$0xf]
      %v3421 = vld [vmem:[%s3400 + $0x50] sm:$0xf]
      %v3422 = vld [vmem:[%s3400 + $0x54] sm:$0xf]
      %v3423 = vld [vmem:[%s3400 + $0x58] sm:$0xf]
      %v3424 = vld [vmem:[%s3400 + $0x5c] sm:$0xf]
      %v3425 = vld [vmem:[%s3400 + $0x60] sm:$0xf]
      %v3426 = vld [vmem:[%s3400 + $0x64] sm:$0xf]
      %v3427 = vld [vmem:[%s3400 + $0x68] sm:$0xf]
      %v3428 = vld [vmem:[%s3400 + $0x6c] sm:$0xf]
      %v3429 = vld [vmem:[%s3400 + $0x70] sm:$0xf]
      %v3430 = vld [vmem:[%s3400 + $0x74] sm:$0xf]
      %v3431 = vld [vmem:[%s3400 + $0x78] sm:$0xf]
      %v3432 = vld [vmem:[%s3400 + $0x7c] sm:$0xf]
      %v3433 = vld [vmem:[%s3400 + $0x80] sm:$0xf]
      %v3434 = vld [vmem:[%s3400 + $0x84] sm:$0xf]
      %v3435 = vld [vmem:[%s3400 + $0x88] sm:$0xf]
      %v3436 = vld [vmem:[%s3400 + $0x8c] sm:$0xf]
      %v3437 = vld [vmem:[%s3400 + $0x90] sm:$0xf]
      %v3438 = vld [vmem:[%s3400 + $0x94] sm:$0xf]
      %v3439 = vld [vmem:[%s3400 + $0x98] sm:$0xf]
      %v3440 = vld [vmem:[%s3400 + $0x9c] sm:$0xf]
      %v3441 = vld [vmem:[%s3400 + $0xa0] sm:$0xf]
      %v3442 = vld [vmem:[%s3400 + $0xa4] sm:$0xf]
      %v3443 = vld [vmem:[%s3400 + $0xa8] sm:$0xf]
      %v3444 = vld [vmem:[%s3400 + $0xac] sm:$0xf]
      %v3445 = vld [vmem:[%s3400 + $0xb0] sm:$0xf]
      %v3446 = vld [vmem:[%s3400 + $0xb4] sm:$0xf]
      %v3447 = vld [vmem:[%s3400 + $0xb8] sm:$0xf]
      %v3448 = vld [vmem:[%s3400 + $0xbc] sm:$0xf]
      %v3449 = vld [vmem:[%s3400 + $0xc0] sm:$0xf]
      %v3450 = vld [vmem:[%s3400 + $0xc4] sm:$0xf]
      %v3451 = vld [vmem:[%s3400 + $0xc8] sm:$0xf]
      %v3452 = vld [vmem:[%s3400 + $0xcc] sm:$0xf]
      %v3453 = vld [vmem:[%s3400 + $0xd0] sm:$0xf]
      %v3454 = vld [vmem:[%s3400 + $0xd4] sm:$0xf]
      %v3455 = vld [vmem:[%s3400 + $0xd8] sm:$0xf]
      %v3456 = vld [vmem:[%s3400 + $0xdc] sm:$0xf]
      %v3457 = vld [vmem:[%s3400 + $0xe0] sm:$0xf]
      %v3458 = vld [vmem:[%s3400 + $0xe4] sm:$0xf]
      %v3459 = vld [vmem:[%s3400 + $0xe8] sm:$0xf]
      %v3460 = vld [vmem:[%s3400 + $0xec] sm:$0xf]
      %v3461 = vld [vmem:[%s3400 + $0xf0] sm:$0xf]
      %v3462 = vld [vmem:[%s3400 + $0xf4] sm:$0xf]
      %v3463 = vld [vmem:[%s3400 + $0xf8] sm:$0xf]
      %v3464 = vld [vmem:[%s3400 + $0xfc] sm:$0xf]
      %v3481 = vunpack.c.l.b16 %v3384
      %v3482 = vunpack.c.h.b16 %v3384
      %v3483 = vunpack.c.l.b16 %v3385
      %v3484 = vunpack.c.h.b16 %v3385
      %v3485 = vunpack.c.l.b16 %v3386
      %v3486 = vunpack.c.h.b16 %v3386
      %v3487 = vunpack.c.l.b16 %v3387
      %v3488 = vunpack.c.h.b16 %v3387
      %v3489 = vunpack.c.l.b16 %v3388
      %v3490 = vunpack.c.h.b16 %v3388
      %v3491 = vunpack.c.l.b16 %v3389
      %v3492 = vunpack.c.h.b16 %v3389
      %v3493 = vunpack.c.l.b16 %v3390
      %v3494 = vunpack.c.h.b16 %v3390
      %v3495 = vunpack.c.l.b16 %v3391
      %v3496 = vunpack.c.h.b16 %v3391
      %v3497 = vunpack.c.l.b16 %v3392
      %v3498 = vunpack.c.h.b16 %v3392
      %v3499 = vunpack.c.l.b16 %v3393
      %v3500 = vunpack.c.h.b16 %v3393
      %v3501 = vunpack.c.l.b16 %v3394
      %v3502 = vunpack.c.h.b16 %v3394
      %v3503 = vunpack.c.l.b16 %v3395
      %v3504 = vunpack.c.h.b16 %v3395
      %v3505 = vunpack.c.l.b16 %v3396
      %v3506 = vunpack.c.h.b16 %v3396
      %v3507 = vunpack.c.l.b16 %v3397
      %v3508 = vunpack.c.h.b16 %v3397
      %v3509 = vunpack.c.l.b16 %v3398
      %v3510 = vunpack.c.h.b16 %v3398
      %v3511 = vunpack.c.l.b16 %v3399
      %v3512 = vunpack.c.h.b16 %v3399
      %v3513 = vpack.c.b16 %v3485, %v3481
      %v3514 = vpack.c.b16 %v3486, %v3482
      %v3515 = vpack.c.b16 %v3487, %v3483
      %v3516 = vpack.c.b16 %v3488, %v3484
      %v3517 = vpack.c.b16 %v3493, %v3489
      %v3518 = vpack.c.b16 %v3494, %v3490
      %v3519 = vpack.c.b16 %v3495, %v3491
      %v3520 = vpack.c.b16 %v3496, %v3492
      %v3521 = vpack.c.b16 %v3501, %v3497
      %v3522 = vpack.c.b16 %v3502, %v3498
      %v3523 = vpack.c.b16 %v3503, %v3499
      %v3524 = vpack.c.b16 %v3504, %v3500
      %v3525 = vpack.c.b16 %v3509, %v3505
      %v3526 = vpack.c.b16 %v3510, %v3506
      %v3527 = vpack.c.b16 %v3511, %v3507
      %v3528 = vpack.c.b16 %v3512, %v3508
      %v3609 = vunpack.c.l.b16 %v3401
      %v3610 = vunpack.c.l.b16 %v3402
      %v3611 = vunpack.c.l.b16 %v3403
      %v3612 = vunpack.c.l.b16 %v3404
      %v3613 = vunpack.c.l.b16 %v3405
      %v3614 = vunpack.c.l.b16 %v3406
      %v3615 = vunpack.c.l.b16 %v3407
      %v3616 = vunpack.c.l.b16 %v3408
      %v3617 = vunpack.c.l.b16 %v3409
      %v3618 = vunpack.c.l.b16 %v3410
      %v3619 = vunpack.c.l.b16 %v3411
      %v3620 = vunpack.c.l.b16 %v3412
      %v3621 = vunpack.c.l.b16 %v3413
      %v3622 = vunpack.c.l.b16 %v3414
      %v3623 = vunpack.c.l.b16 %v3415
      %v3624 = vunpack.c.l.b16 %v3416
      %v3625 = vunpack.c.l.b16 %v3417
      %v3626 = vunpack.c.l.b16 %v3418
      %v3627 = vunpack.c.l.b16 %v3419
      %v3628 = vunpack.c.l.b16 %v3420
      %v3629 = vunpack.c.l.b16 %v3421
      %v3630 = vunpack.c.l.b16 %v3422
      %v3631 = vunpack.c.l.b16 %v3423
      %v3632 = vunpack.c.l.b16 %v3424
      %v3633 = vunpack.c.l.b16 %v3425
      %v3634 = vunpack.c.l.b16 %v3426
      %v3635 = vunpack.c.l.b16 %v3427
      %v3636 = vunpack.c.l.b16 %v3428
      %v3637 = vunpack.c.l.b16 %v3429
      %v3638 = vunpack.c.l.b16 %v3430
      %v3639 = vunpack.c.l.b16 %v3431
      %v3640 = vunpack.c.l.b16 %v3432
      %v3641 = vunpack.c.l.b16 %v3433
      %v3642 = vunpack.c.l.b16 %v3434
      %v3643 = vunpack.c.l.b16 %v3435
      %v3644 = vunpack.c.l.b16 %v3436
      %v3645 = vunpack.c.l.b16 %v3437
      %v3646 = vunpack.c.l.b16 %v3438
      %v3647 = vunpack.c.l.b16 %v3439
      %v3648 = vunpack.c.l.b16 %v3440
      %v3649 = vunpack.c.l.b16 %v3441
      %v3650 = vunpack.c.l.b16 %v3442
      %v3651 = vunpack.c.l.b16 %v3443
      %v3652 = vunpack.c.l.b16 %v3444
      %v3653 = vunpack.c.l.b16 %v3445
      %v3654 = vunpack.c.l.b16 %v3446
      %v3655 = vunpack.c.l.b16 %v3447
      %v3656 = vunpack.c.l.b16 %v3448
      %v3657 = vunpack.c.l.b16 %v3449
      %v3658 = vunpack.c.l.b16 %v3450
      %v3659 = vunpack.c.l.b16 %v3451
      %v3660 = vunpack.c.l.b16 %v3452
      %v3661 = vunpack.c.l.b16 %v3453
      %v3662 = vunpack.c.l.b16 %v3454
      %v3663 = vunpack.c.l.b16 %v3455
      %v3664 = vunpack.c.l.b16 %v3456
      %v3665 = vunpack.c.l.b16 %v3457
      %v3666 = vunpack.c.l.b16 %v3458
      %v3667 = vunpack.c.l.b16 %v3459
      %v3668 = vunpack.c.l.b16 %v3460
      %v3669 = vunpack.c.l.b16 %v3461
      %v3670 = vunpack.c.l.b16 %v3462
      %v3671 = vunpack.c.l.b16 %v3463
      %v3672 = vunpack.c.l.b16 %v3464
      %v3673 = vpack.c.b16 %v3610, %v3609
      %v3674 = vpack.c.b16 %v3612, %v3611
      %v3675 = vpack.c.b16 %v3614, %v3613
      %v3676 = vpack.c.b16 %v3616, %v3615
      %v3677 = vpack.c.b16 %v3618, %v3617
      %v3678 = vpack.c.b16 %v3620, %v3619
      %v3679 = vpack.c.b16 %v3622, %v3621
      %v3680 = vpack.c.b16 %v3624, %v3623
      %v3681 = vpack.c.b16 %v3626, %v3625
      %v3682 = vpack.c.b16 %v3628, %v3627
      %v3683 = vpack.c.b16 %v3630, %v3629
      %v3684 = vpack.c.b16 %v3632, %v3631
      %v3685 = vpack.c.b16 %v3634, %v3633
      %v3686 = vpack.c.b16 %v3636, %v3635
      %v3687 = vpack.c.b16 %v3638, %v3637
      %v3688 = vpack.c.b16 %v3640, %v3639
      %v3689 = vpack.c.b16 %v3642, %v3641
      %v3690 = vpack.c.b16 %v3644, %v3643
      %v3691 = vpack.c.b16 %v3646, %v3645
      %v3692 = vpack.c.b16 %v3648, %v3647
      %v3693 = vpack.c.b16 %v3650, %v3649
      %v3694 = vpack.c.b16 %v3652, %v3651
      %v3695 = vpack.c.b16 %v3654, %v3653
      %v3696 = vpack.c.b16 %v3656, %v3655
      %v3697 = vpack.c.b16 %v3658, %v3657
      %v3698 = vpack.c.b16 %v3660, %v3659
      %v3699 = vpack.c.b16 %v3662, %v3661
      %v3700 = vpack.c.b16 %v3664, %v3663
      %v3701 = vpack.c.b16 %v3666, %v3665
      %v3702 = vpack.c.b16 %v3668, %v3667
      %v3703 = vpack.c.b16 %v3670, %v3669
      %v3704 = vpack.c.b16 %v3672, %v3671
      %3737 = vmatpush.bf16.msra.mxu0 %v3680
      %3738 = vmatpush.bf16.msra.mxu0 %v3679
      %3739 = vmatpush.bf16.msra.mxu0 %v3678
      %3740 = vmatpush.bf16.msra.mxu0 %v3677
      %3741 = vmatpush.bf16.msra.mxu0 %v3676
      %3742 = vmatpush.bf16.msra.mxu0 %v3675
      %3743 = vmatpush.bf16.msra.mxu0 %v3674
      %3744 = vmatpush.bf16.msra.mxu0 %v3673
      %3745 = vmatmul.bf16.gmra.mxu0 %v3513
      %v3746 = vpop.f32.mrf.mxu0
      %v3747 = vadd.f32 0.0, %v3746
      %v3748 = vpop.f32.mrf.mxu0
      %v3749 = vadd.f32 0.0, %v3748
      %3750 = vmatmul.bf16.gmra.mxu0 %v3517
      %v3751 = vpop.f32.mrf.mxu0
      %v3752 = vadd.f32 0.0, %v3751
      %v3753 = vpop.f32.mrf.mxu0
      %v3754 = vadd.f32 0.0, %v3753
      %3755 = vmatmul.bf16.gmra.mxu0 %v3521
      %v3756 = vpop.f32.mrf.mxu0
      %v3757 = vadd.f32 0.0, %v3756
      %v3758 = vpop.f32.mrf.mxu0
      %v3759 = vadd.f32 0.0, %v3758
      %3760 = vmatmul.bf16.gmra.mxu0 %v3525
      %v3761 = vpop.f32.mrf.mxu0
      %v3762 = vadd.f32 0.0, %v3761
      %v3763 = vpop.f32.mrf.mxu0
      %v3764 = vadd.f32 0.0, %v3763
      %3765 = vdwg.mxu0
      %3766 = vmatpush.bf16.msra.mxu0 %v3688
      %3767 = vmatpush.bf16.msra.mxu0 %v3687
      %3768 = vmatpush.bf16.msra.mxu0 %v3686
      %3769 = vmatpush.bf16.msra.mxu0 %v3685
      %3770 = vmatpush.bf16.msra.mxu0 %v3684
      %3771 = vmatpush.bf16.msra.mxu0 %v3683
      %3772 = vmatpush.bf16.msra.mxu0 %v3682
      %3773 = vmatpush.bf16.msra.mxu0 %v3681
      %3774 = vmatmul.bf16.gmra.mxu0 %v3514
      %v3775 = vpop.f32.mrf.mxu0
      %v3776 = vadd.f32 %v3747, %v3775
      %v3777 = vpop.f32.mrf.mxu0
      %v3778 = vadd.f32 %v3749, %v3777
      %3779 = vmatmul.bf16.gmra.mxu0 %v3518
      %v3780 = vpop.f32.mrf.mxu0
      %v3781 = vadd.f32 %v3752, %v3780
      %v3782 = vpop.f32.mrf.mxu0
      %v3783 = vadd.f32 %v3754, %v3782
      %3784 = vmatmul.bf16.gmra.mxu0 %v3522
      %v3785 = vpop.f32.mrf.mxu0
      %v3786 = vadd.f32 %v3757, %v3785
      %v3787 = vpop.f32.mrf.mxu0
      %v3788 = vadd.f32 %v3759, %v3787
      %3789 = vmatmul.bf16.gmra.mxu0 %v3526
      %v3790 = vpop.f32.mrf.mxu0
      %v3791 = vadd.f32 %v3762, %v3790
      %v3792 = vpop.f32.mrf.mxu0
      %v3793 = vadd.f32 %v3764, %v3792
      %3794 = vdwg.mxu0
      %3795 = vmatpush.bf16.msra.mxu0 %v3696
      %3796 = vmatpush.bf16.msra.mxu0 %v3695
      %3797 = vmatpush.bf16.msra.mxu0 %v3694
      %3798 = vmatpush.bf16.msra.mxu0 %v3693
      %3799 = vmatpush.bf16.msra.mxu0 %v3692
      %3800 = vmatpush.bf16.msra.mxu0 %v3691
      %3801 = vmatpush.bf16.msra.mxu0 %v3690
      %3802 = vmatpush.bf16.msra.mxu0 %v3689
      %3803 = vmatmul.bf16.gmra.mxu0 %v3515
      %v3804 = vpop.f32.mrf.mxu0
      %v3805 = vadd.f32 %v3776, %v3804
      %v3806 = vpop.f32.mrf.mxu0
      %v3807 = vadd.f32 %v3778, %v3806
      %3808 = vmatmul.bf16.gmra.mxu0 %v3519
      %v3809 = vpop.f32.mrf.mxu0
      %v3810 = vadd.f32 %v3781, %v3809
      %v3811 = vpop.f32.mrf.mxu0
      %v3812 = vadd.f32 %v3783, %v3811
      %3813 = vmatmul.bf16.gmra.mxu0 %v3523
      %v3814 = vpop.f32.mrf.mxu0
      %v3815 = vadd.f32 %v3786, %v3814
      %v3816 = vpop.f32.mrf.mxu0
      %v3817 = vadd.f32 %v3788, %v3816
      %3818 = vmatmul.bf16.gmra.mxu0 %v3527
      %v3819 = vpop.f32.mrf.mxu0
      %v3820 = vadd.f32 %v3791, %v3819
      %v3821 = vpop.f32.mrf.mxu0
      %v3822 = vadd.f32 %v3793, %v3821
      %3823 = vdwg.mxu0
      %3824 = vmatpush.bf16.msra.mxu0 %v3704
      %3825 = vmatpush.bf16.msra.mxu0 %v3703
      %3826 = vmatpush.bf16.msra.mxu0 %v3702
      %3827 = vmatpush.bf16.msra.mxu0 %v3701
      %3828 = vmatpush.bf16.msra.mxu0 %v3700
      %3829 = vmatpush.bf16.msra.mxu0 %v3699
      %3830 = vmatpush.bf16.msra.mxu0 %v3698
      %3831 = vmatpush.bf16.msra.mxu0 %v3697
      %3832 = vmatmul.bf16.gmra.mxu0 %v3516
      %v3833 = vpop.f32.mrf.mxu0
      %v3834 = vadd.f32 %v3805, %v3833
      %v3835 = vpop.f32.mrf.mxu0
      %v3836 = vadd.f32 %v3807, %v3835
      %3837 = vmatmul.bf16.gmra.mxu0 %v3520
      %v3838 = vpop.f32.mrf.mxu0
      %v3839 = vadd.f32 %v3810, %v3838
      %v3840 = vpop.f32.mrf.mxu0
      %v3841 = vadd.f32 %v3812, %v3840
      %3842 = vmatmul.bf16.gmra.mxu0 %v3524
      %v3843 = vpop.f32.mrf.mxu0
      %v3844 = vadd.f32 %v3815, %v3843
      %v3845 = vpop.f32.mrf.mxu0
      %v3846 = vadd.f32 %v3817, %v3845
      %3847 = vmatmul.bf16.gmra.mxu0 %v3528
      %v3848 = vpop.f32.mrf.mxu0
      %v3849 = vadd.f32 %v3820, %v3848
      %v3850 = vpop.f32.mrf.mxu0
      %v3851 = vadd.f32 %v3822, %v3850
      %3852 = vdwg.mxu0
      %v3853 = vld [vmem:[%s251] sm:$0x1]
      %v3855 = vperm.slane %v3853, 0
      %v3857 = vmul.f32 %v3834, %v3855
      %v3858 = vmul.f32 %v3836, %v3855
      %v3859 = vmul.f32 %v3839, %v3855
      %v3860 = vmul.f32 %v3841, %v3855
      %v3861 = vmul.f32 %v3844, %v3855
      %v3862 = vmul.f32 %v3846, %v3855
      %v3863 = vmul.f32 %v3849, %v3855
      %v3864 = vmul.f32 %v3851, %v3855
      %v3865 = vld [vmem:[%s254] sm:$0x1]
      %v3867 = vperm.slane %v3865, 0
      %v3869 = vadd.f32 %v3857, %v3867
      %v3870 = vadd.f32 %v3858, %v3867
      %v3871 = vadd.f32 %v3859, %v3867
      %v3872 = vadd.f32 %v3860, %v3867
      %v3873 = vadd.f32 %v3861, %v3867
      %v3874 = vadd.f32 %v3862, %v3867
      %v3875 = vadd.f32 %v3863, %v3867
      %v3876 = vadd.f32 %v3864, %v3867
      %vm3877 = vcmp.gt.f32.partialorder %v3869, 0.0
      %vm3878 = vcmp.gt.f32.partialorder %v3870, 0.0
      %vm3879 = vcmp.gt.f32.partialorder %v3871, 0.0
      %vm3880 = vcmp.gt.f32.partialorder %v3872, 0.0
      %vm3881 = vcmp.gt.f32.partialorder %v3873, 0.0
      %vm3882 = vcmp.gt.f32.partialorder %v3874, 0.0
      %vm3883 = vcmp.gt.f32.partialorder %v3875, 0.0
      %vm3884 = vcmp.gt.f32.partialorder %v3876, 0.0
      %v3885 = vmul.f32 %v3869, 0.01
      %v3886 = vmul.f32 %v3870, 0.01
      %v3887 = vmul.f32 %v3871, 0.01
      %v3888 = vmul.f32 %v3872, 0.01
      %v3889 = vmul.f32 %v3873, 0.01
      %v3890 = vmul.f32 %v3874, 0.01
      %v3891 = vmul.f32 %v3875, 0.01
      %v3892 = vmul.f32 %v3876, 0.01
      %v3893 = vsel %vm3877, %v3869, %v3885
      %v3894 = vsel %vm3878, %v3870, %v3886
      %v3895 = vsel %vm3879, %v3871, %v3887
      %v3896 = vsel %vm3880, %v3872, %v3888
      %v3897 = vsel %vm3881, %v3873, %v3889
      %v3898 = vsel %vm3882, %v3874, %v3890
      %v3899 = vsel %vm3883, %v3875, %v3891
      %v3900 = vsel %vm3884, %v3876, %v3892
      %s3901 = scalar_lea.vmem %s262, 192
      %3902 = vst.msk [vmem:[%s3901] sm:$0xff] %vm1103, %v3893
      %3903 = vst.msk [vmem:[%s3901 + $0x8] sm:$0xff] %vm1103, %v3894
      %3904 = vst.msk [vmem:[%s3901 + $0x10] sm:$0xff] %vm1103, %v3895
      %3905 = vst.msk [vmem:[%s3901 + $0x18] sm:$0xff] %vm1103, %v3896
      %3906 = vst.msk [vmem:[%s3901 + $0x20] sm:$0xff] %vm1103, %v3897
      %3907 = vst.msk [vmem:[%s3901 + $0x28] sm:$0xff] %vm1103, %v3898
      %3908 = vst.msk [vmem:[%s3901 + $0x30] sm:$0xff] %vm1103, %v3899
      %3909 = vst.msk [vmem:[%s3901 + $0x38] sm:$0xff] %vm1103, %v3900
      %p3910 = scmp.lt.s32.totalorder %s19, 1
      %s3911 = scalar_select %p3910, %s19, 1
      %p3912 = scmp.lt.s32.totalorder %s20, 0
      %s3913 = scalar_select %p3912, %s20, 0
      %s3914 = smul.addr %s3911, 32
      %s3915 = sadd.s32 %s3913, %s3914
      %s3916 = smul.addr %s3915, 8
      %s3917 = scalar_lea.vmem %s4, %s3916
      // Predicated region
      $region37: #{up_conv_forward.1} parent=35 // pred_check
        %p3918 = pneg %p151
      $region38: #{up_conv_forward.1} parent=35 // pred_check_branch
        %3920 = sbr.rel (%p3918) target = $region40
      $region39: #{up_conv_forward.1} parent=35 // pred_region
        _
      $region40: #{up_conv_forward.1} parent=35 // pred_fallthru
        _
    $region36: #{up_conv_forward.1} parent=5 // pred_fallthru
      _
    %p3921 = scmp.le.s32.totalorder 2, %s10
    // Predicated region
    $region41: #{up_conv_forward.1} parent=5 // pred_check
      %p3922 = pneg %p3921
    $region42: #{up_conv_forward.1} parent=5 // pred_check_branch
      %3924 = sbr.rel (%p3922) target = $region44
    $region43: #{up_conv_forward.1} parent=5 // pred_region
      %s3925 = ssub.s32 %s10, 2
      // Predicated region
      $region45: #{up_conv_forward.1} parent=43 // pred_check
        %p3926 = pneg %p157
      $region46: #{up_conv_forward.1} parent=43 // pred_check_branch
        %3928 = sbr.rel (%p3926) target = $region48
      $region47: #{up_conv_forward.1} parent=43 // pred_region
        %p3929 = scmp.lt.s32.totalorder %s21, 1
        %s3930 = scalar_select %p3929, %s21, 1
        %p3931 = scmp.lt.s32.totalorder %s22, 0
        %s3932 = scalar_select %p3931, %s22, 0
        %s3933 = smul.addr %s3930, 32
        %s3934 = sadd.s32 %s3932, %s3933
        %s3935 = smul.addr %s3934, 8
        %s3936 = scalar_lea.vmem %s4, %s3935
      $region48: #{up_conv_forward.1} parent=43 // pred_fallthru
        _
    $region44: #{up_conv_forward.1} parent=5 // pred_fallthru
      _
  $region6: #{up_conv_forward.1} parent=0 // loop_footer
    %s14 = sadd.s32 1, %s10
  $region7: #{up_conv_forward.1} parent=0 // loop_footer_branch
    %9 = sbr.rel target = $region3
  $region8: #{up_conv_forward.1} parent=0 // loop_exit
    _

</llo_original>
